<compile_context>
chip_gen: v5e
topology: v5e:2x2
jax: 0.10.0
libtpu: 0.0.40
codegen_flags: <defaults>
</compile_context>

<pallas_src>
import functools
import math

import jax
import jax.numpy as jnp
from jax.experimental import pallas as pl
from jax.experimental.pallas import tpu as pltpu

MiB = 1024 * 1024
LANE = 128


def _round_up(x, m):
    return ((x + m - 1) // m) * m


def _pad2(x, rows, cols):
    r, c = x.shape
    return jnp.pad(x, ((0, rows - r), (0, cols - c)))


# ---------------------------------------------------------------------------
# Kernel 1: feature transform  out = (X @ W) * row_scale   (stored bf16)
#   grid = (node_tiles, k_tiles); f32 VMEM accumulator; scale applied once.
# ---------------------------------------------------------------------------
def _xform_kernel(x_ref, w_ref, scale_ref, o_ref, acc_ref):
    k = pl.program_id(1)

    @pl.when(k == 0)
    def _init():
        acc_ref[...] = jnp.zeros_like(acc_ref)

    acc_ref[...] += jnp.dot(x_ref[...], w_ref[...],
                            preferred_element_type=jnp.float32)

    @pl.when(k == pl.num_programs(1) - 1)
    def _fin():
        o_ref[...] = (acc_ref[...] * scale_ref[...]).astype(o_ref.dtype)


def feature_transform(x, w, scale, *, tm, tk, out_dtype=jnp.bfloat16,
                      vmem_limit_bytes=None):
    m, kd = x.shape
    _, n = w.shape
    grid = (m // tm, kd // tk)
    bytes_accessed = (x.size * x.dtype.itemsize + w.size * w.dtype.itemsize
                      + scale.size * 4 + m * n * jnp.dtype(out_dtype).itemsize)
    return pl.pallas_call(
        _xform_kernel,
        out_shape=jax.ShapeDtypeStruct((m, n), out_dtype),
        grid_spec=pltpu.PrefetchScalarGridSpec(
            num_scalar_prefetch=0,
            grid=grid,
            in_specs=[
                pl.BlockSpec((tm, tk), lambda i, k: (i, k)),   # X tile
                pl.BlockSpec((tk, n), lambda i, k: (k, 0)),    # W tile
                pl.BlockSpec((tm, 1), lambda i, k: (i, 0)),    # row scale
            ],
            out_specs=pl.BlockSpec((tm, n), lambda i, k: (i, 0)),
            scratch_shapes=[pltpu.VMEM((tm, n), jnp.float32)],
        ),
        compiler_params=pltpu.CompilerParams(
            dimension_semantics=("parallel", "arbitrary"),
            vmem_limit_bytes=vmem_limit_bytes,
        ),
        cost_estimate=pl.CostEstimate(
            flops=2 * m * n * kd, transcendentals=0,
            bytes_accessed=bytes_accessed),
    )(x, w, scale)


# ---------------------------------------------------------------------------
# Kernel 2: aggregation  acc = A_bin(int8) @ feats(bf16)  accumulated over k.
#   finalize (non-fused):  out = acc * row_scale + bias
#   finalize (fused-W2)  :  out = (relu(acc * row_scale + bias).bf16 @ W2)
#                                 * row_scale
# ---------------------------------------------------------------------------
def _agg_accumulate(a_ref, b_ref, acc_ref, *, tk, b_resident):
    k = pl.program_id(1)

    @pl.when(k == 0)
    def _init():
        acc_ref[...] = jnp.zeros_like(acc_ref)

    a_tile = a_ref[...].astype(jnp.bfloat16)   # 0/1 int8 -> exact bf16
    if b_resident:
        k0 = pl.multiple_of(k * tk, tk)
        b_tile = b_ref[pl.ds(k0, tk), :]       # resident B: slice the K window
    else:
        b_tile = b_ref[...]
    acc_ref[...] += jnp.dot(a_tile, b_tile, preferred_element_type=jnp.float32)


def _agg_kernel(a_ref, b_ref, scale_ref, bias_ref, o_ref, acc_ref,
                *, tk, b_resident):
    _agg_accumulate(a_ref, b_ref, acc_ref, tk=tk, b_resident=b_resident)

    @pl.when(pl.program_id(1) == pl.num_programs(1) - 1)
    def _fin():
        out = acc_ref[...] * scale_ref[...] + bias_ref[...]
        o_ref[...] = out.astype(o_ref.dtype)


def _agg_fused_kernel(a_ref, b_ref, scale_ref, bias_ref, w2_ref, o_ref,
                      acc_ref, *, tk, b_resident):
    _agg_accumulate(a_ref, b_ref, acc_ref, tk=tk, b_resident=b_resident)

    @pl.when(pl.program_id(1) == pl.num_programs(1) - 1)
    def _fin():
        h1 = jnp.maximum(acc_ref[...] * scale_ref[...] + bias_ref[...], 0.0)
        z = jnp.dot(h1.astype(jnp.bfloat16), w2_ref[...],
                    preferred_element_type=jnp.float32)
        o_ref[...] = (z * scale_ref[...]).astype(o_ref.dtype)


def aggregate(a_bin, feats, scale, bias, w2=None, *, tm, tk, out_dtype,
              b_resident=True, vmem_limit_bytes=None):
    n_p = a_bin.shape[0]
    h_p = feats.shape[1]
    grid = (n_p // tm, n_p // tk)

    if b_resident:
        b_spec = pl.BlockSpec((n_p, h_p), lambda i, k: (0, 0))   # DMA'd once
    else:
        b_spec = pl.BlockSpec((tk, h_p), lambda i, k: (k, 0))

    in_specs = [
        pl.BlockSpec((tm, tk), lambda i, k: (i, k)),    # int8 A tile
        b_spec,                                          # features
        pl.BlockSpec((tm, 1), lambda i, k: (i, 0)),      # row scale d^{-1/2}
        pl.BlockSpec((1, h_p), lambda i, k: (0, 0)),     # bias
    ]
    args = [a_bin, feats, scale, bias]
    flops = 2 * n_p * n_p * h_p
    if w2 is not None:
        in_specs.append(pl.BlockSpec((h_p, h_p), lambda i, k: (0, 0)))
        args.append(w2)
        flops += 2 * n_p * h_p * h_p
        kernel = functools.partial(_agg_fused_kernel, tk=tk,
                                   b_resident=b_resident)
    else:
        kernel = functools.partial(_agg_kernel, tk=tk, b_resident=b_resident)

    bytes_accessed = (a_bin.size + feats.size * 2
                      + n_p * h_p * jnp.dtype(out_dtype).itemsize)

    return pl.pallas_call(
        kernel,
        out_shape=jax.ShapeDtypeStruct((n_p, h_p), out_dtype),
        grid_spec=pltpu.PrefetchScalarGridSpec(
            num_scalar_prefetch=0,
            grid=grid,
            in_specs=in_specs,
            out_specs=pl.BlockSpec((tm, h_p), lambda i, k: (i, 0)),
            scratch_shapes=[pltpu.VMEM((tm, h_p), jnp.float32)],
        ),
        compiler_params=pltpu.CompilerParams(
            dimension_semantics=("parallel", "arbitrary"),
            vmem_limit_bytes=vmem_limit_bytes,
        ),
        cost_estimate=pl.CostEstimate(flops=flops, transcendentals=0,
                                      bytes_accessed=bytes_accessed),
    )(*args)


# ---------------------------------------------------------------------------
# GCN forward built from the kernels above.
# ---------------------------------------------------------------------------
def gcn_forward(a_bin, d_inv_sqrt, x, params, *, agg_tile=1024):
    """Two-layer GCN forward.

    a_bin:      (N, N) int8 binary adjacency with self loops (A + I).
    d_inv_sqrt: (N,)   f32 degree^{-1/2} of a_bin.
    """
    n, in_feats = x.shape
    h_feats = params["w1"].shape[1]

    f_p = _round_up(in_feats, LANE)
    h_p = _round_up(h_feats, LANE)

    # Node tiling: large tiles amortize the ~0.35us per-grid-step overhead;
    # clamp for small graphs and keep >=2 row blocks when possible so both
    # v7x TensorCores get work.
    tile = min(agg_tile, _round_up(n, 256))
    n_p = _round_up(n, tile)
    if n_p // tile == 1 and n_p >= 512:
        tile = n_p // 2

    # Pad once; A stays exact int8, weights/features go bf16 for the MXU,
    # normalization scales and biases stay f32.
    a_p = _pad2(a_bin, n_p, n_p).astype(jnp.int8)
    x_p = _pad2(x, n_p, f_p).astype(jnp.bfloat16)
    w1_p = _pad2(params["w1"], f_p, h_p).astype(jnp.bfloat16)
    w2_p = _pad2(params["w2"], h_p, h_p).astype(jnp.bfloat16)
    b1_p = _pad2(params["b1"], 1, h_p).astype(jnp.float32)
    b2_p = _pad2(params["b2"], 1, h_p).astype(jnp.float32)
    scale = jnp.pad(d_inv_sqrt.astype(jnp.float32), (0, n_p - n))[:, None]

    # Keep the (n_p, h_p) feature operand fully VMEM-resident when its
    # double-buffered footprint is modest; otherwise fall back to tiled B.
    b_resident = 2 * n_p * h_p * 2 <= 16 * MiB

    # Per-call scoped-VMEM budgets (double-buffered), capped at 48 MiB so the
    # same config is safe on v5e/v6e (128 MiB) and v7x (64 MiB physical).
    agg_need = (2 * tile * tile * 1
                + (2 * n_p * h_p * 2 if b_resident else 2 * tile * h_p * 2)
                + 2 * tile * h_p * 4
                + tile * h_p * 4)
    agg_vmem = int(min(max(agg_need + 8 * MiB, 32 * MiB), 48 * MiB))

    tk_f = math.gcd(f_p, 512)
    xform_need = (2 * tile * tk_f * 2 + 2 * tk_f * h_p * 2
                  + 2 * tile * h_p * 2 + tile * h_p * 4)
    xform_vmem = int(min(max(xform_need + 8 * MiB, 32 * MiB), 48 * MiB))

    # 1) XW1 with the column normalization folded in:  (X @ W1) * D^{-1/2}.
    xw1 = feature_transform(x_p, w1_p, scale, tm=tile, tk=tk_f,
                            out_dtype=jnp.bfloat16,
                            vmem_limit_bytes=xform_vmem)

    # 2) Fused layer:  z = (relu(D^{-1/2} A xw1 + b1) @ W2) * D^{-1/2}.
    z = aggregate(a_p, xw1, scale, b1_p, w2_p, tm=tile, tk=tile,
                  out_dtype=jnp.bfloat16, b_resident=b_resident,
                  vmem_limit_bytes=agg_vmem)

    # 3) out = D^{-1/2} A z + b2.
    out = aggregate(a_p, z, scale, b2_p, None, tm=tile, tk=tile,
                    out_dtype=jnp.float32, b_resident=b_resident,
                    vmem_limit_bytes=agg_vmem)

    return out[:n, :h_feats]


# ---------------------------------------------------------------------------
# Plain-JAX glue: params, graph construction, references.
# ---------------------------------------------------------------------------
def init_params(key, in_feats, h_feats):
    k1, k2 = jax.random.split(key)

    def glorot(k, fan_in, fan_out):
        lim = (6.0 / (fan_in + fan_out)) ** 0.5
        return jax.random.uniform(k, (fan_in, fan_out), jnp.float32, -lim, lim)

    return {
        "w1": glorot(k1, in_feats, h_feats),
        "b1": jnp.zeros((1, h_feats), jnp.float32),
        "w2": glorot(k2, h_feats, h_feats),
        "b2": jnp.zeros((1, h_feats), jnp.float32),
    }


def make_graph(key, n):
    """Random symmetric binary adjacency with self loops + its D^{-1/2}."""
    a = jax.random.bernoulli(key, 0.3, (n, n))
    a = jnp.logical_or(a, a.T)
    a = jnp.logical_or(a, jnp.eye(n, dtype=bool))
    a_bin = a.astype(jnp.int8)
    deg = jnp.sum(a_bin.astype(jnp.float32), axis=1)
    d_inv_sqrt = jnp.where(deg > 0, 1.0 / jnp.sqrt(deg), 0.0)
    return a_bin, d_inv_sqrt


def gcn_reference_matched(a_bin, d_inv_sqrt, x, params):
    """Mirrors the kernel's exact-A / bf16-intermediate / f32-accumulate math."""
    f32 = jnp.float32
    bf = lambda t: t.astype(jnp.bfloat16).astype(f32)
    s = d_inv_sqrt.astype(f32)[:, None]
    a = a_bin.astype(f32)
    xw1 = bf((bf(x) @ bf(params["w1"])) * s)                  # stored bf16
    h1 = jnp.maximum((a @ xw1) * s + params["b1"], 0.0)
    z = bf(((bf(h1) @ bf(params["w2"])) * s))                 # stored bf16
    return (a @ z) * s + params["b2"]


def gcn_reference_exact(a_bin, d_inv_sqrt, x, params):
    """Pure f32 DGL GraphConv(norm='both') semantics."""
    s = d_inv_sqrt[:, None]
    a_hat = a_bin.astype(jnp.float32) * s * s.T
    h1 = jnp.maximum(a_hat @ (x @ params["w1"]) + params["b1"], 0.0)
    return a_hat @ (h1 @ params["w2"]) + params["b2"]


if __name__ == "__main__":
    # Small shapes consistent with the module.
    N, IN_FEATS, H_FEATS = 8, 16, 32
    key = jax.random.PRNGKey(0)
    kg, kf, kp = jax.random.split(key, 3)

    a_bin, d_inv_sqrt = make_graph(kg, N)
    x = jax.random.normal(kf, (N, IN_FEATS), jnp.float32)
    params = init_params(kp, IN_FEATS, H_FEATS)

    out = jax.jit(gcn_forward)(a_bin, d_inv_sqrt, x, params)
    jax.block_until_ready(out)
    assert out.shape == (N, H_FEATS)

    ref_m = gcn_reference_matched(a_bin, d_inv_sqrt, x, params)
    ref_e = gcn_reference_exact(a_bin, d_inv_sqrt, x, params)
    scale_m = max(1.0, float(jnp.max(jnp.abs(ref_m))))
    err_m = float(jnp.max(jnp.abs(out - ref_m)))
    err_e = float(jnp.max(jnp.abs(out - ref_e)))
    assert err_m < 5e-2 * scale_m, ("matched-ref mismatch", err_m)
    assert err_e < 1e-1 * max(1.0, float(jnp.max(jnp.abs(ref_e)))), (
        "exact-ref mismatch", err_e)

    # Multi-tile check: exercises multi-block index maps and the
    # k-accumulation / finalize path (3x3 A grid at 256-node tiles).
    N2 = 640
    kg2, kf2 = jax.random.split(jax.random.PRNGKey(1))
    a_bin2, d2 = make_graph(kg2, N2)
    x2 = jax.random.normal(kf2, (N2, IN_FEATS), jnp.float32)
    fwd_small_tiles = functools.partial(gcn_forward, agg_tile=256)
    out2 = jax.jit(fwd_small_tiles)(a_bin2, d2, x2, params)
    jax.block_until_ready(out2)
    assert out2.shape == (N2, H_FEATS)
    ref2 = gcn_reference_matched(a_bin2, d2, x2, params)
    err2 = float(jnp.max(jnp.abs(out2 - ref2)))
    assert err2 < 5e-2 * max(1.0, float(jnp.max(jnp.abs(ref2)))), (
        "multi-tile mismatch", err2)

    print("KERNEL_OK")
</pallas_src>

<mosaic_0001>
module attributes {stable_mosaic.version = 11 : i64} {
  func.func @_xform_kernel(%arg0: i32, %arg1: i32, %arg2: memref<256x128xbf16, #tpu.memory_space<vmem>>, %arg3: memref<128x128xbf16, #tpu.memory_space<vmem>>, %arg4: memref<256x1xf32, #tpu.memory_space<vmem>>, %arg5: memref<256x128xbf16, #tpu.memory_space<vmem>>, %arg6: memref<256x128xf32, #tpu.memory_space<vmem>>) attributes {dimension_semantics = [#tpu.dimension_semantics<parallel>, #tpu.dimension_semantics<arbitrary>], iteration_bounds = array<i64: 1, 1>, scalar_prefetch = 0 : i64, scratch_operands = 1 : i64, tpu.core_type = #tpu.core_type<tc>, window_params = [{transform_indices = @transform_0, window_bounds = array<i64: 256, 128>}, {transform_indices = @transform_1, window_bounds = array<i64: 128, 128>}, {transform_indices = @transform_2, window_bounds = array<i64: 256, 1>}, {transform_indices = @transform_3, window_bounds = array<i64: 256, 128>}]} {
    %c0_i32 = arith.constant 0 : i32
    %0 = arith.cmpi eq, %arg1, %c0_i32 : i32
    %1 = arith.extui %0 : i1 to i32
    %c0_i32_0 = arith.constant 0 : i32
    %2 = arith.cmpi ne, %1, %c0_i32_0 : i32
    scf.if %2 {
      %cst_10 = arith.constant 0.000000e+00 : f32
      %12 = vector.broadcast %cst_10 : f32 to vector<256x128xf32>
      %c0_11 = arith.constant 0 : index
      %c0_12 = arith.constant 0 : index
      %13 = vector.load %arg6[%c0_11, %c0_12] : memref<256x128xf32, #tpu.memory_space<vmem>>, vector<256x128xf32>
      tpu.vector_store %arg6[%c0_11, %c0_12], %12 {strides = array<i32>} : memref<256x128xf32, #tpu.memory_space<vmem>>, vector<256x128xf32>,
    } else {
    }
    %c0 = arith.constant 0 : index
    %c0_1 = arith.constant 0 : index
    %3 = vector.load %arg6[%c0, %c0_1] : memref<256x128xf32, #tpu.memory_space<vmem>>, vector<256x128xf32>
    %c0_2 = arith.constant 0 : index
    %c0_3 = arith.constant 0 : index
    %4 = vector.load %arg2[%c0_2, %c0_3] : memref<256x128xbf16, #tpu.memory_space<vmem>>, vector<256x128xbf16>
    %c0_4 = arith.constant 0 : index
    %c0_5 = arith.constant 0 : index
    %5 = vector.load %arg3[%c0_4, %c0_5] : memref<128x128xbf16, #tpu.memory_space<vmem>>, vector<128x128xbf16>
    %cst = arith.constant dense<0.000000e+00> : vector<256x128xf32>
    %6 = tpu.matmul %4, %5, %cst {dimension_numbers = #tpu.dot_dimension_numbers<[1], [0], [0], [1], [0, 0, 1, 1], [], []>} : vector<256x128xbf16>, vector<128x128xbf16>, vector<256x128xf32> -> vector<256x128xf32>
    %7 = arith.addf %3, %6 : vector<256x128xf32>
    %c0_6 = arith.constant 0 : index
    %c0_7 = arith.constant 0 : index
    %8 = vector.load %arg6[%c0_6, %c0_7] : memref<256x128xf32, #tpu.memory_space<vmem>>, vector<256x128xf32>
    tpu.vector_store %arg6[%c0_6, %c0_7], %7 {strides = array<i32>} : memref<256x128xf32, #tpu.memory_space<vmem>>, vector<256x128xf32>,
    %c0_i32_8 = arith.constant 0 : i32
    %9 = arith.cmpi eq, %arg1, %c0_i32_8 : i32
    %10 = arith.extui %9 : i1 to i32
    %c0_i32_9 = arith.constant 0 : i32
    %11 = arith.cmpi ne, %10, %c0_i32_9 : i32
    scf.if %11 {
      %c0_10 = arith.constant 0 : index
      %c0_11 = arith.constant 0 : index
      %12 = vector.load %arg6[%c0_10, %c0_11] : memref<256x128xf32, #tpu.memory_space<vmem>>, vector<256x128xf32>
      %c0_12 = arith.constant 0 : index
      %c0_13 = arith.constant 0 : index
      %13 = vector.load %arg4[%c0_12, %c0_13] : memref<256x1xf32, #tpu.memory_space<vmem>>, vector<256x1xf32>
      %14 = vector.broadcast %13 : vector<256x1xf32> to vector<256x128xf32>
      %15 = arith.mulf %12, %14 : vector<256x128xf32>
      %16 = arith.truncf %15 : vector<256x128xf32> to vector<256x128xbf16>
      %c0_14 = arith.constant 0 : index
      %c0_15 = arith.constant 0 : index
      %17 = vector.load %arg5[%c0_14, %c0_15] : memref<256x128xbf16, #tpu.memory_space<vmem>>, vector<256x128xbf16>
      tpu.vector_store %arg5[%c0_14, %c0_15], %16 {strides = array<i32>} : memref<256x128xbf16, #tpu.memory_space<vmem>>, vector<256x128xbf16>,
    } else {
    }
    return
  }
  func.func @transform_0(%arg0: i32, %arg1: i32) -> (i32, i32) {
    %c0_i32 = arith.constant 0 : i32
    return %arg0, %arg1 : i32, i32
  }
  func.func @transform_1(%arg0: i32, %arg1: i32) -> (i32, i32) {
    %c0_i32 = arith.constant 0 : i32
    %c0_i32_0 = arith.constant 0 : i32
    return %arg1, %c0_i32 : i32, i32
  }
  func.func @transform_2(%arg0: i32, %arg1: i32) -> (i32, i32) {
    %c0_i32 = arith.constant 0 : i32
    %c0_i32_0 = arith.constant 0 : i32
    return %arg0, %c0_i32 : i32, i32
  }
  func.func @transform_3(%arg0: i32, %arg1: i32) -> (i32, i32) {
    %c0_i32 = arith.constant 0 : i32
    %c0_i32_0 = arith.constant 0 : i32
    return %arg0, %c0_i32 : i32, i32
  }
}

module attributes {stable_mosaic.version = 11 : i64} {
  func.func @_agg_fused_kernel(%arg0: i32, %arg1: i32, %arg2: memref<256x256xi8, #tpu.memory_space<vmem>>, %arg3: memref<256x128xbf16, #tpu.memory_space<vmem>>, %arg4: memref<256x1xf32, #tpu.memory_space<vmem>>, %arg5: memref<1x128xf32, #tpu.memory_space<vmem>>, %arg6: memref<128x128xbf16, #tpu.memory_space<vmem>>, %arg7: memref<256x128xbf16, #tpu.memory_space<vmem>>, %arg8: memref<256x128xf32, #tpu.memory_space<vmem>>) attributes {dimension_semantics = [#tpu.dimension_semantics<parallel>, #tpu.dimension_semantics<arbitrary>], iteration_bounds = array<i64: 1, 1>, scalar_prefetch = 0 : i64, scratch_operands = 1 : i64, tpu.core_type = #tpu.core_type<tc>, window_params = [{transform_indices = @transform_0, window_bounds = array<i64: 256, 256>}, {pipeline_mode = #tpu.pipeline_mode<synchronous>, transform_indices = @transform_1, window_bounds = array<i64: 256, 128>}, {transform_indices = @transform_2, window_bounds = array<i64: 256, 1>}, {pipeline_mode = #tpu.pipeline_mode<synchronous>, transform_indices = @transform_3, window_bounds = array<i64: 1, 128>}, {pipeline_mode = #tpu.pipeline_mode<synchronous>, transform_indices = @transform_4, window_bounds = array<i64: 128, 128>}, {transform_indices = @transform_5, window_bounds = array<i64: 256, 128>}]} {
    %c0_i32 = arith.constant 0 : i32
    %0 = arith.cmpi eq, %arg1, %c0_i32 : i32
    %1 = arith.extui %0 : i1 to i32
    %c0_i32_0 = arith.constant 0 : i32
    %2 = arith.cmpi ne, %1, %c0_i32_0 : i32
    scf.if %2 {
      %cst_9 = arith.constant 0.000000e+00 : f32
      %16 = vector.broadcast %cst_9 : f32 to vector<256x128xf32>
      %c0_10 = arith.constant 0 : index
      %c0_11 = arith.constant 0 : index
      %17 = vector.load %arg8[%c0_10, %c0_11] : memref<256x128xf32, #tpu.memory_space<vmem>>, vector<256x128xf32>
      tpu.vector_store %arg8[%c0_10, %c0_11], %16 {strides = array<i32>} : memref<256x128xf32, #tpu.memory_space<vmem>>, vector<256x128xf32>,
    } else {
    }
    %c0 = arith.constant 0 : index
    %c0_1 = arith.constant 0 : index
    %3 = vector.load %arg2[%c0, %c0_1] : memref<256x256xi8, #tpu.memory_space<vmem>>, vector<256x256xi8>
    %4 = arith.sitofp %3 : vector<256x256xi8> to vector<256x256xbf16>
    %c256_i32 = arith.constant 256 : i32
    %5 = arith.muli %arg1, %c256_i32 : i32
    %6 = tpu.assume_multiple %5, 256 : i32
    %7 = arith.index_cast %6 : i32 to index
    %c0_2 = arith.constant 0 : index
    %8 = vector.load %arg3[%7, %c0_2] : memref<256x128xbf16, #tpu.memory_space<vmem>>, vector<256x128xbf16>
    %c0_3 = arith.constant 0 : index
    %c0_4 = arith.constant 0 : index
    %9 = vector.load %arg8[%c0_3, %c0_4] : memref<256x128xf32, #tpu.memory_space<vmem>>, vector<256x128xf32>
    %cst = arith.constant dense<0.000000e+00> : vector<256x128xf32>
    %10 = tpu.matmul %4, %8, %cst {dimension_numbers = #tpu.dot_dimension_numbers<[1], [0], [0], [1], [0, 0, 1, 1], [], []>} : vector<256x256xbf16>, vector<256x128xbf16>, vector<256x128xf32> -> vector<256x128xf32>
    %11 = arith.addf %9, %10 : vector<256x128xf32>
    %c0_5 = arith.constant 0 : index
    %c0_6 = arith.constant 0 : index
    %12 = vector.load %arg8[%c0_5, %c0_6] : memref<256x128xf32, #tpu.memory_space<vmem>>, vector<256x128xf32>
    tpu.vector_store %arg8[%c0_5, %c0_6], %11 {strides = array<i32>} : memref<256x128xf32, #tpu.memory_space<vmem>>, vector<256x128xf32>,
    %c0_i32_7 = arith.constant 0 : i32
    %13 = arith.cmpi eq, %arg1, %c0_i32_7 : i32
    %14 = arith.extui %13 : i1 to i32
    %c0_i32_8 = arith.constant 0 : i32
    %15 = arith.cmpi ne, %14, %c0_i32_8 : i32
    scf.if %15 {
      %c0_9 = arith.constant 0 : index
      %c0_10 = arith.constant 0 : index
      %16 = vector.load %arg8[%c0_9, %c0_10] : memref<256x128xf32, #tpu.memory_space<vmem>>, vector<256x128xf32>
      %c0_11 = arith.constant 0 : index
      %c0_12 = arith.constant 0 : index
      %17 = vector.load %arg4[%c0_11, %c0_12] : memref<256x1xf32, #tpu.memory_space<vmem>>, vector<256x1xf32>
      %18 = vector.broadcast %17 : vector<256x1xf32> to vector<256x128xf32>
      %19 = arith.mulf %16, %18 : vector<256x128xf32>
      %c0_13 = arith.constant 0 : index
      %c0_14 = arith.constant 0 : index
      %20 = vector.load %arg5[%c0_13, %c0_14] : memref<1x128xf32, #tpu.memory_space<vmem>>, vector<1x128xf32>
      %21 = vector.broadcast %20 : vector<1x128xf32> to vector<256x128xf32>
      %22 = arith.addf %19, %21 : vector<256x128xf32>
      %cst_15 = arith.constant 0.000000e+00 : f32
      %23 = vector.broadcast %cst_15 : f32 to vector<256x128xf32>
      %24 = arith.maximumf %22, %23 : vector<256x128xf32>
      %25 = arith.truncf %24 : vector<256x128xf32> to vector<256x128xbf16>
      %c0_16 = arith.constant 0 : index
      %c0_17 = arith.constant 0 : index
      %26 = vector.load %arg6[%c0_16, %c0_17] : memref<128x128xbf16, #tpu.memory_space<vmem>>, vector<128x128xbf16>
      %cst_18 = arith.constant dense<0.000000e+00> : vector<256x128xf32>
      %27 = tpu.matmul %25, %26, %cst_18 {dimension_numbers = #tpu.dot_dimension_numbers<[1], [0], [0], [1], [0, 0, 1, 1], [], []>} : vector<256x128xbf16>, vector<128x128xbf16>, vector<256x128xf32> -> vector<256x128xf32>
      %c0_19 = arith.constant 0 : index
      %c0_20 = arith.constant 0 : index
      %28 = vector.load %arg4[%c0_19, %c0_20] : memref<256x1xf32, #tpu.memory_space<vmem>>, vector<256x1xf32>
      %29 = vector.broadcast %28 : vector<256x1xf32> to vector<256x128xf32>
      %30 = arith.mulf %27, %29 : vector<256x128xf32>
      %31 = arith.truncf %30 : vector<256x128xf32> to vector<256x128xbf16>
      %c0_21 = arith.constant 0 : index
      %c0_22 = arith.constant 0 : index
      %32 = vector.load %arg7[%c0_21, %c0_22] : memref<256x128xbf16, #tpu.memory_space<vmem>>, vector<256x128xbf16>
      tpu.vector_store %arg7[%c0_21, %c0_22], %31 {strides = array<i32>} : memref<256x128xbf16, #tpu.memory_space<vmem>>, vector<256x128xbf16>,
    } else {
    }
    return
  }
  func.func @transform_0(%arg0: i32, %arg1: i32) -> (i32, i32) {
    %c0_i32 = arith.constant 0 : i32
    return %arg0, %arg1 : i32, i32
  }
  func.func @transform_1(%arg0: i32, %arg1: i32) -> (i32, i32) {
    %c0_i32 = arith.constant 0 : i32
    %c0_i32_0 = arith.constant 0 : i32
    %c0_i32_1 = arith.constant 0 : i32
    return %c0_i32, %c0_i32_0 : i32, i32
  }
  func.func @transform_2(%arg0: i32, %arg1: i32) -> (i32, i32) {
    %c0_i32 = arith.constant 0 : i32
    %c0_i32_0 = arith.constant 0 : i32
    return %arg0, %c0_i32 : i32, i32
  }
  func.func @transform_3(%arg0: i32, %arg1: i32) -> (i32, i32) {
    %c0_i32 = arith.constant 0 : i32
    %c0_i32_0 = arith.constant 0 : i32
    %c0_i32_1 = arith.constant 0 : i32
    return %c0_i32, %c0_i32_0 : i32, i32
  }
  func.func @transform_4(%arg0: i32, %arg1: i32) -> (i32, i32) {
    %c0_i32 = arith.constant 0 : i32
    %c0_i32_0 = arith.constant 0 : i32
    %c0_i32_1 = arith.constant 0 : i32
    return %c0_i32, %c0_i32_0 : i32, i32
  }
  func.func @transform_5(%arg0: i32, %arg1: i32) -> (i32, i32) {
    %c0_i32 = arith.constant 0 : i32
    %c0_i32_0 = arith.constant 0 : i32
    return %arg0, %c0_i32 : i32, i32
  }
}

module attributes {stable_mosaic.version = 11 : i64} {
  func.func @_agg_kernel(%arg0: i32, %arg1: i32, %arg2: memref<256x256xi8, #tpu.memory_space<vmem>>, %arg3: memref<256x128xbf16, #tpu.memory_space<vmem>>, %arg4: memref<256x1xf32, #tpu.memory_space<vmem>>, %arg5: memref<1x128xf32, #tpu.memory_space<vmem>>, %arg6: memref<256x128xf32, #tpu.memory_space<vmem>>, %arg7: memref<256x128xf32, #tpu.memory_space<vmem>>) attributes {dimension_semantics = [#tpu.dimension_semantics<parallel>, #tpu.dimension_semantics<arbitrary>], iteration_bounds = array<i64: 1, 1>, scalar_prefetch = 0 : i64, scratch_operands = 1 : i64, tpu.core_type = #tpu.core_type<tc>, window_params = [{transform_indices = @transform_0, window_bounds = array<i64: 256, 256>}, {pipeline_mode = #tpu.pipeline_mode<synchronous>, transform_indices = @transform_1, window_bounds = array<i64: 256, 128>}, {transform_indices = @transform_2, window_bounds = array<i64: 256, 1>}, {pipeline_mode = #tpu.pipeline_mode<synchronous>, transform_indices = @transform_3, window_bounds = array<i64: 1, 128>}, {transform_indices = @transform_4, window_bounds = array<i64: 256, 128>}]} {
    %c0_i32 = arith.constant 0 : i32
    %0 = arith.cmpi eq, %arg1, %c0_i32 : i32
    %1 = arith.extui %0 : i1 to i32
    %c0_i32_0 = arith.constant 0 : i32
    %2 = arith.cmpi ne, %1, %c0_i32_0 : i32
    scf.if %2 {
      %cst_9 = arith.constant 0.000000e+00 : f32
      %16 = vector.broadcast %cst_9 : f32 to vector<256x128xf32>
      %c0_10 = arith.constant 0 : index
      %c0_11 = arith.constant 0 : index
      %17 = vector.load %arg7[%c0_10, %c0_11] : memref<256x128xf32, #tpu.memory_space<vmem>>, vector<256x128xf32>
      tpu.vector_store %arg7[%c0_10, %c0_11], %16 {strides = array<i32>} : memref<256x128xf32, #tpu.memory_space<vmem>>, vector<256x128xf32>,
    } else {
    }
    %c0 = arith.constant 0 : index
    %c0_1 = arith.constant 0 : index
    %3 = vector.load %arg2[%c0, %c0_1] : memref<256x256xi8, #tpu.memory_space<vmem>>, vector<256x256xi8>
    %4 = arith.sitofp %3 : vector<256x256xi8> to vector<256x256xbf16>
    %c256_i32 = arith.constant 256 : i32
    %5 = arith.muli %arg1, %c256_i32 : i32
    %6 = tpu.assume_multiple %5, 256 : i32
    %7 = arith.index_cast %6 : i32 to index
    %c0_2 = arith.constant 0 : index
    %8 = vector.load %arg3[%7, %c0_2] : memref<256x128xbf16, #tpu.memory_space<vmem>>, vector<256x128xbf16>
    %c0_3 = arith.constant 0 : index
    %c0_4 = arith.constant 0 : index
    %9 = vector.load %arg7[%c0_3, %c0_4] : memref<256x128xf32, #tpu.memory_space<vmem>>, vector<256x128xf32>
    %cst = arith.constant dense<0.000000e+00> : vector<256x128xf32>
    %10 = tpu.matmul %4, %8, %cst {dimension_numbers = #tpu.dot_dimension_numbers<[1], [0], [0], [1], [0, 0, 1, 1], [], []>} : vector<256x256xbf16>, vector<256x128xbf16>, vector<256x128xf32> -> vector<256x128xf32>
    %11 = arith.addf %9, %10 : vector<256x128xf32>
    %c0_5 = arith.constant 0 : index
    %c0_6 = arith.constant 0 : index
    %12 = vector.load %arg7[%c0_5, %c0_6] : memref<256x128xf32, #tpu.memory_space<vmem>>, vector<256x128xf32>
    tpu.vector_store %arg7[%c0_5, %c0_6], %11 {strides = array<i32>} : memref<256x128xf32, #tpu.memory_space<vmem>>, vector<256x128xf32>,
    %c0_i32_7 = arith.constant 0 : i32
    %13 = arith.cmpi eq, %arg1, %c0_i32_7 : i32
    %14 = arith.extui %13 : i1 to i32
    %c0_i32_8 = arith.constant 0 : i32
    %15 = arith.cmpi ne, %14, %c0_i32_8 : i32
    scf.if %15 {
      %c0_9 = arith.constant 0 : index
      %c0_10 = arith.constant 0 : index
      %16 = vector.load %arg7[%c0_9, %c0_10] : memref<256x128xf32, #tpu.memory_space<vmem>>, vector<256x128xf32>
      %c0_11 = arith.constant 0 : index
      %c0_12 = arith.constant 0 : index
      %17 = vector.load %arg4[%c0_11, %c0_12] : memref<256x1xf32, #tpu.memory_space<vmem>>, vector<256x1xf32>
      %18 = vector.broadcast %17 : vector<256x1xf32> to vector<256x128xf32>
      %19 = arith.mulf %16, %18 : vector<256x128xf32>
      %c0_13 = arith.constant 0 : index
      %c0_14 = arith.constant 0 : index
      %20 = vector.load %arg5[%c0_13, %c0_14] : memref<1x128xf32, #tpu.memory_space<vmem>>, vector<1x128xf32>
      %21 = vector.broadcast %20 : vector<1x128xf32> to vector<256x128xf32>
      %22 = arith.addf %19, %21 : vector<256x128xf32>
      %c0_15 = arith.constant 0 : index
      %c0_16 = arith.constant 0 : index
      %23 = vector.load %arg6[%c0_15, %c0_16] : memref<256x128xf32, #tpu.memory_space<vmem>>, vector<256x128xf32>
      tpu.vector_store %arg6[%c0_15, %c0_16], %22 {strides = array<i32>} : memref<256x128xf32, #tpu.memory_space<vmem>>, vector<256x128xf32>,
    } else {
    }
    return
  }
  func.func @transform_0(%arg0: i32, %arg1: i32) -> (i32, i32) {
    %c0_i32 = arith.constant 0 : i32
    return %arg0, %arg1 : i32, i32
  }
  func.func @transform_1(%arg0: i32, %arg1: i32) -> (i32, i32) {
    %c0_i32 = arith.constant 0 : i32
    %c0_i32_0 = arith.constant 0 : i32
    %c0_i32_1 = arith.constant 0 : i32
    return %c0_i32, %c0_i32_0 : i32, i32
  }
  func.func @transform_2(%arg0: i32, %arg1: i32) -> (i32, i32) {
    %c0_i32 = arith.constant 0 : i32
    %c0_i32_0 = arith.constant 0 : i32
    return %arg0, %c0_i32 : i32, i32
  }
  func.func @transform_3(%arg0: i32, %arg1: i32) -> (i32, i32) {
    %c0_i32 = arith.constant 0 : i32
    %c0_i32_0 = arith.constant 0 : i32
    %c0_i32_1 = arith.constant 0 : i32
    return %c0_i32, %c0_i32_0 : i32, i32
  }
  func.func @transform_4(%arg0: i32, %arg1: i32) -> (i32, i32) {
    %c0_i32 = arith.constant 0 : i32
    %c0_i32_0 = arith.constant 0 : i32
    return %arg0, %c0_i32 : i32, i32
  }
}

</mosaic_0001>

<llo_original>
// kernel: gcn_forward.5
$region0: #{gcn_forward.5}
  #allocation0 [shape = 'u32[]', space=smem, size = 0x4, offset = 0x4, fixed_abs, tag = 'smem constant byte address 0x4 - core index']
  #allocation1 [shape = 'u32[72,128]{1,0:T(1,128)}', space=vmem, size = 0x9000, scoped, tag = 'internal scratch']
  #allocation2 [shape = 'f32[256,128]{1,0:T(8,128)}', space=vmem, size = 0x20000, scoped, tag = 'scratch operand']
  %s0 = inlined_call_operand.vmem [shape: s8[256,256], index: 0, kind: input, shape index: {}]
  %s1 = inlined_call_operand.vmem [shape: bf16[256,128], index: 1, kind: input, shape index: {}]
  %s2 = inlined_call_operand.vmem [shape: f32[256,1], index: 2, kind: input, shape index: {}]
  %s3 = inlined_call_operand.vmem [shape: f32[1,128], index: 3, kind: input, shape index: {}]
  %s4 = inlined_call_operand.vmem [shape: f32[256,128], index: 4, kind: output, shape index: {}]
  %s5 = sld [smem:[#allocation0]]
  $region34: #{gcn_forward.5} parent=0
    _
  %s7 = ssub.s32 1, %s5
  %s8 = scalar_select 0, %s7, %s5
  // Predicated region
  $region2: #{gcn_forward.5} parent=0 // pred_check
    _
  $region3: #{gcn_forward.5} parent=0 // pred_check_branch
    %10 = sbr.rel (0) target = $region5
  $region4: #{gcn_forward.5} parent=0 // pred_region
    _
  $region5: #{gcn_forward.5} parent=0 // pred_fallthru
    _
  // Predicated region
  $region6: #{gcn_forward.5} parent=0 // pred_check
    _
  $region7: #{gcn_forward.5} parent=0 // pred_check_branch
    %12 = sbr.rel (0) target = $region9
  $region8: #{gcn_forward.5} parent=0 // pred_region
    _
  $region9: #{gcn_forward.5} parent=0 // pred_fallthru
    _
  // Predicated region
  $region10: #{gcn_forward.5} parent=0 // pred_check
    _
  $region11: #{gcn_forward.5} parent=0 // pred_check_branch
    %14 = sbr.rel (0) target = $region13
  $region12: #{gcn_forward.5} parent=0 // pred_region
    _
  $region13: #{gcn_forward.5} parent=0 // pred_fallthru
    _
  // Predicated region
  $region14: #{gcn_forward.5} parent=0 // pred_check
    _
  $region15: #{gcn_forward.5} parent=0 // pred_check_branch
    %16 = sbr.rel (0) target = $region17
  $region16: #{gcn_forward.5} parent=0 // pred_region
    _
  $region17: #{gcn_forward.5} parent=0 // pred_fallthru
    _
  %p17 = scmp.eq.s32.totalorder 0, 0
  // Predicated region
  $region18: #{gcn_forward.5} parent=0 // pred_check
    %p18 = pneg %p17
  $region19: #{gcn_forward.5} parent=0 // pred_check_branch
    %20 = sbr.rel (%p18) target = $region21
  $region20: #{gcn_forward.5} parent=0 // pred_region
    %21 = vst [vmem:[#allocation2] sm:$0xff] 0.0
    %22 = vst [vmem:[#allocation2 + $0x8] sm:$0xff] 0.0
    %23 = vst [vmem:[#allocation2 + $0x10] sm:$0xff] 0.0
    %24 = vst [vmem:[#allocation2 + $0x18] sm:$0xff] 0.0
    %25 = vst [vmem:[#allocation2 + $0x20] sm:$0xff] 0.0
    %26 = vst [vmem:[#allocation2 + $0x28] sm:$0xff] 0.0
    %27 = vst [vmem:[#allocation2 + $0x30] sm:$0xff] 0.0
    %28 = vst [vmem:[#allocation2 + $0x38] sm:$0xff] 0.0
    %29 = vst [vmem:[#allocation2 + $0x40] sm:$0xff] 0.0
    %30 = vst [vmem:[#allocation2 + $0x48] sm:$0xff] 0.0
    %31 = vst [vmem:[#allocation2 + $0x50] sm:$0xff] 0.0
    %32 = vst [vmem:[#allocation2 + $0x58] sm:$0xff] 0.0
    %33 = vst [vmem:[#allocation2 + $0x60] sm:$0xff] 0.0
    %34 = vst [vmem:[#allocation2 + $0x68] sm:$0xff] 0.0
    %35 = vst [vmem:[#allocation2 + $0x70] sm:$0xff] 0.0
    %36 = vst [vmem:[#allocation2 + $0x78] sm:$0xff] 0.0
    %37 = vst [vmem:[#allocation2 + $0x80] sm:$0xff] 0.0
    %38 = vst [vmem:[#allocation2 + $0x88] sm:$0xff] 0.0
    %39 = vst [vmem:[#allocation2 + $0x90] sm:$0xff] 0.0
    %40 = vst [vmem:[#allocation2 + $0x98] sm:$0xff] 0.0
    %41 = vst [vmem:[#allocation2 + $0xa0] sm:$0xff] 0.0
    %42 = vst [vmem:[#allocation2 + $0xa8] sm:$0xff] 0.0
    %43 = vst [vmem:[#allocation2 + $0xb0] sm:$0xff] 0.0
    %44 = vst [vmem:[#allocation2 + $0xb8] sm:$0xff] 0.0
    %45 = vst [vmem:[#allocation2 + $0xc0] sm:$0xff] 0.0
    %46 = vst [vmem:[#allocation2 + $0xc8] sm:$0xff] 0.0
    %47 = vst [vmem:[#allocation2 + $0xd0] sm:$0xff] 0.0
    %48 = vst [vmem:[#allocation2 + $0xd8] sm:$0xff] 0.0
    %49 = vst [vmem:[#allocation2 + $0xe0] sm:$0xff] 0.0
    %50 = vst [vmem:[#allocation2 + $0xe8] sm:$0xff] 0.0
    %51 = vst [vmem:[#allocation2 + $0xf0] sm:$0xff] 0.0
    %52 = vst [vmem:[#allocation2 + $0xf8] sm:$0xff] 0.0
  $region21: #{gcn_forward.5} parent=0 // pred_fallthru
    _
  %v53 = vld [vmem:[%s0] sm:$0xff]
  %v54 = vld [vmem:[%s0 + $0x8] sm:$0xff]
  %v55 = vld [vmem:[%s0 + $0x10] sm:$0xff]
  %v56 = vld [vmem:[%s0 + $0x18] sm:$0xff]
  %v57 = vld [vmem:[%s0 + $0x20] sm:$0xff]
  %v58 = vld [vmem:[%s0 + $0x28] sm:$0xff]
  %v59 = vld [vmem:[%s0 + $0x30] sm:$0xff]
  %v60 = vld [vmem:[%s0 + $0x38] sm:$0xff]
  %v61 = vld [vmem:[%s0 + $0x40] sm:$0xff]
  %v62 = vld [vmem:[%s0 + $0x48] sm:$0xff]
  %v63 = vld [vmem:[%s0 + $0x50] sm:$0xff]
  %v64 = vld [vmem:[%s0 + $0x58] sm:$0xff]
  %v65 = vld [vmem:[%s0 + $0x60] sm:$0xff]
  %v66 = vld [vmem:[%s0 + $0x68] sm:$0xff]
  %v67 = vld [vmem:[%s0 + $0x70] sm:$0xff]
  %v68 = vld [vmem:[%s0 + $0x78] sm:$0xff]
  %v69 = vunpack.c.0.s8 %v53
  %v70 = vunpack.c.0.s8 %v54
  %v71 = vunpack.c.1.s8 %v53
  %v72 = vunpack.c.1.s8 %v54
  %v73 = vunpack.c.2.s8 %v53
  %v74 = vunpack.c.2.s8 %v54
  %v75 = vunpack.c.3.s8 %v53
  %v76 = vunpack.c.3.s8 %v54
  %v77 = vunpack.c.0.s8 %v55
  %v78 = vunpack.c.0.s8 %v56
  %v79 = vunpack.c.1.s8 %v55
  %v80 = vunpack.c.1.s8 %v56
  %v81 = vunpack.c.2.s8 %v55
  %v82 = vunpack.c.2.s8 %v56
  %v83 = vunpack.c.3.s8 %v55
  %v84 = vunpack.c.3.s8 %v56
  %v85 = vunpack.c.0.s8 %v57
  %v86 = vunpack.c.0.s8 %v58
  %v87 = vunpack.c.1.s8 %v57
  %v88 = vunpack.c.1.s8 %v58
  %v89 = vunpack.c.2.s8 %v57
  %v90 = vunpack.c.2.s8 %v58
  %v91 = vunpack.c.3.s8 %v57
  %v92 = vunpack.c.3.s8 %v58
  %v93 = vunpack.c.0.s8 %v59
  %v94 = vunpack.c.0.s8 %v60
  %v95 = vunpack.c.1.s8 %v59
  %v96 = vunpack.c.1.s8 %v60
  %v97 = vunpack.c.2.s8 %v59
  %v98 = vunpack.c.2.s8 %v60
  %v99 = vunpack.c.3.s8 %v59
  %v100 = vunpack.c.3.s8 %v60
  %v101 = vunpack.c.0.s8 %v61
  %v102 = vunpack.c.0.s8 %v62
  %v103 = vunpack.c.1.s8 %v61
  %v104 = vunpack.c.1.s8 %v62
  %v105 = vunpack.c.2.s8 %v61
  %v106 = vunpack.c.2.s8 %v62
  %v107 = vunpack.c.3.s8 %v61
  %v108 = vunpack.c.3.s8 %v62
  %v109 = vunpack.c.0.s8 %v63
  %v110 = vunpack.c.0.s8 %v64
  %v111 = vunpack.c.1.s8 %v63
  %v112 = vunpack.c.1.s8 %v64
  %v113 = vunpack.c.2.s8 %v63
  %v114 = vunpack.c.2.s8 %v64
  %v115 = vunpack.c.3.s8 %v63
  %v116 = vunpack.c.3.s8 %v64
  %v117 = vunpack.c.0.s8 %v65
  %v118 = vunpack.c.0.s8 %v66
  %v119 = vunpack.c.1.s8 %v65
  %v120 = vunpack.c.1.s8 %v66
  %v121 = vunpack.c.2.s8 %v65
  %v122 = vunpack.c.2.s8 %v66
  %v123 = vunpack.c.3.s8 %v65
  %v124 = vunpack.c.3.s8 %v66
  %v125 = vunpack.c.0.s8 %v67
  %v126 = vunpack.c.0.s8 %v68
  %v127 = vunpack.c.1.s8 %v67
  %v128 = vunpack.c.1.s8 %v68
  %v129 = vunpack.c.2.s8 %v67
  %v130 = vunpack.c.2.s8 %v68
  %v131 = vunpack.c.3.s8 %v67
  %v132 = vunpack.c.3.s8 %v68
  %v133 = vcvt.s32.f32 %v69
  %v134 = vcvt.s32.f32 %v70
  %v135 = vcvt.s32.f32 %v71
  %v136 = vcvt.s32.f32 %v72
  %v137 = vcvt.s32.f32 %v73
  %v138 = vcvt.s32.f32 %v74
  %v139 = vcvt.s32.f32 %v75
  %v140 = vcvt.s32.f32 %v76
  %v141 = vcvt.s32.f32 %v77
  %v142 = vcvt.s32.f32 %v78
  %v143 = vcvt.s32.f32 %v79
  %v144 = vcvt.s32.f32 %v80
  %v145 = vcvt.s32.f32 %v81
  %v146 = vcvt.s32.f32 %v82
  %v147 = vcvt.s32.f32 %v83
  %v148 = vcvt.s32.f32 %v84
  %v149 = vcvt.s32.f32 %v85
  %v150 = vcvt.s32.f32 %v86
  %v151 = vcvt.s32.f32 %v87
  %v152 = vcvt.s32.f32 %v88
  %v153 = vcvt.s32.f32 %v89
  %v154 = vcvt.s32.f32 %v90
  %v155 = vcvt.s32.f32 %v91
  %v156 = vcvt.s32.f32 %v92
  %v157 = vcvt.s32.f32 %v93
  %v158 = vcvt.s32.f32 %v94
  %v159 = vcvt.s32.f32 %v95
  %v160 = vcvt.s32.f32 %v96
  %v161 = vcvt.s32.f32 %v97
  %v162 = vcvt.s32.f32 %v98
  %v163 = vcvt.s32.f32 %v99
  %v164 = vcvt.s32.f32 %v100
  %v165 = vcvt.s32.f32 %v101
  %v166 = vcvt.s32.f32 %v102
  %v167 = vcvt.s32.f32 %v103
  %v168 = vcvt.s32.f32 %v104
  %v169 = vcvt.s32.f32 %v105
  %v170 = vcvt.s32.f32 %v106
  %v171 = vcvt.s32.f32 %v107
  %v172 = vcvt.s32.f32 %v108
  %v173 = vcvt.s32.f32 %v109
  %v174 = vcvt.s32.f32 %v110
  %v175 = vcvt.s32.f32 %v111
  %v176 = vcvt.s32.f32 %v112
  %v177 = vcvt.s32.f32 %v113
  %v178 = vcvt.s32.f32 %v114
  %v179 = vcvt.s32.f32 %v115
  %v180 = vcvt.s32.f32 %v116
  %v181 = vcvt.s32.f32 %v117
  %v182 = vcvt.s32.f32 %v118
  %v183 = vcvt.s32.f32 %v119
  %v184 = vcvt.s32.f32 %v120
  %v185 = vcvt.s32.f32 %v121
  %v186 = vcvt.s32.f32 %v122
  %v187 = vcvt.s32.f32 %v123
  %v188 = vcvt.s32.f32 %v124
  %v189 = vcvt.s32.f32 %v125
  %v190 = vcvt.s32.f32 %v126
  %v191 = vcvt.s32.f32 %v127
  %v192 = vcvt.s32.f32 %v128
  %v193 = vcvt.s32.f32 %v129
  %v194 = vcvt.s32.f32 %v130
  %v195 = vcvt.s32.f32 %v131
  %v196 = vcvt.s32.f32 %v132
  %v197 = vpack.c.bf16 %v135, %v133
  %v198 = vpack.c.bf16 %v136, %v134
  %v199 = vpack.c.bf16 %v139, %v137
  %v200 = vpack.c.bf16 %v140, %v138
  %v201 = vpack.c.bf16 %v143, %v141
  %v202 = vpack.c.bf16 %v144, %v142
  %v203 = vpack.c.bf16 %v147, %v145
  %v204 = vpack.c.bf16 %v148, %v146
  %v205 = vpack.c.bf16 %v151, %v149
  %v206 = vpack.c.bf16 %v152, %v150
  %v207 = vpack.c.bf16 %v155, %v153
  %v208 = vpack.c.bf16 %v156, %v154
  %v209 = vpack.c.bf16 %v159, %v157
  %v210 = vpack.c.bf16 %v160, %v158
  %v211 = vpack.c.bf16 %v163, %v161
  %v212 = vpack.c.bf16 %v164, %v162
  %v213 = vpack.c.bf16 %v167, %v165
  %v214 = vpack.c.bf16 %v168, %v166
  %v215 = vpack.c.bf16 %v171, %v169
  %v216 = vpack.c.bf16 %v172, %v170
  %v217 = vpack.c.bf16 %v175, %v173
  %v218 = vpack.c.bf16 %v176, %v174
  %v219 = vpack.c.bf16 %v179, %v177
  %v220 = vpack.c.bf16 %v180, %v178
  %v221 = vpack.c.bf16 %v183, %v181
  %v222 = vpack.c.bf16 %v184, %v182
  %v223 = vpack.c.bf16 %v187, %v185
  %v224 = vpack.c.bf16 %v188, %v186
  %v225 = vpack.c.bf16 %v191, %v189
  %v226 = vpack.c.bf16 %v192, %v190
  %v227 = vpack.c.bf16 %v195, %v193
  %v228 = vpack.c.bf16 %v196, %v194
  %s229 = smul.u32 0, 256
  %s230 = sshra.s32 %s229, 3
  %s231 = sand.u32 %s229, 7
  %s232 = smul.addr %s230, 4
  %s233 = scalar_lea.vmem %s1, %s232
  %v234 = vld [vmem:[%s233] sm:$0xf]
  %v235 = vld [vmem:[%s233 + $0x4] sm:$0xf]
  %v236 = vld [vmem:[%s233 + $0x8] sm:$0xf]
  %v237 = vld [vmem:[%s233 + $0xc] sm:$0xf]
  %v238 = vld [vmem:[%s233 + $0x10] sm:$0xf]
  %v239 = vld [vmem:[%s233 + $0x14] sm:$0xf]
  %v240 = vld [vmem:[%s233 + $0x18] sm:$0xf]
  %v241 = vld [vmem:[%s233 + $0x1c] sm:$0xf]
  %v242 = vld [vmem:[%s233 + $0x20] sm:$0xf]
  %v243 = vld [vmem:[%s233 + $0x24] sm:$0xf]
  %v244 = vld [vmem:[%s233 + $0x28] sm:$0xf]
  %v245 = vld [vmem:[%s233 + $0x2c] sm:$0xf]
  %v246 = vld [vmem:[%s233 + $0x30] sm:$0xf]
  %v247 = vld [vmem:[%s233 + $0x34] sm:$0xf]
  %v248 = vld [vmem:[%s233 + $0x38] sm:$0xf]
  %v249 = vld [vmem:[%s233 + $0x3c] sm:$0xf]
  %v250 = vld [vmem:[%s233 + $0x40] sm:$0xf]
  %v251 = vld [vmem:[%s233 + $0x44] sm:$0xf]
  %v252 = vld [vmem:[%s233 + $0x48] sm:$0xf]
  %v253 = vld [vmem:[%s233 + $0x4c] sm:$0xf]
  %v254 = vld [vmem:[%s233 + $0x50] sm:$0xf]
  %v255 = vld [vmem:[%s233 + $0x54] sm:$0xf]
  %v256 = vld [vmem:[%s233 + $0x58] sm:$0xf]
  %v257 = vld [vmem:[%s233 + $0x5c] sm:$0xf]
  %v258 = vld [vmem:[%s233 + $0x60] sm:$0xf]
  %v259 = vld [vmem:[%s233 + $0x64] sm:$0xf]
  %v260 = vld [vmem:[%s233 + $0x68] sm:$0xf]
  %v261 = vld [vmem:[%s233 + $0x6c] sm:$0xf]
  %v262 = vld [vmem:[%s233 + $0x70] sm:$0xf]
  %v263 = vld [vmem:[%s233 + $0x74] sm:$0xf]
  %v264 = vld [vmem:[%s233 + $0x78] sm:$0xf]
  %v265 = vld [vmem:[%s233 + $0x7c] sm:$0xf]
  %v266 = vld [vmem:[#allocation2] sm:$0xff]
  %v267 = vld [vmem:[#allocation2 + $0x8] sm:$0xff]
  %v268 = vld [vmem:[#allocation2 + $0x10] sm:$0xff]
  %v269 = vld [vmem:[#allocation2 + $0x18] sm:$0xff]
  %v270 = vld [vmem:[#allocation2 + $0x20] sm:$0xff]
  %v271 = vld [vmem:[#allocation2 + $0x28] sm:$0xff]
  %v272 = vld [vmem:[#allocation2 + $0x30] sm:$0xff]
  %v273 = vld [vmem:[#allocation2 + $0x38] sm:$0xff]
  %v274 = vld [vmem:[#allocation2 + $0x40] sm:$0xff]
  %v275 = vld [vmem:[#allocation2 + $0x48] sm:$0xff]
  %v276 = vld [vmem:[#allocation2 + $0x50] sm:$0xff]
  %v277 = vld [vmem:[#allocation2 + $0x58] sm:$0xff]
  %v278 = vld [vmem:[#allocation2 + $0x60] sm:$0xff]
  %v279 = vld [vmem:[#allocation2 + $0x68] sm:$0xff]
  %v280 = vld [vmem:[#allocation2 + $0x70] sm:$0xff]
  %v281 = vld [vmem:[#allocation2 + $0x78] sm:$0xff]
  %v282 = vld [vmem:[#allocation2 + $0x80] sm:$0xff]
  %v283 = vld [vmem:[#allocation2 + $0x88] sm:$0xff]
  %v284 = vld [vmem:[#allocation2 + $0x90] sm:$0xff]
  %v285 = vld [vmem:[#allocation2 + $0x98] sm:$0xff]
  %v286 = vld [vmem:[#allocation2 + $0xa0] sm:$0xff]
  %v287 = vld [vmem:[#allocation2 + $0xa8] sm:$0xff]
  %v288 = vld [vmem:[#allocation2 + $0xb0] sm:$0xff]
  %v289 = vld [vmem:[#allocation2 + $0xb8] sm:$0xff]
  %v290 = vld [vmem:[#allocation2 + $0xc0] sm:$0xff]
  %v291 = vld [vmem:[#allocation2 + $0xc8] sm:$0xff]
  %v292 = vld [vmem:[#allocation2 + $0xd0] sm:$0xff]
  %v293 = vld [vmem:[#allocation2 + $0xd8] sm:$0xff]
  %v294 = vld [vmem:[#allocation2 + $0xe0] sm:$0xff]
  %v295 = vld [vmem:[#allocation2 + $0xe8] sm:$0xff]
  %v296 = vld [vmem:[#allocation2 + $0xf0] sm:$0xff]
  %v297 = vld [vmem:[#allocation2 + $0xf8] sm:$0xff]
  %v330 = vunpack.c.l.b16 %v234
  %v331 = vunpack.c.l.b16 %v235
  %v332 = vunpack.c.l.b16 %v236
  %v333 = vunpack.c.l.b16 %v237
  %v334 = vunpack.c.l.b16 %v238
  %v335 = vunpack.c.l.b16 %v239
  %v336 = vunpack.c.l.b16 %v240
  %v337 = vunpack.c.l.b16 %v241
  %v338 = vunpack.c.l.b16 %v242
  %v339 = vunpack.c.l.b16 %v243
  %v340 = vunpack.c.l.b16 %v244
  %v341 = vunpack.c.l.b16 %v245
  %v342 = vunpack.c.l.b16 %v246
  %v343 = vunpack.c.l.b16 %v247
  %v344 = vunpack.c.l.b16 %v248
  %v345 = vunpack.c.l.b16 %v249
  %v346 = vunpack.c.l.b16 %v250
  %v347 = vunpack.c.l.b16 %v251
  %v348 = vunpack.c.l.b16 %v252
  %v349 = vunpack.c.l.b16 %v253
  %v350 = vunpack.c.l.b16 %v254
  %v351 = vunpack.c.l.b16 %v255
  %v352 = vunpack.c.l.b16 %v256
  %v353 = vunpack.c.l.b16 %v257
  %v354 = vunpack.c.l.b16 %v258
  %v355 = vunpack.c.l.b16 %v259
  %v356 = vunpack.c.l.b16 %v260
  %v357 = vunpack.c.l.b16 %v261
  %v358 = vunpack.c.l.b16 %v262
  %v359 = vunpack.c.l.b16 %v263
  %v360 = vunpack.c.l.b16 %v264
  %v361 = vunpack.c.l.b16 %v265
  %v362 = vpack.c.b16 %v331, %v330
  %v363 = vpack.c.b16 %v333, %v332
  %v364 = vpack.c.b16 %v335, %v334
  %v365 = vpack.c.b16 %v337, %v336
  %v366 = vpack.c.b16 %v339, %v338
  %v367 = vpack.c.b16 %v341, %v340
  %v368 = vpack.c.b16 %v343, %v342
  %v369 = vpack.c.b16 %v345, %v344
  %v370 = vpack.c.b16 %v347, %v346
  %v371 = vpack.c.b16 %v349, %v348
  %v372 = vpack.c.b16 %v351, %v350
  %v373 = vpack.c.b16 %v353, %v352
  %v374 = vpack.c.b16 %v355, %v354
  %v375 = vpack.c.b16 %v357, %v356
  %v376 = vpack.c.b16 %v359, %v358
  %v377 = vpack.c.b16 %v361, %v360
  %394 = vmatpush.bf16.msra.mxu0 %v369
  %395 = vmatpush.bf16.msra.mxu0 %v368
  %396 = vmatpush.bf16.msra.mxu0 %v367
  %397 = vmatpush.bf16.msra.mxu0 %v366
  %398 = vmatpush.bf16.msra.mxu0 %v365
  %399 = vmatpush.bf16.msra.mxu0 %v364
  %400 = vmatpush.bf16.msra.mxu0 %v363
  %401 = vmatpush.bf16.msra.mxu0 %v362
  %402 = vmatmul.bf16.gmra.mxu0 %v197
  %v403 = vpop.f32.mrf.mxu0
  %v404 = vadd.f32 0.0, %v403
  %v405 = vpop.f32.mrf.mxu0
  %v406 = vadd.f32 0.0, %v405
  %407 = vmatmul.bf16.gmra.mxu0 %v199
  %v408 = vpop.f32.mrf.mxu0
  %v409 = vadd.f32 0.0, %v408
  %v410 = vpop.f32.mrf.mxu0
  %v411 = vadd.f32 0.0, %v410
  %412 = vmatmul.bf16.gmra.mxu0 %v201
  %v413 = vpop.f32.mrf.mxu0
  %v414 = vadd.f32 0.0, %v413
  %v415 = vpop.f32.mrf.mxu0
  %v416 = vadd.f32 0.0, %v415
  %417 = vmatmul.bf16.gmra.mxu0 %v203
  %v418 = vpop.f32.mrf.mxu0
  %v419 = vadd.f32 0.0, %v418
  %v420 = vpop.f32.mrf.mxu0
  %v421 = vadd.f32 0.0, %v420
  %422 = vmatmul.bf16.gmra.mxu0 %v205
  %v423 = vpop.f32.mrf.mxu0
  %v424 = vadd.f32 0.0, %v423
  %v425 = vpop.f32.mrf.mxu0
  %v426 = vadd.f32 0.0, %v425
  %427 = vmatmul.bf16.gmra.mxu0 %v207
  %v428 = vpop.f32.mrf.mxu0
  %v429 = vadd.f32 0.0, %v428
  %v430 = vpop.f32.mrf.mxu0
  %v431 = vadd.f32 0.0, %v430
  %432 = vmatmul.bf16.gmra.mxu0 %v209
  %v433 = vpop.f32.mrf.mxu0
  %v434 = vadd.f32 0.0, %v433
  %v435 = vpop.f32.mrf.mxu0
  %v436 = vadd.f32 0.0, %v435
  %437 = vmatmul.bf16.gmra.mxu0 %v211
  %v438 = vpop.f32.mrf.mxu0
  %v439 = vadd.f32 0.0, %v438
  %v440 = vpop.f32.mrf.mxu0
  %v441 = vadd.f32 0.0, %v440
  %442 = vmatmul.bf16.gmra.mxu0 %v213
  %v443 = vpop.f32.mrf.mxu0
  %v444 = vadd.f32 0.0, %v443
  %v445 = vpop.f32.mrf.mxu0
  %v446 = vadd.f32 0.0, %v445
  %447 = vmatmul.bf16.gmra.mxu0 %v215
  %v448 = vpop.f32.mrf.mxu0
  %v449 = vadd.f32 0.0, %v448
  %v450 = vpop.f32.mrf.mxu0
  %v451 = vadd.f32 0.0, %v450
  %452 = vmatmul.bf16.gmra.mxu0 %v217
  %v453 = vpop.f32.mrf.mxu0
  %v454 = vadd.f32 0.0, %v453
  %v455 = vpop.f32.mrf.mxu0
  %v456 = vadd.f32 0.0, %v455
  %457 = vmatmul.bf16.gmra.mxu0 %v219
  %v458 = vpop.f32.mrf.mxu0
  %v459 = vadd.f32 0.0, %v458
  %v460 = vpop.f32.mrf.mxu0
  %v461 = vadd.f32 0.0, %v460
  %462 = vmatmul.bf16.gmra.mxu0 %v221
  %v463 = vpop.f32.mrf.mxu0
  %v464 = vadd.f32 0.0, %v463
  %v465 = vpop.f32.mrf.mxu0
  %v466 = vadd.f32 0.0, %v465
  %467 = vmatmul.bf16.gmra.mxu0 %v223
  %v468 = vpop.f32.mrf.mxu0
  %v469 = vadd.f32 0.0, %v468
  %v470 = vpop.f32.mrf.mxu0
  %v471 = vadd.f32 0.0, %v470
  %472 = vmatmul.bf16.gmra.mxu0 %v225
  %v473 = vpop.f32.mrf.mxu0
  %v474 = vadd.f32 0.0, %v473
  %v475 = vpop.f32.mrf.mxu0
  %v476 = vadd.f32 0.0, %v475
  %477 = vmatmul.bf16.gmra.mxu0 %v227
  %v478 = vpop.f32.mrf.mxu0
  %v479 = vadd.f32 0.0, %v478
  %v480 = vpop.f32.mrf.mxu0
  %v481 = vadd.f32 0.0, %v480
  %482 = vdwg.mxu0
  %483 = vmatpush.bf16.msra.mxu0 %v377
  %484 = vmatpush.bf16.msra.mxu0 %v376
  %485 = vmatpush.bf16.msra.mxu0 %v375
  %486 = vmatpush.bf16.msra.mxu0 %v374
  %487 = vmatpush.bf16.msra.mxu0 %v373
  %488 = vmatpush.bf16.msra.mxu0 %v372
  %489 = vmatpush.bf16.msra.mxu0 %v371
  %490 = vmatpush.bf16.msra.mxu0 %v370
  %491 = vmatmul.bf16.gmra.mxu0 %v198
  %v492 = vpop.f32.mrf.mxu0
  %v493 = vadd.f32 %v404, %v492
  %v494 = vpop.f32.mrf.mxu0
  %v495 = vadd.f32 %v406, %v494
  %496 = vmatmul.bf16.gmra.mxu0 %v200
  %v497 = vpop.f32.mrf.mxu0
  %v498 = vadd.f32 %v409, %v497
  %v499 = vpop.f32.mrf.mxu0
  %v500 = vadd.f32 %v411, %v499
  %501 = vmatmul.bf16.gmra.mxu0 %v202
  %v502 = vpop.f32.mrf.mxu0
  %v503 = vadd.f32 %v414, %v502
  %v504 = vpop.f32.mrf.mxu0
  %v505 = vadd.f32 %v416, %v504
  %506 = vmatmul.bf16.gmra.mxu0 %v204
  %v507 = vpop.f32.mrf.mxu0
  %v508 = vadd.f32 %v419, %v507
  %v509 = vpop.f32.mrf.mxu0
  %v510 = vadd.f32 %v421, %v509
  %511 = vmatmul.bf16.gmra.mxu0 %v206
  %v512 = vpop.f32.mrf.mxu0
  %v513 = vadd.f32 %v424, %v512
  %v514 = vpop.f32.mrf.mxu0
  %v515 = vadd.f32 %v426, %v514
  %516 = vmatmul.bf16.gmra.mxu0 %v208
  %v517 = vpop.f32.mrf.mxu0
  %v518 = vadd.f32 %v429, %v517
  %v519 = vpop.f32.mrf.mxu0
  %v520 = vadd.f32 %v431, %v519
  %521 = vmatmul.bf16.gmra.mxu0 %v210
  %v522 = vpop.f32.mrf.mxu0
  %v523 = vadd.f32 %v434, %v522
  %v524 = vpop.f32.mrf.mxu0
  %v525 = vadd.f32 %v436, %v524
  %526 = vmatmul.bf16.gmra.mxu0 %v212
  %v527 = vpop.f32.mrf.mxu0
  %v528 = vadd.f32 %v439, %v527
  %v529 = vpop.f32.mrf.mxu0
  %v530 = vadd.f32 %v441, %v529
  %531 = vmatmul.bf16.gmra.mxu0 %v214
  %v532 = vpop.f32.mrf.mxu0
  %v533 = vadd.f32 %v444, %v532
  %v534 = vpop.f32.mrf.mxu0
  %v535 = vadd.f32 %v446, %v534
  %536 = vmatmul.bf16.gmra.mxu0 %v216
  %v537 = vpop.f32.mrf.mxu0
  %v538 = vadd.f32 %v449, %v537
  %v539 = vpop.f32.mrf.mxu0
  %v540 = vadd.f32 %v451, %v539
  %541 = vmatmul.bf16.gmra.mxu0 %v218
  %v542 = vpop.f32.mrf.mxu0
  %v543 = vadd.f32 %v454, %v542
  %v544 = vpop.f32.mrf.mxu0
  %v545 = vadd.f32 %v456, %v544
  %546 = vmatmul.bf16.gmra.mxu0 %v220
  %v547 = vpop.f32.mrf.mxu0
  %v548 = vadd.f32 %v459, %v547
  %v549 = vpop.f32.mrf.mxu0
  %v550 = vadd.f32 %v461, %v549
  %551 = vmatmul.bf16.gmra.mxu0 %v222
  %v552 = vpop.f32.mrf.mxu0
  %v553 = vadd.f32 %v464, %v552
  %v554 = vpop.f32.mrf.mxu0
  %v555 = vadd.f32 %v466, %v554
  %556 = vmatmul.bf16.gmra.mxu0 %v224
  %v557 = vpop.f32.mrf.mxu0
  %v558 = vadd.f32 %v469, %v557
  %v559 = vpop.f32.mrf.mxu0
  %v560 = vadd.f32 %v471, %v559
  %561 = vmatmul.bf16.gmra.mxu0 %v226
  %v562 = vpop.f32.mrf.mxu0
  %v563 = vadd.f32 %v474, %v562
  %v564 = vpop.f32.mrf.mxu0
  %v565 = vadd.f32 %v476, %v564
  %566 = vmatmul.bf16.gmra.mxu0 %v228
  %v567 = vpop.f32.mrf.mxu0
  %v568 = vadd.f32 %v479, %v567
  %v569 = vpop.f32.mrf.mxu0
  %v570 = vadd.f32 %v481, %v569
  %571 = vdwg.mxu0
  %v572 = vadd.f32 %v266, %v493
  %v573 = vadd.f32 %v267, %v495
  %v574 = vadd.f32 %v268, %v498
  %v575 = vadd.f32 %v269, %v500
  %v576 = vadd.f32 %v270, %v503
  %v577 = vadd.f32 %v271, %v505
  %v578 = vadd.f32 %v272, %v508
  %v579 = vadd.f32 %v273, %v510
  %v580 = vadd.f32 %v274, %v513
  %v581 = vadd.f32 %v275, %v515
  %v582 = vadd.f32 %v276, %v518
  %v583 = vadd.f32 %v277, %v520
  %v584 = vadd.f32 %v278, %v523
  %v585 = vadd.f32 %v279, %v525
  %v586 = vadd.f32 %v280, %v528
  %v587 = vadd.f32 %v281, %v530
  %v588 = vadd.f32 %v282, %v533
  %v589 = vadd.f32 %v283, %v535
  %v590 = vadd.f32 %v284, %v538
  %v591 = vadd.f32 %v285, %v540
  %v592 = vadd.f32 %v286, %v543
  %v593 = vadd.f32 %v287, %v545
  %v594 = vadd.f32 %v288, %v548
  %v595 = vadd.f32 %v289, %v550
  %v596 = vadd.f32 %v290, %v553
  %v597 = vadd.f32 %v291, %v555
  %v598 = vadd.f32 %v292, %v558
  %v599 = vadd.f32 %v293, %v560
  %v600 = vadd.f32 %v294, %v563
  %v601 = vadd.f32 %v295, %v565
  %v602 = vadd.f32 %v296, %v568
  %v603 = vadd.f32 %v297, %v570
  %604 = vst [vmem:[#allocation2] sm:$0xff] %v572
  %605 = vst [vmem:[#allocation2 + $0x8] sm:$0xff] %v573
  %606 = vst [vmem:[#allocation2 + $0x10] sm:$0xff] %v574
  %607 = vst [vmem:[#allocation2 + $0x18] sm:$0xff] %v575
  %608 = vst [vmem:[#allocation2 + $0x20] sm:$0xff] %v576
  %609 = vst [vmem:[#allocation2 + $0x28] sm:$0xff] %v577
  %610 = vst [vmem:[#allocation2 + $0x30] sm:$0xff] %v578
  %611 = vst [vmem:[#allocation2 + $0x38] sm:$0xff] %v579
  %612 = vst [vmem:[#allocation2 + $0x40] sm:$0xff] %v580
  %613 = vst [vmem:[#allocation2 + $0x48] sm:$0xff] %v581
  %614 = vst [vmem:[#allocation2 + $0x50] sm:$0xff] %v582
  %615 = vst [vmem:[#allocation2 + $0x58] sm:$0xff] %v583
  %616 = vst [vmem:[#allocation2 + $0x60] sm:$0xff] %v584
  %617 = vst [vmem:[#allocation2 + $0x68] sm:$0xff] %v585
  %618 = vst [vmem:[#allocation2 + $0x70] sm:$0xff] %v586
  %619 = vst [vmem:[#allocation2 + $0x78] sm:$0xff] %v587
  %620 = vst [vmem:[#allocation2 + $0x80] sm:$0xff] %v588
  %621 = vst [vmem:[#allocation2 + $0x88] sm:$0xff] %v589
  %622 = vst [vmem:[#allocation2 + $0x90] sm:$0xff] %v590
  %623 = vst [vmem:[#allocation2 + $0x98] sm:$0xff] %v591
  %624 = vst [vmem:[#allocation2 + $0xa0] sm:$0xff] %v592
  %625 = vst [vmem:[#allocation2 + $0xa8] sm:$0xff] %v593
  %626 = vst [vmem:[#allocation2 + $0xb0] sm:$0xff] %v594
  %627 = vst [vmem:[#allocation2 + $0xb8] sm:$0xff] %v595
  %628 = vst [vmem:[#allocation2 + $0xc0] sm:$0xff] %v596
  %629 = vst [vmem:[#allocation2 + $0xc8] sm:$0xff] %v597
  %630 = vst [vmem:[#allocation2 + $0xd0] sm:$0xff] %v598
  %631 = vst [vmem:[#allocation2 + $0xd8] sm:$0xff] %v599
  %632 = vst [vmem:[#allocation2 + $0xe0] sm:$0xff] %v600
  %633 = vst [vmem:[#allocation2 + $0xe8] sm:$0xff] %v601
  %634 = vst [vmem:[#allocation2 + $0xf0] sm:$0xff] %v602
  %635 = vst [vmem:[#allocation2 + $0xf8] sm:$0xff] %v603
  // Predicated region
  $region22: #{gcn_forward.5} parent=0 // pred_check
    %p636 = pneg %p17
  $region23: #{gcn_forward.5} parent=0 // pred_check_branch
    %638 = sbr.rel (%p636) target = $region25
  $region24: #{gcn_forward.5} parent=0 // pred_region
    %v639 = vld [vmem:[#allocation2] sm:$0xff]
    %v640 = vld [vmem:[#allocation2 + $0x8] sm:$0xff]
    %v641 = vld [vmem:[#allocation2 + $0x10] sm:$0xff]
    %v642 = vld [vmem:[#allocation2 + $0x18] sm:$0xff]
    %v643 = vld [vmem:[#allocation2 + $0x20] sm:$0xff]
    %v644 = vld [vmem:[#allocation2 + $0x28] sm:$0xff]
    %v645 = vld [vmem:[#allocation2 + $0x30] sm:$0xff]
    %v646 = vld [vmem:[#allocation2 + $0x38] sm:$0xff]
    %v647 = vld [vmem:[#allocation2 + $0x40] sm:$0xff]
    %v648 = vld [vmem:[#allocation2 + $0x48] sm:$0xff]
    %v649 = vld [vmem:[#allocation2 + $0x50] sm:$0xff]
    %v650 = vld [vmem:[#allocation2 + $0x58] sm:$0xff]
    %v651 = vld [vmem:[#allocation2 + $0x60] sm:$0xff]
    %v652 = vld [vmem:[#allocation2 + $0x68] sm:$0xff]
    %v653 = vld [vmem:[#allocation2 + $0x70] sm:$0xff]
    %v654 = vld [vmem:[#allocation2 + $0x78] sm:$0xff]
    %v655 = vld [vmem:[#allocation2 + $0x80] sm:$0xff]
    %v656 = vld [vmem:[#allocation2 + $0x88] sm:$0xff]
    %v657 = vld [vmem:[#allocation2 + $0x90] sm:$0xff]
    %v658 = vld [vmem:[#allocation2 + $0x98] sm:$0xff]
    %v659 = vld [vmem:[#allocation2 + $0xa0] sm:$0xff]
    %v660 = vld [vmem:[#allocation2 + $0xa8] sm:$0xff]
    %v661 = vld [vmem:[#allocation2 + $0xb0] sm:$0xff]
    %v662 = vld [vmem:[#allocation2 + $0xb8] sm:$0xff]
    %v663 = vld [vmem:[#allocation2 + $0xc0] sm:$0xff]
    %v664 = vld [vmem:[#allocation2 + $0xc8] sm:$0xff]
    %v665 = vld [vmem:[#allocation2 + $0xd0] sm:$0xff]
    %v666 = vld [vmem:[#allocation2 + $0xd8] sm:$0xff]
    %v667 = vld [vmem:[#allocation2 + $0xe0] sm:$0xff]
    %v668 = vld [vmem:[#allocation2 + $0xe8] sm:$0xff]
    %v669 = vld [vmem:[#allocation2 + $0xf0] sm:$0xff]
    %v670 = vld [vmem:[#allocation2 + $0xf8] sm:$0xff]
    %v671 = vld [vmem:[%s2] sm:$0xff]
    %v672 = vld [vmem:[%s2 + $0x8] sm:$0xff]
    %v673 = vld [vmem:[%s2 + $0x10] sm:$0xff]
    %v674 = vld [vmem:[%s2 + $0x18] sm:$0xff]
    %v675 = vld [vmem:[%s2 + $0x20] sm:$0xff]
    %v676 = vld [vmem:[%s2 + $0x28] sm:$0xff]
    %v677 = vld [vmem:[%s2 + $0x30] sm:$0xff]
    %v678 = vld [vmem:[%s2 + $0x38] sm:$0xff]
    %v679 = vld [vmem:[%s2 + $0x40] sm:$0xff]
    %v680 = vld [vmem:[%s2 + $0x48] sm:$0xff]
    %v681 = vld [vmem:[%s2 + $0x50] sm:$0xff]
    %v682 = vld [vmem:[%s2 + $0x58] sm:$0xff]
    %v683 = vld [vmem:[%s2 + $0x60] sm:$0xff]
    %v684 = vld [vmem:[%s2 + $0x68] sm:$0xff]
    %v685 = vld [vmem:[%s2 + $0x70] sm:$0xff]
    %v686 = vld [vmem:[%s2 + $0x78] sm:$0xff]
    %v687 = vld [vmem:[%s2 + $0x80] sm:$0xff]
    %v688 = vld [vmem:[%s2 + $0x88] sm:$0xff]
    %v689 = vld [vmem:[%s2 + $0x90] sm:$0xff]
    %v690 = vld [vmem:[%s2 + $0x98] sm:$0xff]
    %v691 = vld [vmem:[%s2 + $0xa0] sm:$0xff]
    %v692 = vld [vmem:[%s2 + $0xa8] sm:$0xff]
    %v693 = vld [vmem:[%s2 + $0xb0] sm:$0xff]
    %v694 = vld [vmem:[%s2 + $0xb8] sm:$0xff]
    %v695 = vld [vmem:[%s2 + $0xc0] sm:$0xff]
    %v696 = vld [vmem:[%s2 + $0xc8] sm:$0xff]
    %v697 = vld [vmem:[%s2 + $0xd0] sm:$0xff]
    %v698 = vld [vmem:[%s2 + $0xd8] sm:$0xff]
    %v699 = vld [vmem:[%s2 + $0xe0] sm:$0xff]
    %v700 = vld [vmem:[%s2 + $0xe8] sm:$0xff]
    %v701 = vld [vmem:[%s2 + $0xf0] sm:$0xff]
    %v702 = vld [vmem:[%s2 + $0xf8] sm:$0xff]
    %704 = vset.pattern.permute.xlu0 0
    %705 = vperm.xlu0 %704, %v671
    %v706 = vpop.permute.xlu0 %705
    %709 = vset.pattern.permute.xlu0 0
    %710 = vperm.xlu0 %709, %v672
    %v711 = vpop.permute.xlu0 %710
    %714 = vset.pattern.permute.xlu0 0
    %715 = vperm.xlu0 %714, %v673
    %v716 = vpop.permute.xlu0 %715
    %719 = vset.pattern.permute.xlu0 0
    %720 = vperm.xlu0 %719, %v674
    %v721 = vpop.permute.xlu0 %720
    %724 = vset.pattern.permute.xlu0 0
    %725 = vperm.xlu0 %724, %v675
    %v726 = vpop.permute.xlu0 %725
    %729 = vset.pattern.permute.xlu0 0
    %730 = vperm.xlu0 %729, %v676
    %v731 = vpop.permute.xlu0 %730
    %734 = vset.pattern.permute.xlu0 0
    %735 = vperm.xlu0 %734, %v677
    %v736 = vpop.permute.xlu0 %735
    %739 = vset.pattern.permute.xlu0 0
    %740 = vperm.xlu0 %739, %v678
    %v741 = vpop.permute.xlu0 %740
    %744 = vset.pattern.permute.xlu0 0
    %745 = vperm.xlu0 %744, %v679
    %v746 = vpop.permute.xlu0 %745
    %749 = vset.pattern.permute.xlu0 0
    %750 = vperm.xlu0 %749, %v680
    %v751 = vpop.permute.xlu0 %750
    %754 = vset.pattern.permute.xlu0 0
    %755 = vperm.xlu0 %754, %v681
    %v756 = vpop.permute.xlu0 %755
    %759 = vset.pattern.permute.xlu0 0
    %760 = vperm.xlu0 %759, %v682
    %v761 = vpop.permute.xlu0 %760
    %764 = vset.pattern.permute.xlu0 0
    %765 = vperm.xlu0 %764, %v683
    %v766 = vpop.permute.xlu0 %765
    %769 = vset.pattern.permute.xlu0 0
    %770 = vperm.xlu0 %769, %v684
    %v771 = vpop.permute.xlu0 %770
    %774 = vset.pattern.permute.xlu0 0
    %775 = vperm.xlu0 %774, %v685
    %v776 = vpop.permute.xlu0 %775
    %779 = vset.pattern.permute.xlu0 0
    %780 = vperm.xlu0 %779, %v686
    %v781 = vpop.permute.xlu0 %780
    %784 = vset.pattern.permute.xlu0 0
    %785 = vperm.xlu0 %784, %v687
    %v786 = vpop.permute.xlu0 %785
    %789 = vset.pattern.permute.xlu0 0
    %790 = vperm.xlu0 %789, %v688
    %v791 = vpop.permute.xlu0 %790
    %794 = vset.pattern.permute.xlu0 0
    %795 = vperm.xlu0 %794, %v689
    %v796 = vpop.permute.xlu0 %795
    %799 = vset.pattern.permute.xlu0 0
    %800 = vperm.xlu0 %799, %v690
    %v801 = vpop.permute.xlu0 %800
    %804 = vset.pattern.permute.xlu0 0
    %805 = vperm.xlu0 %804, %v691
    %v806 = vpop.permute.xlu0 %805
    %809 = vset.pattern.permute.xlu0 0
    %810 = vperm.xlu0 %809, %v692
    %v811 = vpop.permute.xlu0 %810
    %814 = vset.pattern.permute.xlu0 0
    %815 = vperm.xlu0 %814, %v693
    %v816 = vpop.permute.xlu0 %815
    %819 = vset.pattern.permute.xlu0 0
    %820 = vperm.xlu0 %819, %v694
    %v821 = vpop.permute.xlu0 %820
    %824 = vset.pattern.permute.xlu0 0
    %825 = vperm.xlu0 %824, %v695
    %v826 = vpop.permute.xlu0 %825
    %829 = vset.pattern.permute.xlu0 0
    %830 = vperm.xlu0 %829, %v696
    %v831 = vpop.permute.xlu0 %830
    %834 = vset.pattern.permute.xlu0 0
    %835 = vperm.xlu0 %834, %v697
    %v836 = vpop.permute.xlu0 %835
    %839 = vset.pattern.permute.xlu0 0
    %840 = vperm.xlu0 %839, %v698
    %v841 = vpop.permute.xlu0 %840
    %844 = vset.pattern.permute.xlu0 0
    %845 = vperm.xlu0 %844, %v699
    %v846 = vpop.permute.xlu0 %845
    %849 = vset.pattern.permute.xlu0 0
    %850 = vperm.xlu0 %849, %v700
    %v851 = vpop.permute.xlu0 %850
    %854 = vset.pattern.permute.xlu0 0
    %855 = vperm.xlu0 %854, %v701
    %v856 = vpop.permute.xlu0 %855
    %859 = vset.pattern.permute.xlu0 0
    %860 = vperm.xlu0 %859, %v702
    %v861 = vpop.permute.xlu0 %860
    %v863 = vmul.f32 %v639, %v706
    %v864 = vmul.f32 %v640, %v711
    %v865 = vmul.f32 %v641, %v716
    %v866 = vmul.f32 %v642, %v721
    %v867 = vmul.f32 %v643, %v726
    %v868 = vmul.f32 %v644, %v731
    %v869 = vmul.f32 %v645, %v736
    %v870 = vmul.f32 %v646, %v741
    %v871 = vmul.f32 %v647, %v746
    %v872 = vmul.f32 %v648, %v751
    %v873 = vmul.f32 %v649, %v756
    %v874 = vmul.f32 %v650, %v761
    %v875 = vmul.f32 %v651, %v766
    %v876 = vmul.f32 %v652, %v771
    %v877 = vmul.f32 %v653, %v776
    %v878 = vmul.f32 %v654, %v781
    %v879 = vmul.f32 %v655, %v786
    %v880 = vmul.f32 %v656, %v791
    %v881 = vmul.f32 %v657, %v796
    %v882 = vmul.f32 %v658, %v801
    %v883 = vmul.f32 %v659, %v806
    %v884 = vmul.f32 %v660, %v811
    %v885 = vmul.f32 %v661, %v816
    %v886 = vmul.f32 %v662, %v821
    %v887 = vmul.f32 %v663, %v826
    %v888 = vmul.f32 %v664, %v831
    %v889 = vmul.f32 %v665, %v836
    %v890 = vmul.f32 %v666, %v841
    %v891 = vmul.f32 %v667, %v846
    %v892 = vmul.f32 %v668, %v851
    %v893 = vmul.f32 %v669, %v856
    %v894 = vmul.f32 %v670, %v861
    %v895 = vld [vmem:[%s3] sm:$0x1]
    %v897 = vperm.slane %v895, 0
    %v899 = vadd.f32 %v863, %v897
    %v900 = vadd.f32 %v864, %v897
    %v901 = vadd.f32 %v865, %v897
    %v902 = vadd.f32 %v866, %v897
    %v903 = vadd.f32 %v867, %v897
    %v904 = vadd.f32 %v868, %v897
    %v905 = vadd.f32 %v869, %v897
    %v906 = vadd.f32 %v870, %v897
    %v907 = vadd.f32 %v871, %v897
    %v908 = vadd.f32 %v872, %v897
    %v909 = vadd.f32 %v873, %v897
    %v910 = vadd.f32 %v874, %v897
    %v911 = vadd.f32 %v875, %v897
    %v912 = vadd.f32 %v876, %v897
    %v913 = vadd.f32 %v877, %v897
    %v914 = vadd.f32 %v878, %v897
    %v915 = vadd.f32 %v879, %v897
    %v916 = vadd.f32 %v880, %v897
    %v917 = vadd.f32 %v881, %v897
    %v918 = vadd.f32 %v882, %v897
    %v919 = vadd.f32 %v883, %v897
    %v920 = vadd.f32 %v884, %v897
    %v921 = vadd.f32 %v885, %v897
    %v922 = vadd.f32 %v886, %v897
    %v923 = vadd.f32 %v887, %v897
    %v924 = vadd.f32 %v888, %v897
    %v925 = vadd.f32 %v889, %v897
    %v926 = vadd.f32 %v890, %v897
    %v927 = vadd.f32 %v891, %v897
    %v928 = vadd.f32 %v892, %v897
    %v929 = vadd.f32 %v893, %v897
    %v930 = vadd.f32 %v894, %v897
    %931 = vst [vmem:[%s4] sm:$0xff] %v899
    %932 = vst [vmem:[%s4 + $0x8] sm:$0xff] %v900
    %933 = vst [vmem:[%s4 + $0x10] sm:$0xff] %v901
    %934 = vst [vmem:[%s4 + $0x18] sm:$0xff] %v902
    %935 = vst [vmem:[%s4 + $0x20] sm:$0xff] %v903
    %936 = vst [vmem:[%s4 + $0x28] sm:$0xff] %v904
    %937 = vst [vmem:[%s4 + $0x30] sm:$0xff] %v905
    %938 = vst [vmem:[%s4 + $0x38] sm:$0xff] %v906
    %939 = vst [vmem:[%s4 + $0x40] sm:$0xff] %v907
    %940 = vst [vmem:[%s4 + $0x48] sm:$0xff] %v908
    %941 = vst [vmem:[%s4 + $0x50] sm:$0xff] %v909
    %942 = vst [vmem:[%s4 + $0x58] sm:$0xff] %v910
    %943 = vst [vmem:[%s4 + $0x60] sm:$0xff] %v911
    %944 = vst [vmem:[%s4 + $0x68] sm:$0xff] %v912
    %945 = vst [vmem:[%s4 + $0x70] sm:$0xff] %v913
    %946 = vst [vmem:[%s4 + $0x78] sm:$0xff] %v914
    %947 = vst [vmem:[%s4 + $0x80] sm:$0xff] %v915
    %948 = vst [vmem:[%s4 + $0x88] sm:$0xff] %v916
    %949 = vst [vmem:[%s4 + $0x90] sm:$0xff] %v917
    %950 = vst [vmem:[%s4 + $0x98] sm:$0xff] %v918
    %951 = vst [vmem:[%s4 + $0xa0] sm:$0xff] %v919
    %952 = vst [vmem:[%s4 + $0xa8] sm:$0xff] %v920
    %953 = vst [vmem:[%s4 + $0xb0] sm:$0xff] %v921
    %954 = vst [vmem:[%s4 + $0xb8] sm:$0xff] %v922
    %955 = vst [vmem:[%s4 + $0xc0] sm:$0xff] %v923
    %956 = vst [vmem:[%s4 + $0xc8] sm:$0xff] %v924
    %957 = vst [vmem:[%s4 + $0xd0] sm:$0xff] %v925
    %958 = vst [vmem:[%s4 + $0xd8] sm:$0xff] %v926
    %959 = vst [vmem:[%s4 + $0xe0] sm:$0xff] %v927
    %960 = vst [vmem:[%s4 + $0xe8] sm:$0xff] %v928
    %961 = vst [vmem:[%s4 + $0xf0] sm:$0xff] %v929
    %962 = vst [vmem:[%s4 + $0xf8] sm:$0xff] %v930
  $region25: #{gcn_forward.5} parent=0 // pred_fallthru
    _
  // Predicated region
  $region26: #{gcn_forward.5} parent=0 // pred_check
    _
  $region27: #{gcn_forward.5} parent=0 // pred_check_branch
    %964 = sbr.rel (0) target = $region29
  $region28: #{gcn_forward.5} parent=0 // pred_region
    _
  $region29: #{gcn_forward.5} parent=0 // pred_fallthru
    _
  // Predicated region
  $region30: #{gcn_forward.5} parent=0 // pred_check
    _
  $region31: #{gcn_forward.5} parent=0 // pred_check_branch
    %966 = sbr.rel (0) target = $region33
  $region32: #{gcn_forward.5} parent=0 // pred_region
    _
  $region33: #{gcn_forward.5} parent=0 // pred_fallthru
    _

// kernel: gcn_forward.3
$region0: #{gcn_forward.3}
  #allocation0 [shape = 'u32[]', space=smem, size = 0x4, offset = 0x4, fixed_abs, tag = 'smem constant byte address 0x4 - core index']
  #allocation1 [shape = 'u32[72,128]{1,0:T(1,128)}', space=vmem, size = 0x9000, scoped, tag = 'internal scratch']
  #allocation2 [shape = 'f32[256,128]{1,0:T(8,128)}', space=vmem, size = 0x20000, scoped, tag = 'scratch operand']
  %s0 = inlined_call_operand.vmem [shape: bf16[256,128], index: 0, kind: input, shape index: {}]
  %s1 = inlined_call_operand.vmem [shape: bf16[128,128], index: 1, kind: input, shape index: {}]
  %s2 = inlined_call_operand.vmem [shape: f32[256,1], index: 2, kind: input, shape index: {}]
  %s3 = inlined_call_operand.vmem [shape: bf16[256,128], index: 3, kind: output, shape index: {}]
  %s4 = sld [smem:[#allocation0]]
  $region30: #{gcn_forward.3} parent=0
    _
  %s6 = ssub.s32 1, %s4
  %s7 = scalar_select 0, %s6, %s4
  // Predicated region
  $region2: #{gcn_forward.3} parent=0 // pred_check
    _
  $region3: #{gcn_forward.3} parent=0 // pred_check_branch
    %9 = sbr.rel (0) target = $region5
  $region4: #{gcn_forward.3} parent=0 // pred_region
    _
  $region5: #{gcn_forward.3} parent=0 // pred_fallthru
    _
  // Predicated region
  $region6: #{gcn_forward.3} parent=0 // pred_check
    _
  $region7: #{gcn_forward.3} parent=0 // pred_check_branch
    %11 = sbr.rel (0) target = $region9
  $region8: #{gcn_forward.3} parent=0 // pred_region
    _
  $region9: #{gcn_forward.3} parent=0 // pred_fallthru
    _
  // Predicated region
  $region10: #{gcn_forward.3} parent=0 // pred_check
    _
  $region11: #{gcn_forward.3} parent=0 // pred_check_branch
    %13 = sbr.rel (0) target = $region13
  $region12: #{gcn_forward.3} parent=0 // pred_region
    _
  $region13: #{gcn_forward.3} parent=0 // pred_fallthru
    _
  %p14 = scmp.eq.s32.totalorder 0, 0
  // Predicated region
  $region14: #{gcn_forward.3} parent=0 // pred_check
    %p15 = pneg %p14
  $region15: #{gcn_forward.3} parent=0 // pred_check_branch
    %17 = sbr.rel (%p15) target = $region17
  $region16: #{gcn_forward.3} parent=0 // pred_region
    %18 = vst [vmem:[#allocation2] sm:$0xff] 0.0
    %19 = vst [vmem:[#allocation2 + $0x8] sm:$0xff] 0.0
    %20 = vst [vmem:[#allocation2 + $0x10] sm:$0xff] 0.0
    %21 = vst [vmem:[#allocation2 + $0x18] sm:$0xff] 0.0
    %22 = vst [vmem:[#allocation2 + $0x20] sm:$0xff] 0.0
    %23 = vst [vmem:[#allocation2 + $0x28] sm:$0xff] 0.0
    %24 = vst [vmem:[#allocation2 + $0x30] sm:$0xff] 0.0
    %25 = vst [vmem:[#allocation2 + $0x38] sm:$0xff] 0.0
    %26 = vst [vmem:[#allocation2 + $0x40] sm:$0xff] 0.0
    %27 = vst [vmem:[#allocation2 + $0x48] sm:$0xff] 0.0
    %28 = vst [vmem:[#allocation2 + $0x50] sm:$0xff] 0.0
    %29 = vst [vmem:[#allocation2 + $0x58] sm:$0xff] 0.0
    %30 = vst [vmem:[#allocation2 + $0x60] sm:$0xff] 0.0
    %31 = vst [vmem:[#allocation2 + $0x68] sm:$0xff] 0.0
    %32 = vst [vmem:[#allocation2 + $0x70] sm:$0xff] 0.0
    %33 = vst [vmem:[#allocation2 + $0x78] sm:$0xff] 0.0
    %34 = vst [vmem:[#allocation2 + $0x80] sm:$0xff] 0.0
    %35 = vst [vmem:[#allocation2 + $0x88] sm:$0xff] 0.0
    %36 = vst [vmem:[#allocation2 + $0x90] sm:$0xff] 0.0
    %37 = vst [vmem:[#allocation2 + $0x98] sm:$0xff] 0.0
    %38 = vst [vmem:[#allocation2 + $0xa0] sm:$0xff] 0.0
    %39 = vst [vmem:[#allocation2 + $0xa8] sm:$0xff] 0.0
    %40 = vst [vmem:[#allocation2 + $0xb0] sm:$0xff] 0.0
    %41 = vst [vmem:[#allocation2 + $0xb8] sm:$0xff] 0.0
    %42 = vst [vmem:[#allocation2 + $0xc0] sm:$0xff] 0.0
    %43 = vst [vmem:[#allocation2 + $0xc8] sm:$0xff] 0.0
    %44 = vst [vmem:[#allocation2 + $0xd0] sm:$0xff] 0.0
    %45 = vst [vmem:[#allocation2 + $0xd8] sm:$0xff] 0.0
    %46 = vst [vmem:[#allocation2 + $0xe0] sm:$0xff] 0.0
    %47 = vst [vmem:[#allocation2 + $0xe8] sm:$0xff] 0.0
    %48 = vst [vmem:[#allocation2 + $0xf0] sm:$0xff] 0.0
    %49 = vst [vmem:[#allocation2 + $0xf8] sm:$0xff] 0.0
  $region17: #{gcn_forward.3} parent=0 // pred_fallthru
    _
  %v50 = vld [vmem:[#allocation2] sm:$0xff]
  %v51 = vld [vmem:[#allocation2 + $0x8] sm:$0xff]
  %v52 = vld [vmem:[#allocation2 + $0x10] sm:$0xff]
  %v53 = vld [vmem:[#allocation2 + $0x18] sm:$0xff]
  %v54 = vld [vmem:[#allocation2 + $0x20] sm:$0xff]
  %v55 = vld [vmem:[#allocation2 + $0x28] sm:$0xff]
  %v56 = vld [vmem:[#allocation2 + $0x30] sm:$0xff]
  %v57 = vld [vmem:[#allocation2 + $0x38] sm:$0xff]
  %v58 = vld [vmem:[#allocation2 + $0x40] sm:$0xff]
  %v59 = vld [vmem:[#allocation2 + $0x48] sm:$0xff]
  %v60 = vld [vmem:[#allocation2 + $0x50] sm:$0xff]
  %v61 = vld [vmem:[#allocation2 + $0x58] sm:$0xff]
  %v62 = vld [vmem:[#allocation2 + $0x60] sm:$0xff]
  %v63 = vld [vmem:[#allocation2 + $0x68] sm:$0xff]
  %v64 = vld [vmem:[#allocation2 + $0x70] sm:$0xff]
  %v65 = vld [vmem:[#allocation2 + $0x78] sm:$0xff]
  %v66 = vld [vmem:[#allocation2 + $0x80] sm:$0xff]
  %v67 = vld [vmem:[#allocation2 + $0x88] sm:$0xff]
  %v68 = vld [vmem:[#allocation2 + $0x90] sm:$0xff]
  %v69 = vld [vmem:[#allocation2 + $0x98] sm:$0xff]
  %v70 = vld [vmem:[#allocation2 + $0xa0] sm:$0xff]
  %v71 = vld [vmem:[#allocation2 + $0xa8] sm:$0xff]
  %v72 = vld [vmem:[#allocation2 + $0xb0] sm:$0xff]
  %v73 = vld [vmem:[#allocation2 + $0xb8] sm:$0xff]
  %v74 = vld [vmem:[#allocation2 + $0xc0] sm:$0xff]
  %v75 = vld [vmem:[#allocation2 + $0xc8] sm:$0xff]
  %v76 = vld [vmem:[#allocation2 + $0xd0] sm:$0xff]
  %v77 = vld [vmem:[#allocation2 + $0xd8] sm:$0xff]
  %v78 = vld [vmem:[#allocation2 + $0xe0] sm:$0xff]
  %v79 = vld [vmem:[#allocation2 + $0xe8] sm:$0xff]
  %v80 = vld [vmem:[#allocation2 + $0xf0] sm:$0xff]
  %v81 = vld [vmem:[#allocation2 + $0xf8] sm:$0xff]
  %v82 = vld [vmem:[%s0] sm:$0xf]
  %v83 = vld [vmem:[%s0 + $0x4] sm:$0xf]
  %v84 = vld [vmem:[%s0 + $0x8] sm:$0xf]
  %v85 = vld [vmem:[%s0 + $0xc] sm:$0xf]
  %v86 = vld [vmem:[%s0 + $0x10] sm:$0xf]
  %v87 = vld [vmem:[%s0 + $0x14] sm:$0xf]
  %v88 = vld [vmem:[%s0 + $0x18] sm:$0xf]
  %v89 = vld [vmem:[%s0 + $0x1c] sm:$0xf]
  %v90 = vld [vmem:[%s0 + $0x20] sm:$0xf]
  %v91 = vld [vmem:[%s0 + $0x24] sm:$0xf]
  %v92 = vld [vmem:[%s0 + $0x28] sm:$0xf]
  %v93 = vld [vmem:[%s0 + $0x2c] sm:$0xf]
  %v94 = vld [vmem:[%s0 + $0x30] sm:$0xf]
  %v95 = vld [vmem:[%s0 + $0x34] sm:$0xf]
  %v96 = vld [vmem:[%s0 + $0x38] sm:$0xf]
  %v97 = vld [vmem:[%s0 + $0x3c] sm:$0xf]
  %v98 = vld [vmem:[%s0 + $0x40] sm:$0xf]
  %v99 = vld [vmem:[%s0 + $0x44] sm:$0xf]
  %v100 = vld [vmem:[%s0 + $0x48] sm:$0xf]
  %v101 = vld [vmem:[%s0 + $0x4c] sm:$0xf]
  %v102 = vld [vmem:[%s0 + $0x50] sm:$0xf]
  %v103 = vld [vmem:[%s0 + $0x54] sm:$0xf]
  %v104 = vld [vmem:[%s0 + $0x58] sm:$0xf]
  %v105 = vld [vmem:[%s0 + $0x5c] sm:$0xf]
  %v106 = vld [vmem:[%s0 + $0x60] sm:$0xf]
  %v107 = vld [vmem:[%s0 + $0x64] sm:$0xf]
  %v108 = vld [vmem:[%s0 + $0x68] sm:$0xf]
  %v109 = vld [vmem:[%s0 + $0x6c] sm:$0xf]
  %v110 = vld [vmem:[%s0 + $0x70] sm:$0xf]
  %v111 = vld [vmem:[%s0 + $0x74] sm:$0xf]
  %v112 = vld [vmem:[%s0 + $0x78] sm:$0xf]
  %v113 = vld [vmem:[%s0 + $0x7c] sm:$0xf]
  %v114 = vld [vmem:[%s1] sm:$0xf]
  %v115 = vld [vmem:[%s1 + $0x4] sm:$0xf]
  %v116 = vld [vmem:[%s1 + $0x8] sm:$0xf]
  %v117 = vld [vmem:[%s1 + $0xc] sm:$0xf]
  %v118 = vld [vmem:[%s1 + $0x10] sm:$0xf]
  %v119 = vld [vmem:[%s1 + $0x14] sm:$0xf]
  %v120 = vld [vmem:[%s1 + $0x18] sm:$0xf]
  %v121 = vld [vmem:[%s1 + $0x1c] sm:$0xf]
  %v122 = vld [vmem:[%s1 + $0x20] sm:$0xf]
  %v123 = vld [vmem:[%s1 + $0x24] sm:$0xf]
  %v124 = vld [vmem:[%s1 + $0x28] sm:$0xf]
  %v125 = vld [vmem:[%s1 + $0x2c] sm:$0xf]
  %v126 = vld [vmem:[%s1 + $0x30] sm:$0xf]
  %v127 = vld [vmem:[%s1 + $0x34] sm:$0xf]
  %v128 = vld [vmem:[%s1 + $0x38] sm:$0xf]
  %v129 = vld [vmem:[%s1 + $0x3c] sm:$0xf]
  %v162 = vunpack.c.l.b16 %v82
  %v163 = vunpack.c.l.b16 %v83
  %v164 = vunpack.c.l.b16 %v84
  %v165 = vunpack.c.l.b16 %v85
  %v166 = vunpack.c.l.b16 %v86
  %v167 = vunpack.c.l.b16 %v87
  %v168 = vunpack.c.l.b16 %v88
  %v169 = vunpack.c.l.b16 %v89
  %v170 = vunpack.c.l.b16 %v90
  %v171 = vunpack.c.l.b16 %v91
  %v172 = vunpack.c.l.b16 %v92
  %v173 = vunpack.c.l.b16 %v93
  %v174 = vunpack.c.l.b16 %v94
  %v175 = vunpack.c.l.b16 %v95
  %v176 = vunpack.c.l.b16 %v96
  %v177 = vunpack.c.l.b16 %v97
  %v178 = vunpack.c.l.b16 %v98
  %v179 = vunpack.c.l.b16 %v99
  %v180 = vunpack.c.l.b16 %v100
  %v181 = vunpack.c.l.b16 %v101
  %v182 = vunpack.c.l.b16 %v102
  %v183 = vunpack.c.l.b16 %v103
  %v184 = vunpack.c.l.b16 %v104
  %v185 = vunpack.c.l.b16 %v105
  %v186 = vunpack.c.l.b16 %v106
  %v187 = vunpack.c.l.b16 %v107
  %v188 = vunpack.c.l.b16 %v108
  %v189 = vunpack.c.l.b16 %v109
  %v190 = vunpack.c.l.b16 %v110
  %v191 = vunpack.c.l.b16 %v111
  %v192 = vunpack.c.l.b16 %v112
  %v193 = vunpack.c.l.b16 %v113
  %v194 = vpack.c.b16 %v163, %v162
  %v195 = vpack.c.b16 %v165, %v164
  %v196 = vpack.c.b16 %v167, %v166
  %v197 = vpack.c.b16 %v169, %v168
  %v198 = vpack.c.b16 %v171, %v170
  %v199 = vpack.c.b16 %v173, %v172
  %v200 = vpack.c.b16 %v175, %v174
  %v201 = vpack.c.b16 %v177, %v176
  %v202 = vpack.c.b16 %v179, %v178
  %v203 = vpack.c.b16 %v181, %v180
  %v204 = vpack.c.b16 %v183, %v182
  %v205 = vpack.c.b16 %v185, %v184
  %v206 = vpack.c.b16 %v187, %v186
  %v207 = vpack.c.b16 %v189, %v188
  %v208 = vpack.c.b16 %v191, %v190
  %v209 = vpack.c.b16 %v193, %v192
  %v242 = vunpack.c.l.b16 %v114
  %v243 = vunpack.c.l.b16 %v115
  %v244 = vunpack.c.l.b16 %v116
  %v245 = vunpack.c.l.b16 %v117
  %v246 = vunpack.c.l.b16 %v118
  %v247 = vunpack.c.l.b16 %v119
  %v248 = vunpack.c.l.b16 %v120
  %v249 = vunpack.c.l.b16 %v121
  %v250 = vunpack.c.l.b16 %v122
  %v251 = vunpack.c.l.b16 %v123
  %v252 = vunpack.c.l.b16 %v124
  %v253 = vunpack.c.l.b16 %v125
  %v254 = vunpack.c.l.b16 %v126
  %v255 = vunpack.c.l.b16 %v127
  %v256 = vunpack.c.l.b16 %v128
  %v257 = vunpack.c.l.b16 %v129
  %v258 = vpack.c.b16 %v243, %v242
  %v259 = vpack.c.b16 %v245, %v244
  %v260 = vpack.c.b16 %v247, %v246
  %v261 = vpack.c.b16 %v249, %v248
  %v262 = vpack.c.b16 %v251, %v250
  %v263 = vpack.c.b16 %v253, %v252
  %v264 = vpack.c.b16 %v255, %v254
  %v265 = vpack.c.b16 %v257, %v256
  %274 = vmatpush.bf16.msra.mxu0 %v265
  %275 = vmatpush.bf16.msra.mxu0 %v264
  %276 = vmatpush.bf16.msra.mxu0 %v263
  %277 = vmatpush.bf16.msra.mxu0 %v262
  %278 = vmatpush.bf16.msra.mxu0 %v261
  %279 = vmatpush.bf16.msra.mxu0 %v260
  %280 = vmatpush.bf16.msra.mxu0 %v259
  %281 = vmatpush.bf16.msra.mxu0 %v258
  %282 = vmatmul.bf16.gmra.mxu0 %v194
  %v283 = vpop.f32.mrf.mxu0
  %v284 = vadd.f32 0.0, %v283
  %v285 = vpop.f32.mrf.mxu0
  %v286 = vadd.f32 0.0, %v285
  %287 = vmatmul.bf16.gmra.mxu0 %v195
  %v288 = vpop.f32.mrf.mxu0
  %v289 = vadd.f32 0.0, %v288
  %v290 = vpop.f32.mrf.mxu0
  %v291 = vadd.f32 0.0, %v290
  %292 = vmatmul.bf16.gmra.mxu0 %v196
  %v293 = vpop.f32.mrf.mxu0
  %v294 = vadd.f32 0.0, %v293
  %v295 = vpop.f32.mrf.mxu0
  %v296 = vadd.f32 0.0, %v295
  %297 = vmatmul.bf16.gmra.mxu0 %v197
  %v298 = vpop.f32.mrf.mxu0
  %v299 = vadd.f32 0.0, %v298
  %v300 = vpop.f32.mrf.mxu0
  %v301 = vadd.f32 0.0, %v300
  %302 = vmatmul.bf16.gmra.mxu0 %v198
  %v303 = vpop.f32.mrf.mxu0
  %v304 = vadd.f32 0.0, %v303
  %v305 = vpop.f32.mrf.mxu0
  %v306 = vadd.f32 0.0, %v305
  %307 = vmatmul.bf16.gmra.mxu0 %v199
  %v308 = vpop.f32.mrf.mxu0
  %v309 = vadd.f32 0.0, %v308
  %v310 = vpop.f32.mrf.mxu0
  %v311 = vadd.f32 0.0, %v310
  %312 = vmatmul.bf16.gmra.mxu0 %v200
  %v313 = vpop.f32.mrf.mxu0
  %v314 = vadd.f32 0.0, %v313
  %v315 = vpop.f32.mrf.mxu0
  %v316 = vadd.f32 0.0, %v315
  %317 = vmatmul.bf16.gmra.mxu0 %v201
  %v318 = vpop.f32.mrf.mxu0
  %v319 = vadd.f32 0.0, %v318
  %v320 = vpop.f32.mrf.mxu0
  %v321 = vadd.f32 0.0, %v320
  %322 = vmatmul.bf16.gmra.mxu0 %v202
  %v323 = vpop.f32.mrf.mxu0
  %v324 = vadd.f32 0.0, %v323
  %v325 = vpop.f32.mrf.mxu0
  %v326 = vadd.f32 0.0, %v325
  %327 = vmatmul.bf16.gmra.mxu0 %v203
  %v328 = vpop.f32.mrf.mxu0
  %v329 = vadd.f32 0.0, %v328
  %v330 = vpop.f32.mrf.mxu0
  %v331 = vadd.f32 0.0, %v330
  %332 = vmatmul.bf16.gmra.mxu0 %v204
  %v333 = vpop.f32.mrf.mxu0
  %v334 = vadd.f32 0.0, %v333
  %v335 = vpop.f32.mrf.mxu0
  %v336 = vadd.f32 0.0, %v335
  %337 = vmatmul.bf16.gmra.mxu0 %v205
  %v338 = vpop.f32.mrf.mxu0
  %v339 = vadd.f32 0.0, %v338
  %v340 = vpop.f32.mrf.mxu0
  %v341 = vadd.f32 0.0, %v340
  %342 = vmatmul.bf16.gmra.mxu0 %v206
  %v343 = vpop.f32.mrf.mxu0
  %v344 = vadd.f32 0.0, %v343
  %v345 = vpop.f32.mrf.mxu0
  %v346 = vadd.f32 0.0, %v345
  %347 = vmatmul.bf16.gmra.mxu0 %v207
  %v348 = vpop.f32.mrf.mxu0
  %v349 = vadd.f32 0.0, %v348
  %v350 = vpop.f32.mrf.mxu0
  %v351 = vadd.f32 0.0, %v350
  %352 = vmatmul.bf16.gmra.mxu0 %v208
  %v353 = vpop.f32.mrf.mxu0
  %v354 = vadd.f32 0.0, %v353
  %v355 = vpop.f32.mrf.mxu0
  %v356 = vadd.f32 0.0, %v355
  %357 = vmatmul.bf16.gmra.mxu0 %v209
  %v358 = vpop.f32.mrf.mxu0
  %v359 = vadd.f32 0.0, %v358
  %v360 = vpop.f32.mrf.mxu0
  %v361 = vadd.f32 0.0, %v360
  %362 = vdwg.mxu0
  %v363 = vadd.f32 %v50, %v284
  %v364 = vadd.f32 %v51, %v286
  %v365 = vadd.f32 %v52, %v289
  %v366 = vadd.f32 %v53, %v291
  %v367 = vadd.f32 %v54, %v294
  %v368 = vadd.f32 %v55, %v296
  %v369 = vadd.f32 %v56, %v299
  %v370 = vadd.f32 %v57, %v301
  %v371 = vadd.f32 %v58, %v304
  %v372 = vadd.f32 %v59, %v306
  %v373 = vadd.f32 %v60, %v309
  %v374 = vadd.f32 %v61, %v311
  %v375 = vadd.f32 %v62, %v314
  %v376 = vadd.f32 %v63, %v316
  %v377 = vadd.f32 %v64, %v319
  %v378 = vadd.f32 %v65, %v321
  %v379 = vadd.f32 %v66, %v324
  %v380 = vadd.f32 %v67, %v326
  %v381 = vadd.f32 %v68, %v329
  %v382 = vadd.f32 %v69, %v331
  %v383 = vadd.f32 %v70, %v334
  %v384 = vadd.f32 %v71, %v336
  %v385 = vadd.f32 %v72, %v339
  %v386 = vadd.f32 %v73, %v341
  %v387 = vadd.f32 %v74, %v344
  %v388 = vadd.f32 %v75, %v346
  %v389 = vadd.f32 %v76, %v349
  %v390 = vadd.f32 %v77, %v351
  %v391 = vadd.f32 %v78, %v354
  %v392 = vadd.f32 %v79, %v356
  %v393 = vadd.f32 %v80, %v359
  %v394 = vadd.f32 %v81, %v361
  %395 = vst [vmem:[#allocation2] sm:$0xff] %v363
  %396 = vst [vmem:[#allocation2 + $0x8] sm:$0xff] %v364
  %397 = vst [vmem:[#allocation2 + $0x10] sm:$0xff] %v365
  %398 = vst [vmem:[#allocation2 + $0x18] sm:$0xff] %v366
  %399 = vst [vmem:[#allocation2 + $0x20] sm:$0xff] %v367
  %400 = vst [vmem:[#allocation2 + $0x28] sm:$0xff] %v368
  %401 = vst [vmem:[#allocation2 + $0x30] sm:$0xff] %v369
  %402 = vst [vmem:[#allocation2 + $0x38] sm:$0xff] %v370
  %403 = vst [vmem:[#allocation2 + $0x40] sm:$0xff] %v371
  %404 = vst [vmem:[#allocation2 + $0x48] sm:$0xff] %v372
  %405 = vst [vmem:[#allocation2 + $0x50] sm:$0xff] %v373
  %406 = vst [vmem:[#allocation2 + $0x58] sm:$0xff] %v374
  %407 = vst [vmem:[#allocation2 + $0x60] sm:$0xff] %v375
  %408 = vst [vmem:[#allocation2 + $0x68] sm:$0xff] %v376
  %409 = vst [vmem:[#allocation2 + $0x70] sm:$0xff] %v377
  %410 = vst [vmem:[#allocation2 + $0x78] sm:$0xff] %v378
  %411 = vst [vmem:[#allocation2 + $0x80] sm:$0xff] %v379
  %412 = vst [vmem:[#allocation2 + $0x88] sm:$0xff] %v380
  %413 = vst [vmem:[#allocation2 + $0x90] sm:$0xff] %v381
  %414 = vst [vmem:[#allocation2 + $0x98] sm:$0xff] %v382
  %415 = vst [vmem:[#allocation2 + $0xa0] sm:$0xff] %v383
  %416 = vst [vmem:[#allocation2 + $0xa8] sm:$0xff] %v384
  %417 = vst [vmem:[#allocation2 + $0xb0] sm:$0xff] %v385
  %418 = vst [vmem:[#allocation2 + $0xb8] sm:$0xff] %v386
  %419 = vst [vmem:[#allocation2 + $0xc0] sm:$0xff] %v387
  %420 = vst [vmem:[#allocation2 + $0xc8] sm:$0xff] %v388
  %421 = vst [vmem:[#allocation2 + $0xd0] sm:$0xff] %v389
  %422 = vst [vmem:[#allocation2 + $0xd8] sm:$0xff] %v390
  %423 = vst [vmem:[#allocation2 + $0xe0] sm:$0xff] %v391
  %424 = vst [vmem:[#allocation2 + $0xe8] sm:$0xff] %v392
  %425 = vst [vmem:[#allocation2 + $0xf0] sm:$0xff] %v393
  %426 = vst [vmem:[#allocation2 + $0xf8] sm:$0xff] %v394
  // Predicated region
  $region18: #{gcn_forward.3} parent=0 // pred_check
    %p427 = pneg %p14
  $region19: #{gcn_forward.3} parent=0 // pred_check_branch
    %429 = sbr.rel (%p427) target = $region21
  $region20: #{gcn_forward.3} parent=0 // pred_region
    %v430 = vld [vmem:[#allocation2] sm:$0xff]
    %v431 = vld [vmem:[#allocation2 + $0x8] sm:$0xff]
    %v432 = vld [vmem:[#allocation2 + $0x10] sm:$0xff]
    %v433 = vld [vmem:[#allocation2 + $0x18] sm:$0xff]
    %v434 = vld [vmem:[#allocation2 + $0x20] sm:$0xff]
    %v435 = vld [vmem:[#allocation2 + $0x28] sm:$0xff]
    %v436 = vld [vmem:[#allocation2 + $0x30] sm:$0xff]
    %v437 = vld [vmem:[#allocation2 + $0x38] sm:$0xff]
    %v438 = vld [vmem:[#allocation2 + $0x40] sm:$0xff]
    %v439 = vld [vmem:[#allocation2 + $0x48] sm:$0xff]
    %v440 = vld [vmem:[#allocation2 + $0x50] sm:$0xff]
    %v441 = vld [vmem:[#allocation2 + $0x58] sm:$0xff]
    %v442 = vld [vmem:[#allocation2 + $0x60] sm:$0xff]
    %v443 = vld [vmem:[#allocation2 + $0x68] sm:$0xff]
    %v444 = vld [vmem:[#allocation2 + $0x70] sm:$0xff]
    %v445 = vld [vmem:[#allocation2 + $0x78] sm:$0xff]
    %v446 = vld [vmem:[#allocation2 + $0x80] sm:$0xff]
    %v447 = vld [vmem:[#allocation2 + $0x88] sm:$0xff]
    %v448 = vld [vmem:[#allocation2 + $0x90] sm:$0xff]
    %v449 = vld [vmem:[#allocation2 + $0x98] sm:$0xff]
    %v450 = vld [vmem:[#allocation2 + $0xa0] sm:$0xff]
    %v451 = vld [vmem:[#allocation2 + $0xa8] sm:$0xff]
    %v452 = vld [vmem:[#allocation2 + $0xb0] sm:$0xff]
    %v453 = vld [vmem:[#allocation2 + $0xb8] sm:$0xff]
    %v454 = vld [vmem:[#allocation2 + $0xc0] sm:$0xff]
    %v455 = vld [vmem:[#allocation2 + $0xc8] sm:$0xff]
    %v456 = vld [vmem:[#allocation2 + $0xd0] sm:$0xff]
    %v457 = vld [vmem:[#allocation2 + $0xd8] sm:$0xff]
    %v458 = vld [vmem:[#allocation2 + $0xe0] sm:$0xff]
    %v459 = vld [vmem:[#allocation2 + $0xe8] sm:$0xff]
    %v460 = vld [vmem:[#allocation2 + $0xf0] sm:$0xff]
    %v461 = vld [vmem:[#allocation2 + $0xf8] sm:$0xff]
    %v462 = vld [vmem:[%s2] sm:$0xff]
    %v463 = vld [vmem:[%s2 + $0x8] sm:$0xff]
    %v464 = vld [vmem:[%s2 + $0x10] sm:$0xff]
    %v465 = vld [vmem:[%s2 + $0x18] sm:$0xff]
    %v466 = vld [vmem:[%s2 + $0x20] sm:$0xff]
    %v467 = vld [vmem:[%s2 + $0x28] sm:$0xff]
    %v468 = vld [vmem:[%s2 + $0x30] sm:$0xff]
    %v469 = vld [vmem:[%s2 + $0x38] sm:$0xff]
    %v470 = vld [vmem:[%s2 + $0x40] sm:$0xff]
    %v471 = vld [vmem:[%s2 + $0x48] sm:$0xff]
    %v472 = vld [vmem:[%s2 + $0x50] sm:$0xff]
    %v473 = vld [vmem:[%s2 + $0x58] sm:$0xff]
    %v474 = vld [vmem:[%s2 + $0x60] sm:$0xff]
    %v475 = vld [vmem:[%s2 + $0x68] sm:$0xff]
    %v476 = vld [vmem:[%s2 + $0x70] sm:$0xff]
    %v477 = vld [vmem:[%s2 + $0x78] sm:$0xff]
    %v478 = vld [vmem:[%s2 + $0x80] sm:$0xff]
    %v479 = vld [vmem:[%s2 + $0x88] sm:$0xff]
    %v480 = vld [vmem:[%s2 + $0x90] sm:$0xff]
    %v481 = vld [vmem:[%s2 + $0x98] sm:$0xff]
    %v482 = vld [vmem:[%s2 + $0xa0] sm:$0xff]
    %v483 = vld [vmem:[%s2 + $0xa8] sm:$0xff]
    %v484 = vld [vmem:[%s2 + $0xb0] sm:$0xff]
    %v485 = vld [vmem:[%s2 + $0xb8] sm:$0xff]
    %v486 = vld [vmem:[%s2 + $0xc0] sm:$0xff]
    %v487 = vld [vmem:[%s2 + $0xc8] sm:$0xff]
    %v488 = vld [vmem:[%s2 + $0xd0] sm:$0xff]
    %v489 = vld [vmem:[%s2 + $0xd8] sm:$0xff]
    %v490 = vld [vmem:[%s2 + $0xe0] sm:$0xff]
    %v491 = vld [vmem:[%s2 + $0xe8] sm:$0xff]
    %v492 = vld [vmem:[%s2 + $0xf0] sm:$0xff]
    %v493 = vld [vmem:[%s2 + $0xf8] sm:$0xff]
    %495 = vset.pattern.permute.xlu0 0
    %496 = vperm.xlu0 %495, %v462
    %v497 = vpop.permute.xlu0 %496
    %500 = vset.pattern.permute.xlu0 0
    %501 = vperm.xlu0 %500, %v463
    %v502 = vpop.permute.xlu0 %501
    %505 = vset.pattern.permute.xlu0 0
    %506 = vperm.xlu0 %505, %v464
    %v507 = vpop.permute.xlu0 %506
    %510 = vset.pattern.permute.xlu0 0
    %511 = vperm.xlu0 %510, %v465
    %v512 = vpop.permute.xlu0 %511
    %515 = vset.pattern.permute.xlu0 0
    %516 = vperm.xlu0 %515, %v466
    %v517 = vpop.permute.xlu0 %516
    %520 = vset.pattern.permute.xlu0 0
    %521 = vperm.xlu0 %520, %v467
    %v522 = vpop.permute.xlu0 %521
    %525 = vset.pattern.permute.xlu0 0
    %526 = vperm.xlu0 %525, %v468
    %v527 = vpop.permute.xlu0 %526
    %530 = vset.pattern.permute.xlu0 0
    %531 = vperm.xlu0 %530, %v469
    %v532 = vpop.permute.xlu0 %531
    %535 = vset.pattern.permute.xlu0 0
    %536 = vperm.xlu0 %535, %v470
    %v537 = vpop.permute.xlu0 %536
    %540 = vset.pattern.permute.xlu0 0
    %541 = vperm.xlu0 %540, %v471
    %v542 = vpop.permute.xlu0 %541
    %545 = vset.pattern.permute.xlu0 0
    %546 = vperm.xlu0 %545, %v472
    %v547 = vpop.permute.xlu0 %546
    %550 = vset.pattern.permute.xlu0 0
    %551 = vperm.xlu0 %550, %v473
    %v552 = vpop.permute.xlu0 %551
    %555 = vset.pattern.permute.xlu0 0
    %556 = vperm.xlu0 %555, %v474
    %v557 = vpop.permute.xlu0 %556
    %560 = vset.pattern.permute.xlu0 0
    %561 = vperm.xlu0 %560, %v475
    %v562 = vpop.permute.xlu0 %561
    %565 = vset.pattern.permute.xlu0 0
    %566 = vperm.xlu0 %565, %v476
    %v567 = vpop.permute.xlu0 %566
    %570 = vset.pattern.permute.xlu0 0
    %571 = vperm.xlu0 %570, %v477
    %v572 = vpop.permute.xlu0 %571
    %575 = vset.pattern.permute.xlu0 0
    %576 = vperm.xlu0 %575, %v478
    %v577 = vpop.permute.xlu0 %576
    %580 = vset.pattern.permute.xlu0 0
    %581 = vperm.xlu0 %580, %v479
    %v582 = vpop.permute.xlu0 %581
    %585 = vset.pattern.permute.xlu0 0
    %586 = vperm.xlu0 %585, %v480
    %v587 = vpop.permute.xlu0 %586
    %590 = vset.pattern.permute.xlu0 0
    %591 = vperm.xlu0 %590, %v481
    %v592 = vpop.permute.xlu0 %591
    %595 = vset.pattern.permute.xlu0 0
    %596 = vperm.xlu0 %595, %v482
    %v597 = vpop.permute.xlu0 %596
    %600 = vset.pattern.permute.xlu0 0
    %601 = vperm.xlu0 %600, %v483
    %v602 = vpop.permute.xlu0 %601
    %605 = vset.pattern.permute.xlu0 0
    %606 = vperm.xlu0 %605, %v484
    %v607 = vpop.permute.xlu0 %606
    %610 = vset.pattern.permute.xlu0 0
    %611 = vperm.xlu0 %610, %v485
    %v612 = vpop.permute.xlu0 %611
    %615 = vset.pattern.permute.xlu0 0
    %616 = vperm.xlu0 %615, %v486
    %v617 = vpop.permute.xlu0 %616
    %620 = vset.pattern.permute.xlu0 0
    %621 = vperm.xlu0 %620, %v487
    %v622 = vpop.permute.xlu0 %621
    %625 = vset.pattern.permute.xlu0 0
    %626 = vperm.xlu0 %625, %v488
    %v627 = vpop.permute.xlu0 %626
    %630 = vset.pattern.permute.xlu0 0
    %631 = vperm.xlu0 %630, %v489
    %v632 = vpop.permute.xlu0 %631
    %635 = vset.pattern.permute.xlu0 0
    %636 = vperm.xlu0 %635, %v490
    %v637 = vpop.permute.xlu0 %636
    %640 = vset.pattern.permute.xlu0 0
    %641 = vperm.xlu0 %640, %v491
    %v642 = vpop.permute.xlu0 %641
    %645 = vset.pattern.permute.xlu0 0
    %646 = vperm.xlu0 %645, %v492
    %v647 = vpop.permute.xlu0 %646
    %650 = vset.pattern.permute.xlu0 0
    %651 = vperm.xlu0 %650, %v493
    %v652 = vpop.permute.xlu0 %651
    %v654 = vmul.f32 %v430, %v497
    %v655 = vmul.f32 %v431, %v502
    %v656 = vmul.f32 %v432, %v507
    %v657 = vmul.f32 %v433, %v512
    %v658 = vmul.f32 %v434, %v517
    %v659 = vmul.f32 %v435, %v522
    %v660 = vmul.f32 %v436, %v527
    %v661 = vmul.f32 %v437, %v532
    %v662 = vmul.f32 %v438, %v537
    %v663 = vmul.f32 %v439, %v542
    %v664 = vmul.f32 %v440, %v547
    %v665 = vmul.f32 %v441, %v552
    %v666 = vmul.f32 %v442, %v557
    %v667 = vmul.f32 %v443, %v562
    %v668 = vmul.f32 %v444, %v567
    %v669 = vmul.f32 %v445, %v572
    %v670 = vmul.f32 %v446, %v577
    %v671 = vmul.f32 %v447, %v582
    %v672 = vmul.f32 %v448, %v587
    %v673 = vmul.f32 %v449, %v592
    %v674 = vmul.f32 %v450, %v597
    %v675 = vmul.f32 %v451, %v602
    %v676 = vmul.f32 %v452, %v607
    %v677 = vmul.f32 %v453, %v612
    %v678 = vmul.f32 %v454, %v617
    %v679 = vmul.f32 %v455, %v622
    %v680 = vmul.f32 %v456, %v627
    %v681 = vmul.f32 %v457, %v632
    %v682 = vmul.f32 %v458, %v637
    %v683 = vmul.f32 %v459, %v642
    %v684 = vmul.f32 %v460, %v647
    %v685 = vmul.f32 %v461, %v652
    %v686 = vpack.c.bf16 %v654, %v654
    %v687 = vpack.c.bf16 %v655, %v655
    %v688 = vpack.c.bf16 %v656, %v656
    %v689 = vpack.c.bf16 %v657, %v657
    %v690 = vpack.c.bf16 %v658, %v658
    %v691 = vpack.c.bf16 %v659, %v659
    %v692 = vpack.c.bf16 %v660, %v660
    %v693 = vpack.c.bf16 %v661, %v661
    %v694 = vpack.c.bf16 %v662, %v662
    %v695 = vpack.c.bf16 %v663, %v663
    %v696 = vpack.c.bf16 %v664, %v664
    %v697 = vpack.c.bf16 %v665, %v665
    %v698 = vpack.c.bf16 %v666, %v666
    %v699 = vpack.c.bf16 %v667, %v667
    %v700 = vpack.c.bf16 %v668, %v668
    %v701 = vpack.c.bf16 %v669, %v669
    %v702 = vpack.c.bf16 %v670, %v670
    %v703 = vpack.c.bf16 %v671, %v671
    %v704 = vpack.c.bf16 %v672, %v672
    %v705 = vpack.c.bf16 %v673, %v673
    %v706 = vpack.c.bf16 %v674, %v674
    %v707 = vpack.c.bf16 %v675, %v675
    %v708 = vpack.c.bf16 %v676, %v676
    %v709 = vpack.c.bf16 %v677, %v677
    %v710 = vpack.c.bf16 %v678, %v678
    %v711 = vpack.c.bf16 %v679, %v679
    %v712 = vpack.c.bf16 %v680, %v680
    %v713 = vpack.c.bf16 %v681, %v681
    %v714 = vpack.c.bf16 %v682, %v682
    %v715 = vpack.c.bf16 %v683, %v683
    %v716 = vpack.c.bf16 %v684, %v684
    %v717 = vpack.c.bf16 %v685, %v685
    %718 = vst [vmem:[%s3] sm:$0xf] %v686
    %719 = vst [vmem:[%s3 + $0x4] sm:$0xf] %v687
    %720 = vst [vmem:[%s3 + $0x8] sm:$0xf] %v688
    %721 = vst [vmem:[%s3 + $0xc] sm:$0xf] %v689
    %722 = vst [vmem:[%s3 + $0x10] sm:$0xf] %v690
    %723 = vst [vmem:[%s3 + $0x14] sm:$0xf] %v691
    %724 = vst [vmem:[%s3 + $0x18] sm:$0xf] %v692
    %725 = vst [vmem:[%s3 + $0x1c] sm:$0xf] %v693
    %726 = vst [vmem:[%s3 + $0x20] sm:$0xf] %v694
    %727 = vst [vmem:[%s3 + $0x24] sm:$0xf] %v695
    %728 = vst [vmem:[%s3 + $0x28] sm:$0xf] %v696
    %729 = vst [vmem:[%s3 + $0x2c] sm:$0xf] %v697
    %730 = vst [vmem:[%s3 + $0x30] sm:$0xf] %v698
    %731 = vst [vmem:[%s3 + $0x34] sm:$0xf] %v699
    %732 = vst [vmem:[%s3 + $0x38] sm:$0xf] %v700
    %733 = vst [vmem:[%s3 + $0x3c] sm:$0xf] %v701
    %734 = vst [vmem:[%s3 + $0x40] sm:$0xf] %v702
    %735 = vst [vmem:[%s3 + $0x44] sm:$0xf] %v703
    %736 = vst [vmem:[%s3 + $0x48] sm:$0xf] %v704
    %737 = vst [vmem:[%s3 + $0x4c] sm:$0xf] %v705
    %738 = vst [vmem:[%s3 + $0x50] sm:$0xf] %v706
    %739 = vst [vmem:[%s3 + $0x54] sm:$0xf] %v707
    %740 = vst [vmem:[%s3 + $0x58] sm:$0xf] %v708
    %741 = vst [vmem:[%s3 + $0x5c] sm:$0xf] %v709
    %742 = vst [vmem:[%s3 + $0x60] sm:$0xf] %v710
    %743 = vst [vmem:[%s3 + $0x64] sm:$0xf] %v711
    %744 = vst [vmem:[%s3 + $0x68] sm:$0xf] %v712
    %745 = vst [vmem:[%s3 + $0x6c] sm:$0xf] %v713
    %746 = vst [vmem:[%s3 + $0x70] sm:$0xf] %v714
    %747 = vst [vmem:[%s3 + $0x74] sm:$0xf] %v715
    %748 = vst [vmem:[%s3 + $0x78] sm:$0xf] %v716
    %749 = vst [vmem:[%s3 + $0x7c] sm:$0xf] %v717
  $region21: #{gcn_forward.3} parent=0 // pred_fallthru
    _
  // Predicated region
  $region22: #{gcn_forward.3} parent=0 // pred_check
    _
  $region23: #{gcn_forward.3} parent=0 // pred_check_branch
    %751 = sbr.rel (0) target = $region25
  $region24: #{gcn_forward.3} parent=0 // pred_region
    _
  $region25: #{gcn_forward.3} parent=0 // pred_fallthru
    _
  // Predicated region
  $region26: #{gcn_forward.3} parent=0 // pred_check
    _
  $region27: #{gcn_forward.3} parent=0 // pred_check_branch
    %753 = sbr.rel (0) target = $region29
  $region28: #{gcn_forward.3} parent=0 // pred_region
    _
  $region29: #{gcn_forward.3} parent=0 // pred_fallthru
    _

// kernel: gcn_forward.4
$region0: #{gcn_forward.4}
  #allocation0 [shape = 'u32[]', space=smem, size = 0x4, offset = 0x4, fixed_abs, tag = 'smem constant byte address 0x4 - core index']
  #allocation1 [shape = 'u32[72,128]{1,0:T(1,128)}', space=vmem, size = 0x9000, scoped, tag = 'internal scratch']
  #allocation2 [shape = 'f32[256,128]{1,0:T(8,128)}', space=vmem, size = 0x20000, scoped, tag = 'scratch operand']
  %s0 = inlined_call_operand.vmem [shape: s8[256,256], index: 0, kind: input, shape index: {}]
  %s1 = inlined_call_operand.vmem [shape: bf16[256,128], index: 1, kind: input, shape index: {}]
  %s2 = inlined_call_operand.vmem [shape: f32[256,1], index: 2, kind: input, shape index: {}]
  %s3 = inlined_call_operand.vmem [shape: f32[1,128], index: 3, kind: input, shape index: {}]
  %s4 = inlined_call_operand.vmem [shape: bf16[128,128], index: 4, kind: input, shape index: {}]
  %s5 = inlined_call_operand.vmem [shape: bf16[256,128], index: 5, kind: output, shape index: {}]
  %s6 = sld [smem:[#allocation0]]
  $region38: #{gcn_forward.4} parent=0
    _
  %s8 = ssub.s32 1, %s6
  %s9 = scalar_select 0, %s8, %s6
  // Predicated region
  $region2: #{gcn_forward.4} parent=0 // pred_check
    _
  $region3: #{gcn_forward.4} parent=0 // pred_check_branch
    %11 = sbr.rel (0) target = $region5
  $region4: #{gcn_forward.4} parent=0 // pred_region
    _
  $region5: #{gcn_forward.4} parent=0 // pred_fallthru
    _
  // Predicated region
  $region6: #{gcn_forward.4} parent=0 // pred_check
    _
  $region7: #{gcn_forward.4} parent=0 // pred_check_branch
    %13 = sbr.rel (0) target = $region9
  $region8: #{gcn_forward.4} parent=0 // pred_region
    _
  $region9: #{gcn_forward.4} parent=0 // pred_fallthru
    _
  // Predicated region
  $region10: #{gcn_forward.4} parent=0 // pred_check
    _
  $region11: #{gcn_forward.4} parent=0 // pred_check_branch
    %15 = sbr.rel (0) target = $region13
  $region12: #{gcn_forward.4} parent=0 // pred_region
    _
  $region13: #{gcn_forward.4} parent=0 // pred_fallthru
    _
  // Predicated region
  $region14: #{gcn_forward.4} parent=0 // pred_check
    _
  $region15: #{gcn_forward.4} parent=0 // pred_check_branch
    %17 = sbr.rel (0) target = $region17
  $region16: #{gcn_forward.4} parent=0 // pred_region
    _
  $region17: #{gcn_forward.4} parent=0 // pred_fallthru
    _
  // Predicated region
  $region18: #{gcn_forward.4} parent=0 // pred_check
    _
  $region19: #{gcn_forward.4} parent=0 // pred_check_branch
    %19 = sbr.rel (0) target = $region21
  $region20: #{gcn_forward.4} parent=0 // pred_region
    _
  $region21: #{gcn_forward.4} parent=0 // pred_fallthru
    _
  %p20 = scmp.eq.s32.totalorder 0, 0
  // Predicated region
  $region22: #{gcn_forward.4} parent=0 // pred_check
    %p21 = pneg %p20
  $region23: #{gcn_forward.4} parent=0 // pred_check_branch
    %23 = sbr.rel (%p21) target = $region25
  $region24: #{gcn_forward.4} parent=0 // pred_region
    %24 = vst [vmem:[#allocation2] sm:$0xff] 0.0
    %25 = vst [vmem:[#allocation2 + $0x8] sm:$0xff] 0.0
    %26 = vst [vmem:[#allocation2 + $0x10] sm:$0xff] 0.0
    %27 = vst [vmem:[#allocation2 + $0x18] sm:$0xff] 0.0
    %28 = vst [vmem:[#allocation2 + $0x20] sm:$0xff] 0.0
    %29 = vst [vmem:[#allocation2 + $0x28] sm:$0xff] 0.0
    %30 = vst [vmem:[#allocation2 + $0x30] sm:$0xff] 0.0
    %31 = vst [vmem:[#allocation2 + $0x38] sm:$0xff] 0.0
    %32 = vst [vmem:[#allocation2 + $0x40] sm:$0xff] 0.0
    %33 = vst [vmem:[#allocation2 + $0x48] sm:$0xff] 0.0
    %34 = vst [vmem:[#allocation2 + $0x50] sm:$0xff] 0.0
    %35 = vst [vmem:[#allocation2 + $0x58] sm:$0xff] 0.0
    %36 = vst [vmem:[#allocation2 + $0x60] sm:$0xff] 0.0
    %37 = vst [vmem:[#allocation2 + $0x68] sm:$0xff] 0.0
    %38 = vst [vmem:[#allocation2 + $0x70] sm:$0xff] 0.0
    %39 = vst [vmem:[#allocation2 + $0x78] sm:$0xff] 0.0
    %40 = vst [vmem:[#allocation2 + $0x80] sm:$0xff] 0.0
    %41 = vst [vmem:[#allocation2 + $0x88] sm:$0xff] 0.0
    %42 = vst [vmem:[#allocation2 + $0x90] sm:$0xff] 0.0
    %43 = vst [vmem:[#allocation2 + $0x98] sm:$0xff] 0.0
    %44 = vst [vmem:[#allocation2 + $0xa0] sm:$0xff] 0.0
    %45 = vst [vmem:[#allocation2 + $0xa8] sm:$0xff] 0.0
    %46 = vst [vmem:[#allocation2 + $0xb0] sm:$0xff] 0.0
    %47 = vst [vmem:[#allocation2 + $0xb8] sm:$0xff] 0.0
    %48 = vst [vmem:[#allocation2 + $0xc0] sm:$0xff] 0.0
    %49 = vst [vmem:[#allocation2 + $0xc8] sm:$0xff] 0.0
    %50 = vst [vmem:[#allocation2 + $0xd0] sm:$0xff] 0.0
    %51 = vst [vmem:[#allocation2 + $0xd8] sm:$0xff] 0.0
    %52 = vst [vmem:[#allocation2 + $0xe0] sm:$0xff] 0.0
    %53 = vst [vmem:[#allocation2 + $0xe8] sm:$0xff] 0.0
    %54 = vst [vmem:[#allocation2 + $0xf0] sm:$0xff] 0.0
    %55 = vst [vmem:[#allocation2 + $0xf8] sm:$0xff] 0.0
  $region25: #{gcn_forward.4} parent=0 // pred_fallthru
    _
  %v56 = vld [vmem:[%s0] sm:$0xff]
  %v57 = vld [vmem:[%s0 + $0x8] sm:$0xff]
  %v58 = vld [vmem:[%s0 + $0x10] sm:$0xff]
  %v59 = vld [vmem:[%s0 + $0x18] sm:$0xff]
  %v60 = vld [vmem:[%s0 + $0x20] sm:$0xff]
  %v61 = vld [vmem:[%s0 + $0x28] sm:$0xff]
  %v62 = vld [vmem:[%s0 + $0x30] sm:$0xff]
  %v63 = vld [vmem:[%s0 + $0x38] sm:$0xff]
  %v64 = vld [vmem:[%s0 + $0x40] sm:$0xff]
  %v65 = vld [vmem:[%s0 + $0x48] sm:$0xff]
  %v66 = vld [vmem:[%s0 + $0x50] sm:$0xff]
  %v67 = vld [vmem:[%s0 + $0x58] sm:$0xff]
  %v68 = vld [vmem:[%s0 + $0x60] sm:$0xff]
  %v69 = vld [vmem:[%s0 + $0x68] sm:$0xff]
  %v70 = vld [vmem:[%s0 + $0x70] sm:$0xff]
  %v71 = vld [vmem:[%s0 + $0x78] sm:$0xff]
  %v72 = vunpack.c.0.s8 %v56
  %v73 = vunpack.c.0.s8 %v57
  %v74 = vunpack.c.1.s8 %v56
  %v75 = vunpack.c.1.s8 %v57
  %v76 = vunpack.c.2.s8 %v56
  %v77 = vunpack.c.2.s8 %v57
  %v78 = vunpack.c.3.s8 %v56
  %v79 = vunpack.c.3.s8 %v57
  %v80 = vunpack.c.0.s8 %v58
  %v81 = vunpack.c.0.s8 %v59
  %v82 = vunpack.c.1.s8 %v58
  %v83 = vunpack.c.1.s8 %v59
  %v84 = vunpack.c.2.s8 %v58
  %v85 = vunpack.c.2.s8 %v59
  %v86 = vunpack.c.3.s8 %v58
  %v87 = vunpack.c.3.s8 %v59
  %v88 = vunpack.c.0.s8 %v60
  %v89 = vunpack.c.0.s8 %v61
  %v90 = vunpack.c.1.s8 %v60
  %v91 = vunpack.c.1.s8 %v61
  %v92 = vunpack.c.2.s8 %v60
  %v93 = vunpack.c.2.s8 %v61
  %v94 = vunpack.c.3.s8 %v60
  %v95 = vunpack.c.3.s8 %v61
  %v96 = vunpack.c.0.s8 %v62
  %v97 = vunpack.c.0.s8 %v63
  %v98 = vunpack.c.1.s8 %v62
  %v99 = vunpack.c.1.s8 %v63
  %v100 = vunpack.c.2.s8 %v62
  %v101 = vunpack.c.2.s8 %v63
  %v102 = vunpack.c.3.s8 %v62
  %v103 = vunpack.c.3.s8 %v63
  %v104 = vunpack.c.0.s8 %v64
  %v105 = vunpack.c.0.s8 %v65
  %v106 = vunpack.c.1.s8 %v64
  %v107 = vunpack.c.1.s8 %v65
  %v108 = vunpack.c.2.s8 %v64
  %v109 = vunpack.c.2.s8 %v65
  %v110 = vunpack.c.3.s8 %v64
  %v111 = vunpack.c.3.s8 %v65
  %v112 = vunpack.c.0.s8 %v66
  %v113 = vunpack.c.0.s8 %v67
  %v114 = vunpack.c.1.s8 %v66
  %v115 = vunpack.c.1.s8 %v67
  %v116 = vunpack.c.2.s8 %v66
  %v117 = vunpack.c.2.s8 %v67
  %v118 = vunpack.c.3.s8 %v66
  %v119 = vunpack.c.3.s8 %v67
  %v120 = vunpack.c.0.s8 %v68
  %v121 = vunpack.c.0.s8 %v69
  %v122 = vunpack.c.1.s8 %v68
  %v123 = vunpack.c.1.s8 %v69
  %v124 = vunpack.c.2.s8 %v68
  %v125 = vunpack.c.2.s8 %v69
  %v126 = vunpack.c.3.s8 %v68
  %v127 = vunpack.c.3.s8 %v69
  %v128 = vunpack.c.0.s8 %v70
  %v129 = vunpack.c.0.s8 %v71
  %v130 = vunpack.c.1.s8 %v70
  %v131 = vunpack.c.1.s8 %v71
  %v132 = vunpack.c.2.s8 %v70
  %v133 = vunpack.c.2.s8 %v71
  %v134 = vunpack.c.3.s8 %v70
  %v135 = vunpack.c.3.s8 %v71
  %v136 = vcvt.s32.f32 %v72
  %v137 = vcvt.s32.f32 %v73
  %v138 = vcvt.s32.f32 %v74
  %v139 = vcvt.s32.f32 %v75
  %v140 = vcvt.s32.f32 %v76
  %v141 = vcvt.s32.f32 %v77
  %v142 = vcvt.s32.f32 %v78
  %v143 = vcvt.s32.f32 %v79
  %v144 = vcvt.s32.f32 %v80
  %v145 = vcvt.s32.f32 %v81
  %v146 = vcvt.s32.f32 %v82
  %v147 = vcvt.s32.f32 %v83
  %v148 = vcvt.s32.f32 %v84
  %v149 = vcvt.s32.f32 %v85
  %v150 = vcvt.s32.f32 %v86
  %v151 = vcvt.s32.f32 %v87
  %v152 = vcvt.s32.f32 %v88
  %v153 = vcvt.s32.f32 %v89
  %v154 = vcvt.s32.f32 %v90
  %v155 = vcvt.s32.f32 %v91
  %v156 = vcvt.s32.f32 %v92
  %v157 = vcvt.s32.f32 %v93
  %v158 = vcvt.s32.f32 %v94
  %v159 = vcvt.s32.f32 %v95
  %v160 = vcvt.s32.f32 %v96
  %v161 = vcvt.s32.f32 %v97
  %v162 = vcvt.s32.f32 %v98
  %v163 = vcvt.s32.f32 %v99
  %v164 = vcvt.s32.f32 %v100
  %v165 = vcvt.s32.f32 %v101
  %v166 = vcvt.s32.f32 %v102
  %v167 = vcvt.s32.f32 %v103
  %v168 = vcvt.s32.f32 %v104
  %v169 = vcvt.s32.f32 %v105
  %v170 = vcvt.s32.f32 %v106
  %v171 = vcvt.s32.f32 %v107
  %v172 = vcvt.s32.f32 %v108
  %v173 = vcvt.s32.f32 %v109
  %v174 = vcvt.s32.f32 %v110
  %v175 = vcvt.s32.f32 %v111
  %v176 = vcvt.s32.f32 %v112
  %v177 = vcvt.s32.f32 %v113
  %v178 = vcvt.s32.f32 %v114
  %v179 = vcvt.s32.f32 %v115
  %v180 = vcvt.s32.f32 %v116
  %v181 = vcvt.s32.f32 %v117
  %v182 = vcvt.s32.f32 %v118
  %v183 = vcvt.s32.f32 %v119
  %v184 = vcvt.s32.f32 %v120
  %v185 = vcvt.s32.f32 %v121
  %v186 = vcvt.s32.f32 %v122
  %v187 = vcvt.s32.f32 %v123
  %v188 = vcvt.s32.f32 %v124
  %v189 = vcvt.s32.f32 %v125
  %v190 = vcvt.s32.f32 %v126
  %v191 = vcvt.s32.f32 %v127
  %v192 = vcvt.s32.f32 %v128
  %v193 = vcvt.s32.f32 %v129
  %v194 = vcvt.s32.f32 %v130
  %v195 = vcvt.s32.f32 %v131
  %v196 = vcvt.s32.f32 %v132
  %v197 = vcvt.s32.f32 %v133
  %v198 = vcvt.s32.f32 %v134
  %v199 = vcvt.s32.f32 %v135
  %v200 = vpack.c.bf16 %v138, %v136
  %v201 = vpack.c.bf16 %v139, %v137
  %v202 = vpack.c.bf16 %v142, %v140
  %v203 = vpack.c.bf16 %v143, %v141
  %v204 = vpack.c.bf16 %v146, %v144
  %v205 = vpack.c.bf16 %v147, %v145
  %v206 = vpack.c.bf16 %v150, %v148
  %v207 = vpack.c.bf16 %v151, %v149
  %v208 = vpack.c.bf16 %v154, %v152
  %v209 = vpack.c.bf16 %v155, %v153
  %v210 = vpack.c.bf16 %v158, %v156
  %v211 = vpack.c.bf16 %v159, %v157
  %v212 = vpack.c.bf16 %v162, %v160
  %v213 = vpack.c.bf16 %v163, %v161
  %v214 = vpack.c.bf16 %v166, %v164
  %v215 = vpack.c.bf16 %v167, %v165
  %v216 = vpack.c.bf16 %v170, %v168
  %v217 = vpack.c.bf16 %v171, %v169
  %v218 = vpack.c.bf16 %v174, %v172
  %v219 = vpack.c.bf16 %v175, %v173
  %v220 = vpack.c.bf16 %v178, %v176
  %v221 = vpack.c.bf16 %v179, %v177
  %v222 = vpack.c.bf16 %v182, %v180
  %v223 = vpack.c.bf16 %v183, %v181
  %v224 = vpack.c.bf16 %v186, %v184
  %v225 = vpack.c.bf16 %v187, %v185
  %v226 = vpack.c.bf16 %v190, %v188
  %v227 = vpack.c.bf16 %v191, %v189
  %v228 = vpack.c.bf16 %v194, %v192
  %v229 = vpack.c.bf16 %v195, %v193
  %v230 = vpack.c.bf16 %v198, %v196
  %v231 = vpack.c.bf16 %v199, %v197
  %s232 = smul.u32 0, 256
  %s233 = sshra.s32 %s232, 3
  %s234 = sand.u32 %s232, 7
  %s235 = smul.addr %s233, 4
  %s236 = scalar_lea.vmem %s1, %s235
  %v237 = vld [vmem:[%s236] sm:$0xf]
  %v238 = vld [vmem:[%s236 + $0x4] sm:$0xf]
  %v239 = vld [vmem:[%s236 + $0x8] sm:$0xf]
  %v240 = vld [vmem:[%s236 + $0xc] sm:$0xf]
  %v241 = vld [vmem:[%s236 + $0x10] sm:$0xf]
  %v242 = vld [vmem:[%s236 + $0x14] sm:$0xf]
  %v243 = vld [vmem:[%s236 + $0x18] sm:$0xf]
  %v244 = vld [vmem:[%s236 + $0x1c] sm:$0xf]
  %v245 = vld [vmem:[%s236 + $0x20] sm:$0xf]
  %v246 = vld [vmem:[%s236 + $0x24] sm:$0xf]
  %v247 = vld [vmem:[%s236 + $0x28] sm:$0xf]
  %v248 = vld [vmem:[%s236 + $0x2c] sm:$0xf]
  %v249 = vld [vmem:[%s236 + $0x30] sm:$0xf]
  %v250 = vld [vmem:[%s236 + $0x34] sm:$0xf]
  %v251 = vld [vmem:[%s236 + $0x38] sm:$0xf]
  %v252 = vld [vmem:[%s236 + $0x3c] sm:$0xf]
  %v253 = vld [vmem:[%s236 + $0x40] sm:$0xf]
  %v254 = vld [vmem:[%s236 + $0x44] sm:$0xf]
  %v255 = vld [vmem:[%s236 + $0x48] sm:$0xf]
  %v256 = vld [vmem:[%s236 + $0x4c] sm:$0xf]
  %v257 = vld [vmem:[%s236 + $0x50] sm:$0xf]
  %v258 = vld [vmem:[%s236 + $0x54] sm:$0xf]
  %v259 = vld [vmem:[%s236 + $0x58] sm:$0xf]
  %v260 = vld [vmem:[%s236 + $0x5c] sm:$0xf]
  %v261 = vld [vmem:[%s236 + $0x60] sm:$0xf]
  %v262 = vld [vmem:[%s236 + $0x64] sm:$0xf]
  %v263 = vld [vmem:[%s236 + $0x68] sm:$0xf]
  %v264 = vld [vmem:[%s236 + $0x6c] sm:$0xf]
  %v265 = vld [vmem:[%s236 + $0x70] sm:$0xf]
  %v266 = vld [vmem:[%s236 + $0x74] sm:$0xf]
  %v267 = vld [vmem:[%s236 + $0x78] sm:$0xf]
  %v268 = vld [vmem:[%s236 + $0x7c] sm:$0xf]
  %v269 = vld [vmem:[#allocation2] sm:$0xff]
  %v270 = vld [vmem:[#allocation2 + $0x8] sm:$0xff]
  %v271 = vld [vmem:[#allocation2 + $0x10] sm:$0xff]
  %v272 = vld [vmem:[#allocation2 + $0x18] sm:$0xff]
  %v273 = vld [vmem:[#allocation2 + $0x20] sm:$0xff]
  %v274 = vld [vmem:[#allocation2 + $0x28] sm:$0xff]
  %v275 = vld [vmem:[#allocation2 + $0x30] sm:$0xff]
  %v276 = vld [vmem:[#allocation2 + $0x38] sm:$0xff]
  %v277 = vld [vmem:[#allocation2 + $0x40] sm:$0xff]
  %v278 = vld [vmem:[#allocation2 + $0x48] sm:$0xff]
  %v279 = vld [vmem:[#allocation2 + $0x50] sm:$0xff]
  %v280 = vld [vmem:[#allocation2 + $0x58] sm:$0xff]
  %v281 = vld [vmem:[#allocation2 + $0x60] sm:$0xff]
  %v282 = vld [vmem:[#allocation2 + $0x68] sm:$0xff]
  %v283 = vld [vmem:[#allocation2 + $0x70] sm:$0xff]
  %v284 = vld [vmem:[#allocation2 + $0x78] sm:$0xff]
  %v285 = vld [vmem:[#allocation2 + $0x80] sm:$0xff]
  %v286 = vld [vmem:[#allocation2 + $0x88] sm:$0xff]
  %v287 = vld [vmem:[#allocation2 + $0x90] sm:$0xff]
  %v288 = vld [vmem:[#allocation2 + $0x98] sm:$0xff]
  %v289 = vld [vmem:[#allocation2 + $0xa0] sm:$0xff]
  %v290 = vld [vmem:[#allocation2 + $0xa8] sm:$0xff]
  %v291 = vld [vmem:[#allocation2 + $0xb0] sm:$0xff]
  %v292 = vld [vmem:[#allocation2 + $0xb8] sm:$0xff]
  %v293 = vld [vmem:[#allocation2 + $0xc0] sm:$0xff]
  %v294 = vld [vmem:[#allocation2 + $0xc8] sm:$0xff]
  %v295 = vld [vmem:[#allocation2 + $0xd0] sm:$0xff]
  %v296 = vld [vmem:[#allocation2 + $0xd8] sm:$0xff]
  %v297 = vld [vmem:[#allocation2 + $0xe0] sm:$0xff]
  %v298 = vld [vmem:[#allocation2 + $0xe8] sm:$0xff]
  %v299 = vld [vmem:[#allocation2 + $0xf0] sm:$0xff]
  %v300 = vld [vmem:[#allocation2 + $0xf8] sm:$0xff]
  %v333 = vunpack.c.l.b16 %v237
  %v334 = vunpack.c.l.b16 %v238
  %v335 = vunpack.c.l.b16 %v239
  %v336 = vunpack.c.l.b16 %v240
  %v337 = vunpack.c.l.b16 %v241
  %v338 = vunpack.c.l.b16 %v242
  %v339 = vunpack.c.l.b16 %v243
  %v340 = vunpack.c.l.b16 %v244
  %v341 = vunpack.c.l.b16 %v245
  %v342 = vunpack.c.l.b16 %v246
  %v343 = vunpack.c.l.b16 %v247
  %v344 = vunpack.c.l.b16 %v248
  %v345 = vunpack.c.l.b16 %v249
  %v346 = vunpack.c.l.b16 %v250
  %v347 = vunpack.c.l.b16 %v251
  %v348 = vunpack.c.l.b16 %v252
  %v349 = vunpack.c.l.b16 %v253
  %v350 = vunpack.c.l.b16 %v254
  %v351 = vunpack.c.l.b16 %v255
  %v352 = vunpack.c.l.b16 %v256
  %v353 = vunpack.c.l.b16 %v257
  %v354 = vunpack.c.l.b16 %v258
  %v355 = vunpack.c.l.b16 %v259
  %v356 = vunpack.c.l.b16 %v260
  %v357 = vunpack.c.l.b16 %v261
  %v358 = vunpack.c.l.b16 %v262
  %v359 = vunpack.c.l.b16 %v263
  %v360 = vunpack.c.l.b16 %v264
  %v361 = vunpack.c.l.b16 %v265
  %v362 = vunpack.c.l.b16 %v266
  %v363 = vunpack.c.l.b16 %v267
  %v364 = vunpack.c.l.b16 %v268
  %v365 = vpack.c.b16 %v334, %v333
  %v366 = vpack.c.b16 %v336, %v335
  %v367 = vpack.c.b16 %v338, %v337
  %v368 = vpack.c.b16 %v340, %v339
  %v369 = vpack.c.b16 %v342, %v341
  %v370 = vpack.c.b16 %v344, %v343
  %v371 = vpack.c.b16 %v346, %v345
  %v372 = vpack.c.b16 %v348, %v347
  %v373 = vpack.c.b16 %v350, %v349
  %v374 = vpack.c.b16 %v352, %v351
  %v375 = vpack.c.b16 %v354, %v353
  %v376 = vpack.c.b16 %v356, %v355
  %v377 = vpack.c.b16 %v358, %v357
  %v378 = vpack.c.b16 %v360, %v359
  %v379 = vpack.c.b16 %v362, %v361
  %v380 = vpack.c.b16 %v364, %v363
  %397 = vmatpush.bf16.msra.mxu0 %v372
  %398 = vmatpush.bf16.msra.mxu0 %v371
  %399 = vmatpush.bf16.msra.mxu0 %v370
  %400 = vmatpush.bf16.msra.mxu0 %v369
  %401 = vmatpush.bf16.msra.mxu0 %v368
  %402 = vmatpush.bf16.msra.mxu0 %v367
  %403 = vmatpush.bf16.msra.mxu0 %v366
  %404 = vmatpush.bf16.msra.mxu0 %v365
  %405 = vmatmul.bf16.gmra.mxu0 %v200
  %v406 = vpop.f32.mrf.mxu0
  %v407 = vadd.f32 0.0, %v406
  %v408 = vpop.f32.mrf.mxu0
  %v409 = vadd.f32 0.0, %v408
  %410 = vmatmul.bf16.gmra.mxu0 %v202
  %v411 = vpop.f32.mrf.mxu0
  %v412 = vadd.f32 0.0, %v411
  %v413 = vpop.f32.mrf.mxu0
  %v414 = vadd.f32 0.0, %v413
  %415 = vmatmul.bf16.gmra.mxu0 %v204
  %v416 = vpop.f32.mrf.mxu0
  %v417 = vadd.f32 0.0, %v416
  %v418 = vpop.f32.mrf.mxu0
  %v419 = vadd.f32 0.0, %v418
  %420 = vmatmul.bf16.gmra.mxu0 %v206
  %v421 = vpop.f32.mrf.mxu0
  %v422 = vadd.f32 0.0, %v421
  %v423 = vpop.f32.mrf.mxu0
  %v424 = vadd.f32 0.0, %v423
  %425 = vmatmul.bf16.gmra.mxu0 %v208
  %v426 = vpop.f32.mrf.mxu0
  %v427 = vadd.f32 0.0, %v426
  %v428 = vpop.f32.mrf.mxu0
  %v429 = vadd.f32 0.0, %v428
  %430 = vmatmul.bf16.gmra.mxu0 %v210
  %v431 = vpop.f32.mrf.mxu0
  %v432 = vadd.f32 0.0, %v431
  %v433 = vpop.f32.mrf.mxu0
  %v434 = vadd.f32 0.0, %v433
  %435 = vmatmul.bf16.gmra.mxu0 %v212
  %v436 = vpop.f32.mrf.mxu0
  %v437 = vadd.f32 0.0, %v436
  %v438 = vpop.f32.mrf.mxu0
  %v439 = vadd.f32 0.0, %v438
  %440 = vmatmul.bf16.gmra.mxu0 %v214
  %v441 = vpop.f32.mrf.mxu0
  %v442 = vadd.f32 0.0, %v441
  %v443 = vpop.f32.mrf.mxu0
  %v444 = vadd.f32 0.0, %v443
  %445 = vmatmul.bf16.gmra.mxu0 %v216
  %v446 = vpop.f32.mrf.mxu0
  %v447 = vadd.f32 0.0, %v446
  %v448 = vpop.f32.mrf.mxu0
  %v449 = vadd.f32 0.0, %v448
  %450 = vmatmul.bf16.gmra.mxu0 %v218
  %v451 = vpop.f32.mrf.mxu0
  %v452 = vadd.f32 0.0, %v451
  %v453 = vpop.f32.mrf.mxu0
  %v454 = vadd.f32 0.0, %v453
  %455 = vmatmul.bf16.gmra.mxu0 %v220
  %v456 = vpop.f32.mrf.mxu0
  %v457 = vadd.f32 0.0, %v456
  %v458 = vpop.f32.mrf.mxu0
  %v459 = vadd.f32 0.0, %v458
  %460 = vmatmul.bf16.gmra.mxu0 %v222
  %v461 = vpop.f32.mrf.mxu0
  %v462 = vadd.f32 0.0, %v461
  %v463 = vpop.f32.mrf.mxu0
  %v464 = vadd.f32 0.0, %v463
  %465 = vmatmul.bf16.gmra.mxu0 %v224
  %v466 = vpop.f32.mrf.mxu0
  %v467 = vadd.f32 0.0, %v466
  %v468 = vpop.f32.mrf.mxu0
  %v469 = vadd.f32 0.0, %v468
  %470 = vmatmul.bf16.gmra.mxu0 %v226
  %v471 = vpop.f32.mrf.mxu0
  %v472 = vadd.f32 0.0, %v471
  %v473 = vpop.f32.mrf.mxu0
  %v474 = vadd.f32 0.0, %v473
  %475 = vmatmul.bf16.gmra.mxu0 %v228
  %v476 = vpop.f32.mrf.mxu0
  %v477 = vadd.f32 0.0, %v476
  %v478 = vpop.f32.mrf.mxu0
  %v479 = vadd.f32 0.0, %v478
  %480 = vmatmul.bf16.gmra.mxu0 %v230
  %v481 = vpop.f32.mrf.mxu0
  %v482 = vadd.f32 0.0, %v481
  %v483 = vpop.f32.mrf.mxu0
  %v484 = vadd.f32 0.0, %v483
  %485 = vdwg.mxu0
  %486 = vmatpush.bf16.msra.mxu0 %v380
  %487 = vmatpush.bf16.msra.mxu0 %v379
  %488 = vmatpush.bf16.msra.mxu0 %v378
  %489 = vmatpush.bf16.msra.mxu0 %v377
  %490 = vmatpush.bf16.msra.mxu0 %v376
  %491 = vmatpush.bf16.msra.mxu0 %v375
  %492 = vmatpush.bf16.msra.mxu0 %v374
  %493 = vmatpush.bf16.msra.mxu0 %v373
  %494 = vmatmul.bf16.gmra.mxu0 %v201
  %v495 = vpop.f32.mrf.mxu0
  %v496 = vadd.f32 %v407, %v495
  %v497 = vpop.f32.mrf.mxu0
  %v498 = vadd.f32 %v409, %v497
  %499 = vmatmul.bf16.gmra.mxu0 %v203
  %v500 = vpop.f32.mrf.mxu0
  %v501 = vadd.f32 %v412, %v500
  %v502 = vpop.f32.mrf.mxu0
  %v503 = vadd.f32 %v414, %v502
  %504 = vmatmul.bf16.gmra.mxu0 %v205
  %v505 = vpop.f32.mrf.mxu0
  %v506 = vadd.f32 %v417, %v505
  %v507 = vpop.f32.mrf.mxu0
  %v508 = vadd.f32 %v419, %v507
  %509 = vmatmul.bf16.gmra.mxu0 %v207
  %v510 = vpop.f32.mrf.mxu0
  %v511 = vadd.f32 %v422, %v510
  %v512 = vpop.f32.mrf.mxu0
  %v513 = vadd.f32 %v424, %v512
  %514 = vmatmul.bf16.gmra.mxu0 %v209
  %v515 = vpop.f32.mrf.mxu0
  %v516 = vadd.f32 %v427, %v515
  %v517 = vpop.f32.mrf.mxu0
  %v518 = vadd.f32 %v429, %v517
  %519 = vmatmul.bf16.gmra.mxu0 %v211
  %v520 = vpop.f32.mrf.mxu0
  %v521 = vadd.f32 %v432, %v520
  %v522 = vpop.f32.mrf.mxu0
  %v523 = vadd.f32 %v434, %v522
  %524 = vmatmul.bf16.gmra.mxu0 %v213
  %v525 = vpop.f32.mrf.mxu0
  %v526 = vadd.f32 %v437, %v525
  %v527 = vpop.f32.mrf.mxu0
  %v528 = vadd.f32 %v439, %v527
  %529 = vmatmul.bf16.gmra.mxu0 %v215
  %v530 = vpop.f32.mrf.mxu0
  %v531 = vadd.f32 %v442, %v530
  %v532 = vpop.f32.mrf.mxu0
  %v533 = vadd.f32 %v444, %v532
  %534 = vmatmul.bf16.gmra.mxu0 %v217
  %v535 = vpop.f32.mrf.mxu0
  %v536 = vadd.f32 %v447, %v535
  %v537 = vpop.f32.mrf.mxu0
  %v538 = vadd.f32 %v449, %v537
  %539 = vmatmul.bf16.gmra.mxu0 %v219
  %v540 = vpop.f32.mrf.mxu0
  %v541 = vadd.f32 %v452, %v540
  %v542 = vpop.f32.mrf.mxu0
  %v543 = vadd.f32 %v454, %v542
  %544 = vmatmul.bf16.gmra.mxu0 %v221
  %v545 = vpop.f32.mrf.mxu0
  %v546 = vadd.f32 %v457, %v545
  %v547 = vpop.f32.mrf.mxu0
  %v548 = vadd.f32 %v459, %v547
  %549 = vmatmul.bf16.gmra.mxu0 %v223
  %v550 = vpop.f32.mrf.mxu0
  %v551 = vadd.f32 %v462, %v550
  %v552 = vpop.f32.mrf.mxu0
  %v553 = vadd.f32 %v464, %v552
  %554 = vmatmul.bf16.gmra.mxu0 %v225
  %v555 = vpop.f32.mrf.mxu0
  %v556 = vadd.f32 %v467, %v555
  %v557 = vpop.f32.mrf.mxu0
  %v558 = vadd.f32 %v469, %v557
  %559 = vmatmul.bf16.gmra.mxu0 %v227
  %v560 = vpop.f32.mrf.mxu0
  %v561 = vadd.f32 %v472, %v560
  %v562 = vpop.f32.mrf.mxu0
  %v563 = vadd.f32 %v474, %v562
  %564 = vmatmul.bf16.gmra.mxu0 %v229
  %v565 = vpop.f32.mrf.mxu0
  %v566 = vadd.f32 %v477, %v565
  %v567 = vpop.f32.mrf.mxu0
  %v568 = vadd.f32 %v479, %v567
  %569 = vmatmul.bf16.gmra.mxu0 %v231
  %v570 = vpop.f32.mrf.mxu0
  %v571 = vadd.f32 %v482, %v570
  %v572 = vpop.f32.mrf.mxu0
  %v573 = vadd.f32 %v484, %v572
  %574 = vdwg.mxu0
  %v575 = vadd.f32 %v269, %v496
  %v576 = vadd.f32 %v270, %v498
  %v577 = vadd.f32 %v271, %v501
  %v578 = vadd.f32 %v272, %v503
  %v579 = vadd.f32 %v273, %v506
  %v580 = vadd.f32 %v274, %v508
  %v581 = vadd.f32 %v275, %v511
  %v582 = vadd.f32 %v276, %v513
  %v583 = vadd.f32 %v277, %v516
  %v584 = vadd.f32 %v278, %v518
  %v585 = vadd.f32 %v279, %v521
  %v586 = vadd.f32 %v280, %v523
  %v587 = vadd.f32 %v281, %v526
  %v588 = vadd.f32 %v282, %v528
  %v589 = vadd.f32 %v283, %v531
  %v590 = vadd.f32 %v284, %v533
  %v591 = vadd.f32 %v285, %v536
  %v592 = vadd.f32 %v286, %v538
  %v593 = vadd.f32 %v287, %v541
  %v594 = vadd.f32 %v288, %v543
  %v595 = vadd.f32 %v289, %v546
  %v596 = vadd.f32 %v290, %v548
  %v597 = vadd.f32 %v291, %v551
  %v598 = vadd.f32 %v292, %v553
  %v599 = vadd.f32 %v293, %v556
  %v600 = vadd.f32 %v294, %v558
  %v601 = vadd.f32 %v295, %v561
  %v602 = vadd.f32 %v296, %v563
  %v603 = vadd.f32 %v297, %v566
  %v604 = vadd.f32 %v298, %v568
  %v605 = vadd.f32 %v299, %v571
  %v606 = vadd.f32 %v300, %v573
  %607 = vst [vmem:[#allocation2] sm:$0xff] %v575
  %608 = vst [vmem:[#allocation2 + $0x8] sm:$0xff] %v576
  %609 = vst [vmem:[#allocation2 + $0x10] sm:$0xff] %v577
  %610 = vst [vmem:[#allocation2 + $0x18] sm:$0xff] %v578
  %611 = vst [vmem:[#allocation2 + $0x20] sm:$0xff] %v579
  %612 = vst [vmem:[#allocation2 + $0x28] sm:$0xff] %v580
  %613 = vst [vmem:[#allocation2 + $0x30] sm:$0xff] %v581
  %614 = vst [vmem:[#allocation2 + $0x38] sm:$0xff] %v582
  %615 = vst [vmem:[#allocation2 + $0x40] sm:$0xff] %v583
  %616 = vst [vmem:[#allocation2 + $0x48] sm:$0xff] %v584
  %617 = vst [vmem:[#allocation2 + $0x50] sm:$0xff] %v585
  %618 = vst [vmem:[#allocation2 + $0x58] sm:$0xff] %v586
  %619 = vst [vmem:[#allocation2 + $0x60] sm:$0xff] %v587
  %620 = vst [vmem:[#allocation2 + $0x68] sm:$0xff] %v588
  %621 = vst [vmem:[#allocation2 + $0x70] sm:$0xff] %v589
  %622 = vst [vmem:[#allocation2 + $0x78] sm:$0xff] %v590
  %623 = vst [vmem:[#allocation2 + $0x80] sm:$0xff] %v591
  %624 = vst [vmem:[#allocation2 + $0x88] sm:$0xff] %v592
  %625 = vst [vmem:[#allocation2 + $0x90] sm:$0xff] %v593
  %626 = vst [vmem:[#allocation2 + $0x98] sm:$0xff] %v594
  %627 = vst [vmem:[#allocation2 + $0xa0] sm:$0xff] %v595
  %628 = vst [vmem:[#allocation2 + $0xa8] sm:$0xff] %v596
  %629 = vst [vmem:[#allocation2 + $0xb0] sm:$0xff] %v597
  %630 = vst [vmem:[#allocation2 + $0xb8] sm:$0xff] %v598
  %631 = vst [vmem:[#allocation2 + $0xc0] sm:$0xff] %v599
  %632 = vst [vmem:[#allocation2 + $0xc8] sm:$0xff] %v600
  %633 = vst [vmem:[#allocation2 + $0xd0] sm:$0xff] %v601
  %634 = vst [vmem:[#allocation2 + $0xd8] sm:$0xff] %v602
  %635 = vst [vmem:[#allocation2 + $0xe0] sm:$0xff] %v603
  %636 = vst [vmem:[#allocation2 + $0xe8] sm:$0xff] %v604
  %637 = vst [vmem:[#allocation2 + $0xf0] sm:$0xff] %v605
  %638 = vst [vmem:[#allocation2 + $0xf8] sm:$0xff] %v606
  // Predicated region
  $region26: #{gcn_forward.4} parent=0 // pred_check
    %p639 = pneg %p20
  $region27: #{gcn_forward.4} parent=0 // pred_check_branch
    %641 = sbr.rel (%p639) target = $region29
  $region28: #{gcn_forward.4} parent=0 // pred_region
    %v642 = vld [vmem:[#allocation2] sm:$0xff]
    %v643 = vld [vmem:[#allocation2 + $0x8] sm:$0xff]
    %v644 = vld [vmem:[#allocation2 + $0x10] sm:$0xff]
    %v645 = vld [vmem:[#allocation2 + $0x18] sm:$0xff]
    %v646 = vld [vmem:[#allocation2 + $0x20] sm:$0xff]
    %v647 = vld [vmem:[#allocation2 + $0x28] sm:$0xff]
    %v648 = vld [vmem:[#allocation2 + $0x30] sm:$0xff]
    %v649 = vld [vmem:[#allocation2 + $0x38] sm:$0xff]
    %v650 = vld [vmem:[#allocation2 + $0x40] sm:$0xff]
    %v651 = vld [vmem:[#allocation2 + $0x48] sm:$0xff]
    %v652 = vld [vmem:[#allocation2 + $0x50] sm:$0xff]
    %v653 = vld [vmem:[#allocation2 + $0x58] sm:$0xff]
    %v654 = vld [vmem:[#allocation2 + $0x60] sm:$0xff]
    %v655 = vld [vmem:[#allocation2 + $0x68] sm:$0xff]
    %v656 = vld [vmem:[#allocation2 + $0x70] sm:$0xff]
    %v657 = vld [vmem:[#allocation2 + $0x78] sm:$0xff]
    %v658 = vld [vmem:[#allocation2 + $0x80] sm:$0xff]
    %v659 = vld [vmem:[#allocation2 + $0x88] sm:$0xff]
    %v660 = vld [vmem:[#allocation2 + $0x90] sm:$0xff]
    %v661 = vld [vmem:[#allocation2 + $0x98] sm:$0xff]
    %v662 = vld [vmem:[#allocation2 + $0xa0] sm:$0xff]
    %v663 = vld [vmem:[#allocation2 + $0xa8] sm:$0xff]
    %v664 = vld [vmem:[#allocation2 + $0xb0] sm:$0xff]
    %v665 = vld [vmem:[#allocation2 + $0xb8] sm:$0xff]
    %v666 = vld [vmem:[#allocation2 + $0xc0] sm:$0xff]
    %v667 = vld [vmem:[#allocation2 + $0xc8] sm:$0xff]
    %v668 = vld [vmem:[#allocation2 + $0xd0] sm:$0xff]
    %v669 = vld [vmem:[#allocation2 + $0xd8] sm:$0xff]
    %v670 = vld [vmem:[#allocation2 + $0xe0] sm:$0xff]
    %v671 = vld [vmem:[#allocation2 + $0xe8] sm:$0xff]
    %v672 = vld [vmem:[#allocation2 + $0xf0] sm:$0xff]
    %v673 = vld [vmem:[#allocation2 + $0xf8] sm:$0xff]
    %v674 = vld [vmem:[%s2] sm:$0xff]
    %v675 = vld [vmem:[%s2 + $0x8] sm:$0xff]
    %v676 = vld [vmem:[%s2 + $0x10] sm:$0xff]
    %v677 = vld [vmem:[%s2 + $0x18] sm:$0xff]
    %v678 = vld [vmem:[%s2 + $0x20] sm:$0xff]
    %v679 = vld [vmem:[%s2 + $0x28] sm:$0xff]
    %v680 = vld [vmem:[%s2 + $0x30] sm:$0xff]
    %v681 = vld [vmem:[%s2 + $0x38] sm:$0xff]
    %v682 = vld [vmem:[%s2 + $0x40] sm:$0xff]
    %v683 = vld [vmem:[%s2 + $0x48] sm:$0xff]
    %v684 = vld [vmem:[%s2 + $0x50] sm:$0xff]
    %v685 = vld [vmem:[%s2 + $0x58] sm:$0xff]
    %v686 = vld [vmem:[%s2 + $0x60] sm:$0xff]
    %v687 = vld [vmem:[%s2 + $0x68] sm:$0xff]
    %v688 = vld [vmem:[%s2 + $0x70] sm:$0xff]
    %v689 = vld [vmem:[%s2 + $0x78] sm:$0xff]
    %v690 = vld [vmem:[%s2 + $0x80] sm:$0xff]
    %v691 = vld [vmem:[%s2 + $0x88] sm:$0xff]
    %v692 = vld [vmem:[%s2 + $0x90] sm:$0xff]
    %v693 = vld [vmem:[%s2 + $0x98] sm:$0xff]
    %v694 = vld [vmem:[%s2 + $0xa0] sm:$0xff]
    %v695 = vld [vmem:[%s2 + $0xa8] sm:$0xff]
    %v696 = vld [vmem:[%s2 + $0xb0] sm:$0xff]
    %v697 = vld [vmem:[%s2 + $0xb8] sm:$0xff]
    %v698 = vld [vmem:[%s2 + $0xc0] sm:$0xff]
    %v699 = vld [vmem:[%s2 + $0xc8] sm:$0xff]
    %v700 = vld [vmem:[%s2 + $0xd0] sm:$0xff]
    %v701 = vld [vmem:[%s2 + $0xd8] sm:$0xff]
    %v702 = vld [vmem:[%s2 + $0xe0] sm:$0xff]
    %v703 = vld [vmem:[%s2 + $0xe8] sm:$0xff]
    %v704 = vld [vmem:[%s2 + $0xf0] sm:$0xff]
    %v705 = vld [vmem:[%s2 + $0xf8] sm:$0xff]
    %707 = vset.pattern.permute.xlu0 0
    %708 = vperm.xlu0 %707, %v674
    %v709 = vpop.permute.xlu0 %708
    %712 = vset.pattern.permute.xlu0 0
    %713 = vperm.xlu0 %712, %v675
    %v714 = vpop.permute.xlu0 %713
    %717 = vset.pattern.permute.xlu0 0
    %718 = vperm.xlu0 %717, %v676
    %v719 = vpop.permute.xlu0 %718
    %722 = vset.pattern.permute.xlu0 0
    %723 = vperm.xlu0 %722, %v677
    %v724 = vpop.permute.xlu0 %723
    %727 = vset.pattern.permute.xlu0 0
    %728 = vperm.xlu0 %727, %v678
    %v729 = vpop.permute.xlu0 %728
    %732 = vset.pattern.permute.xlu0 0
    %733 = vperm.xlu0 %732, %v679
    %v734 = vpop.permute.xlu0 %733
    %737 = vset.pattern.permute.xlu0 0
    %738 = vperm.xlu0 %737, %v680
    %v739 = vpop.permute.xlu0 %738
    %742 = vset.pattern.permute.xlu0 0
    %743 = vperm.xlu0 %742, %v681
    %v744 = vpop.permute.xlu0 %743
    %747 = vset.pattern.permute.xlu0 0
    %748 = vperm.xlu0 %747, %v682
    %v749 = vpop.permute.xlu0 %748
    %752 = vset.pattern.permute.xlu0 0
    %753 = vperm.xlu0 %752, %v683
    %v754 = vpop.permute.xlu0 %753
    %757 = vset.pattern.permute.xlu0 0
    %758 = vperm.xlu0 %757, %v684
    %v759 = vpop.permute.xlu0 %758
    %762 = vset.pattern.permute.xlu0 0
    %763 = vperm.xlu0 %762, %v685
    %v764 = vpop.permute.xlu0 %763
    %767 = vset.pattern.permute.xlu0 0
    %768 = vperm.xlu0 %767, %v686
    %v769 = vpop.permute.xlu0 %768
    %772 = vset.pattern.permute.xlu0 0
    %773 = vperm.xlu0 %772, %v687
    %v774 = vpop.permute.xlu0 %773
    %777 = vset.pattern.permute.xlu0 0
    %778 = vperm.xlu0 %777, %v688
    %v779 = vpop.permute.xlu0 %778
    %782 = vset.pattern.permute.xlu0 0
    %783 = vperm.xlu0 %782, %v689
    %v784 = vpop.permute.xlu0 %783
    %787 = vset.pattern.permute.xlu0 0
    %788 = vperm.xlu0 %787, %v690
    %v789 = vpop.permute.xlu0 %788
    %792 = vset.pattern.permute.xlu0 0
    %793 = vperm.xlu0 %792, %v691
    %v794 = vpop.permute.xlu0 %793
    %797 = vset.pattern.permute.xlu0 0
    %798 = vperm.xlu0 %797, %v692
    %v799 = vpop.permute.xlu0 %798
    %802 = vset.pattern.permute.xlu0 0
    %803 = vperm.xlu0 %802, %v693
    %v804 = vpop.permute.xlu0 %803
    %807 = vset.pattern.permute.xlu0 0
    %808 = vperm.xlu0 %807, %v694
    %v809 = vpop.permute.xlu0 %808
    %812 = vset.pattern.permute.xlu0 0
    %813 = vperm.xlu0 %812, %v695
    %v814 = vpop.permute.xlu0 %813
    %817 = vset.pattern.permute.xlu0 0
    %818 = vperm.xlu0 %817, %v696
    %v819 = vpop.permute.xlu0 %818
    %822 = vset.pattern.permute.xlu0 0
    %823 = vperm.xlu0 %822, %v697
    %v824 = vpop.permute.xlu0 %823
    %827 = vset.pattern.permute.xlu0 0
    %828 = vperm.xlu0 %827, %v698
    %v829 = vpop.permute.xlu0 %828
    %832 = vset.pattern.permute.xlu0 0
    %833 = vperm.xlu0 %832, %v699
    %v834 = vpop.permute.xlu0 %833
    %837 = vset.pattern.permute.xlu0 0
    %838 = vperm.xlu0 %837, %v700
    %v839 = vpop.permute.xlu0 %838
    %842 = vset.pattern.permute.xlu0 0
    %843 = vperm.xlu0 %842, %v701
    %v844 = vpop.permute.xlu0 %843
    %847 = vset.pattern.permute.xlu0 0
    %848 = vperm.xlu0 %847, %v702
    %v849 = vpop.permute.xlu0 %848
    %852 = vset.pattern.permute.xlu0 0
    %853 = vperm.xlu0 %852, %v703
    %v854 = vpop.permute.xlu0 %853
    %857 = vset.pattern.permute.xlu0 0
    %858 = vperm.xlu0 %857, %v704
    %v859 = vpop.permute.xlu0 %858
    %862 = vset.pattern.permute.xlu0 0
    %863 = vperm.xlu0 %862, %v705
    %v864 = vpop.permute.xlu0 %863
    %v866 = vmul.f32 %v642, %v709
    %v867 = vmul.f32 %v643, %v714
    %v868 = vmul.f32 %v644, %v719
    %v869 = vmul.f32 %v645, %v724
    %v870 = vmul.f32 %v646, %v729
    %v871 = vmul.f32 %v647, %v734
    %v872 = vmul.f32 %v648, %v739
    %v873 = vmul.f32 %v649, %v744
    %v874 = vmul.f32 %v650, %v749
    %v875 = vmul.f32 %v651, %v754
    %v876 = vmul.f32 %v652, %v759
    %v877 = vmul.f32 %v653, %v764
    %v878 = vmul.f32 %v654, %v769
    %v879 = vmul.f32 %v655, %v774
    %v880 = vmul.f32 %v656, %v779
    %v881 = vmul.f32 %v657, %v784
    %v882 = vmul.f32 %v658, %v789
    %v883 = vmul.f32 %v659, %v794
    %v884 = vmul.f32 %v660, %v799
    %v885 = vmul.f32 %v661, %v804
    %v886 = vmul.f32 %v662, %v809
    %v887 = vmul.f32 %v663, %v814
    %v888 = vmul.f32 %v664, %v819
    %v889 = vmul.f32 %v665, %v824
    %v890 = vmul.f32 %v666, %v829
    %v891 = vmul.f32 %v667, %v834
    %v892 = vmul.f32 %v668, %v839
    %v893 = vmul.f32 %v669, %v844
    %v894 = vmul.f32 %v670, %v849
    %v895 = vmul.f32 %v671, %v854
    %v896 = vmul.f32 %v672, %v859
    %v897 = vmul.f32 %v673, %v864
    %v898 = vld [vmem:[%s3] sm:$0x1]
    %v900 = vperm.slane %v898, 0
    %v902 = vadd.f32 %v866, %v900
    %v903 = vadd.f32 %v867, %v900
    %v904 = vadd.f32 %v868, %v900
    %v905 = vadd.f32 %v869, %v900
    %v906 = vadd.f32 %v870, %v900
    %v907 = vadd.f32 %v871, %v900
    %v908 = vadd.f32 %v872, %v900
    %v909 = vadd.f32 %v873, %v900
    %v910 = vadd.f32 %v874, %v900
    %v911 = vadd.f32 %v875, %v900
    %v912 = vadd.f32 %v876, %v900
    %v913 = vadd.f32 %v877, %v900
    %v914 = vadd.f32 %v878, %v900
    %v915 = vadd.f32 %v879, %v900
    %v916 = vadd.f32 %v880, %v900
    %v917 = vadd.f32 %v881, %v900
    %v918 = vadd.f32 %v882, %v900
    %v919 = vadd.f32 %v883, %v900
    %v920 = vadd.f32 %v884, %v900
    %v921 = vadd.f32 %v885, %v900
    %v922 = vadd.f32 %v886, %v900
    %v923 = vadd.f32 %v887, %v900
    %v924 = vadd.f32 %v888, %v900
    %v925 = vadd.f32 %v889, %v900
    %v926 = vadd.f32 %v890, %v900
    %v927 = vadd.f32 %v891, %v900
    %v928 = vadd.f32 %v892, %v900
    %v929 = vadd.f32 %v893, %v900
    %v930 = vadd.f32 %v894, %v900
    %v931 = vadd.f32 %v895, %v900
    %v932 = vadd.f32 %v896, %v900
    %v933 = vadd.f32 %v897, %v900
    %v934 = vmax.f32 %v902, 0.0
    %v935 = vmax.f32 %v903, 0.0
    %v936 = vmax.f32 %v904, 0.0
    %v937 = vmax.f32 %v905, 0.0
    %v938 = vmax.f32 %v906, 0.0
    %v939 = vmax.f32 %v907, 0.0
    %v940 = vmax.f32 %v908, 0.0
    %v941 = vmax.f32 %v909, 0.0
    %v942 = vmax.f32 %v910, 0.0
    %v943 = vmax.f32 %v911, 0.0
    %v944 = vmax.f32 %v912, 0.0
    %v945 = vmax.f32 %v913, 0.0
    %v946 = vmax.f32 %v914, 0.0
    %v947 = vmax.f32 %v915, 0.0
    %v948 = vmax.f32 %v916, 0.0
    %v949 = vmax.f32 %v917, 0.0
    %v950 = vmax.f32 %v918, 0.0
    %v951 = vmax.f32 %v919, 0.0
    %v952 = vmax.f32 %v920, 0.0
    %v953 = vmax.f32 %v921, 0.0
    %v954 = vmax.f32 %v922, 0.0
    %v955 = vmax.f32 %v923, 0.0
    %v956 = vmax.f32 %v924, 0.0
    %v957 = vmax.f32 %v925, 0.0
    %v958 = vmax.f32 %v926, 0.0
    %v959 = vmax.f32 %v927, 0.0
    %v960 = vmax.f32 %v928, 0.0
    %v961 = vmax.f32 %v929, 0.0
    %v962 = vmax.f32 %v930, 0.0
    %v963 = vmax.f32 %v931, 0.0
    %v964 = vmax.f32 %v932, 0.0
    %v965 = vmax.f32 %v933, 0.0
    %v966 = vpack.c.bf16 %v935, %v934
    %v967 = vpack.c.bf16 %v937, %v936
    %v968 = vpack.c.bf16 %v939, %v938
    %v969 = vpack.c.bf16 %v941, %v940
    %v970 = vpack.c.bf16 %v943, %v942
    %v971 = vpack.c.bf16 %v945, %v944
    %v972 = vpack.c.bf16 %v947, %v946
    %v973 = vpack.c.bf16 %v949, %v948
    %v974 = vpack.c.bf16 %v951, %v950
    %v975 = vpack.c.bf16 %v953, %v952
    %v976 = vpack.c.bf16 %v955, %v954
    %v977 = vpack.c.bf16 %v957, %v956
    %v978 = vpack.c.bf16 %v959, %v958
    %v979 = vpack.c.bf16 %v961, %v960
    %v980 = vpack.c.bf16 %v963, %v962
    %v981 = vpack.c.bf16 %v965, %v964
    %v982 = vld [vmem:[%s4] sm:$0xf]
    %v983 = vld [vmem:[%s4 + $0x4] sm:$0xf]
    %v984 = vld [vmem:[%s4 + $0x8] sm:$0xf]
    %v985 = vld [vmem:[%s4 + $0xc] sm:$0xf]
    %v986 = vld [vmem:[%s4 + $0x10] sm:$0xf]
    %v987 = vld [vmem:[%s4 + $0x14] sm:$0xf]
    %v988 = vld [vmem:[%s4 + $0x18] sm:$0xf]
    %v989 = vld [vmem:[%s4 + $0x1c] sm:$0xf]
    %v990 = vld [vmem:[%s4 + $0x20] sm:$0xf]
    %v991 = vld [vmem:[%s4 + $0x24] sm:$0xf]
    %v992 = vld [vmem:[%s4 + $0x28] sm:$0xf]
    %v993 = vld [vmem:[%s4 + $0x2c] sm:$0xf]
    %v994 = vld [vmem:[%s4 + $0x30] sm:$0xf]
    %v995 = vld [vmem:[%s4 + $0x34] sm:$0xf]
    %v996 = vld [vmem:[%s4 + $0x38] sm:$0xf]
    %v997 = vld [vmem:[%s4 + $0x3c] sm:$0xf]
    %v1014 = vunpack.c.l.b16 %v982
    %v1015 = vunpack.c.l.b16 %v983
    %v1016 = vunpack.c.l.b16 %v984
    %v1017 = vunpack.c.l.b16 %v985
    %v1018 = vunpack.c.l.b16 %v986
    %v1019 = vunpack.c.l.b16 %v987
    %v1020 = vunpack.c.l.b16 %v988
    %v1021 = vunpack.c.l.b16 %v989
    %v1022 = vunpack.c.l.b16 %v990
    %v1023 = vunpack.c.l.b16 %v991
    %v1024 = vunpack.c.l.b16 %v992
    %v1025 = vunpack.c.l.b16 %v993
    %v1026 = vunpack.c.l.b16 %v994
    %v1027 = vunpack.c.l.b16 %v995
    %v1028 = vunpack.c.l.b16 %v996
    %v1029 = vunpack.c.l.b16 %v997
    %v1030 = vpack.c.b16 %v1015, %v1014
    %v1031 = vpack.c.b16 %v1017, %v1016
    %v1032 = vpack.c.b16 %v1019, %v1018
    %v1033 = vpack.c.b16 %v1021, %v1020
    %v1034 = vpack.c.b16 %v1023, %v1022
    %v1035 = vpack.c.b16 %v1025, %v1024
    %v1036 = vpack.c.b16 %v1027, %v1026
    %v1037 = vpack.c.b16 %v1029, %v1028
    %1046 = vmatpush.bf16.msra.mxu0 %v1037
    %1047 = vmatpush.bf16.msra.mxu0 %v1036
    %1048 = vmatpush.bf16.msra.mxu0 %v1035
    %1049 = vmatpush.bf16.msra.mxu0 %v1034
    %1050 = vmatpush.bf16.msra.mxu0 %v1033
    %1051 = vmatpush.bf16.msra.mxu0 %v1032
    %1052 = vmatpush.bf16.msra.mxu0 %v1031
    %1053 = vmatpush.bf16.msra.mxu0 %v1030
    %1054 = vmatmul.bf16.gmra.mxu0 %v966
    %v1055 = vpop.f32.mrf.mxu0
    %v1056 = vadd.f32 0.0, %v1055
    %v1057 = vpop.f32.mrf.mxu0
    %v1058 = vadd.f32 0.0, %v1057
    %1059 = vmatmul.bf16.gmra.mxu0 %v967
    %v1060 = vpop.f32.mrf.mxu0
    %v1061 = vadd.f32 0.0, %v1060
    %v1062 = vpop.f32.mrf.mxu0
    %v1063 = vadd.f32 0.0, %v1062
    %1064 = vmatmul.bf16.gmra.mxu0 %v968
    %v1065 = vpop.f32.mrf.mxu0
    %v1066 = vadd.f32 0.0, %v1065
    %v1067 = vpop.f32.mrf.mxu0
    %v1068 = vadd.f32 0.0, %v1067
    %1069 = vmatmul.bf16.gmra.mxu0 %v969
    %v1070 = vpop.f32.mrf.mxu0
    %v1071 = vadd.f32 0.0, %v1070
    %v1072 = vpop.f32.mrf.mxu0
    %v1073 = vadd.f32 0.0, %v1072
    %1074 = vmatmul.bf16.gmra.mxu0 %v970
    %v1075 = vpop.f32.mrf.mxu0
    %v1076 = vadd.f32 0.0, %v1075
    %v1077 = vpop.f32.mrf.mxu0
    %v1078 = vadd.f32 0.0, %v1077
    %1079 = vmatmul.bf16.gmra.mxu0 %v971
    %v1080 = vpop.f32.mrf.mxu0
    %v1081 = vadd.f32 0.0, %v1080
    %v1082 = vpop.f32.mrf.mxu0
    %v1083 = vadd.f32 0.0, %v1082
    %1084 = vmatmul.bf16.gmra.mxu0 %v972
    %v1085 = vpop.f32.mrf.mxu0
    %v1086 = vadd.f32 0.0, %v1085
    %v1087 = vpop.f32.mrf.mxu0
    %v1088 = vadd.f32 0.0, %v1087
    %1089 = vmatmul.bf16.gmra.mxu0 %v973
    %v1090 = vpop.f32.mrf.mxu0
    %v1091 = vadd.f32 0.0, %v1090
    %v1092 = vpop.f32.mrf.mxu0
    %v1093 = vadd.f32 0.0, %v1092
    %1094 = vmatmul.bf16.gmra.mxu0 %v974
    %v1095 = vpop.f32.mrf.mxu0
    %v1096 = vadd.f32 0.0, %v1095
    %v1097 = vpop.f32.mrf.mxu0
    %v1098 = vadd.f32 0.0, %v1097
    %1099 = vmatmul.bf16.gmra.mxu0 %v975
    %v1100 = vpop.f32.mrf.mxu0
    %v1101 = vadd.f32 0.0, %v1100
    %v1102 = vpop.f32.mrf.mxu0
    %v1103 = vadd.f32 0.0, %v1102
    %1104 = vmatmul.bf16.gmra.mxu0 %v976
    %v1105 = vpop.f32.mrf.mxu0
    %v1106 = vadd.f32 0.0, %v1105
    %v1107 = vpop.f32.mrf.mxu0
    %v1108 = vadd.f32 0.0, %v1107
    %1109 = vmatmul.bf16.gmra.mxu0 %v977
    %v1110 = vpop.f32.mrf.mxu0
    %v1111 = vadd.f32 0.0, %v1110
    %v1112 = vpop.f32.mrf.mxu0
    %v1113 = vadd.f32 0.0, %v1112
    %1114 = vmatmul.bf16.gmra.mxu0 %v978
    %v1115 = vpop.f32.mrf.mxu0
    %v1116 = vadd.f32 0.0, %v1115
    %v1117 = vpop.f32.mrf.mxu0
    %v1118 = vadd.f32 0.0, %v1117
    %1119 = vmatmul.bf16.gmra.mxu0 %v979
    %v1120 = vpop.f32.mrf.mxu0
    %v1121 = vadd.f32 0.0, %v1120
    %v1122 = vpop.f32.mrf.mxu0
    %v1123 = vadd.f32 0.0, %v1122
    %1124 = vmatmul.bf16.gmra.mxu0 %v980
    %v1125 = vpop.f32.mrf.mxu0
    %v1126 = vadd.f32 0.0, %v1125
    %v1127 = vpop.f32.mrf.mxu0
    %v1128 = vadd.f32 0.0, %v1127
    %1129 = vmatmul.bf16.gmra.mxu0 %v981
    %v1130 = vpop.f32.mrf.mxu0
    %v1131 = vadd.f32 0.0, %v1130
    %v1132 = vpop.f32.mrf.mxu0
    %v1133 = vadd.f32 0.0, %v1132
    %1134 = vdwg.mxu0
    %v1135 = vmul.f32 %v1056, %v709
    %v1136 = vmul.f32 %v1058, %v714
    %v1137 = vmul.f32 %v1061, %v719
    %v1138 = vmul.f32 %v1063, %v724
    %v1139 = vmul.f32 %v1066, %v729
    %v1140 = vmul.f32 %v1068, %v734
    %v1141 = vmul.f32 %v1071, %v739
    %v1142 = vmul.f32 %v1073, %v744
    %v1143 = vmul.f32 %v1076, %v749
    %v1144 = vmul.f32 %v1078, %v754
    %v1145 = vmul.f32 %v1081, %v759
    %v1146 = vmul.f32 %v1083, %v764
    %v1147 = vmul.f32 %v1086, %v769
    %v1148 = vmul.f32 %v1088, %v774
    %v1149 = vmul.f32 %v1091, %v779
    %v1150 = vmul.f32 %v1093, %v784
    %v1151 = vmul.f32 %v1096, %v789
    %v1152 = vmul.f32 %v1098, %v794
    %v1153 = vmul.f32 %v1101, %v799
    %v1154 = vmul.f32 %v1103, %v804
    %v1155 = vmul.f32 %v1106, %v809
    %v1156 = vmul.f32 %v1108, %v814
    %v1157 = vmul.f32 %v1111, %v819
    %v1158 = vmul.f32 %v1113, %v824
    %v1159 = vmul.f32 %v1116, %v829
    %v1160 = vmul.f32 %v1118, %v834
    %v1161 = vmul.f32 %v1121, %v839
    %v1162 = vmul.f32 %v1123, %v844
    %v1163 = vmul.f32 %v1126, %v849
    %v1164 = vmul.f32 %v1128, %v854
    %v1165 = vmul.f32 %v1131, %v859
    %v1166 = vmul.f32 %v1133, %v864
    %v1167 = vpack.c.bf16 %v1135, %v1135
    %v1168 = vpack.c.bf16 %v1136, %v1136
    %v1169 = vpack.c.bf16 %v1137, %v1137
    %v1170 = vpack.c.bf16 %v1138, %v1138
    %v1171 = vpack.c.bf16 %v1139, %v1139
    %v1172 = vpack.c.bf16 %v1140, %v1140
    %v1173 = vpack.c.bf16 %v1141, %v1141
    %v1174 = vpack.c.bf16 %v1142, %v1142
    %v1175 = vpack.c.bf16 %v1143, %v1143
    %v1176 = vpack.c.bf16 %v1144, %v1144
    %v1177 = vpack.c.bf16 %v1145, %v1145
    %v1178 = vpack.c.bf16 %v1146, %v1146
    %v1179 = vpack.c.bf16 %v1147, %v1147
    %v1180 = vpack.c.bf16 %v1148, %v1148
    %v1181 = vpack.c.bf16 %v1149, %v1149
    %v1182 = vpack.c.bf16 %v1150, %v1150
    %v1183 = vpack.c.bf16 %v1151, %v1151
    %v1184 = vpack.c.bf16 %v1152, %v1152
    %v1185 = vpack.c.bf16 %v1153, %v1153
    %v1186 = vpack.c.bf16 %v1154, %v1154
    %v1187 = vpack.c.bf16 %v1155, %v1155
    %v1188 = vpack.c.bf16 %v1156, %v1156
    %v1189 = vpack.c.bf16 %v1157, %v1157
    %v1190 = vpack.c.bf16 %v1158, %v1158
    %v1191 = vpack.c.bf16 %v1159, %v1159
    %v1192 = vpack.c.bf16 %v1160, %v1160
    %v1193 = vpack.c.bf16 %v1161, %v1161
    %v1194 = vpack.c.bf16 %v1162, %v1162
    %v1195 = vpack.c.bf16 %v1163, %v1163
    %v1196 = vpack.c.bf16 %v1164, %v1164
    %v1197 = vpack.c.bf16 %v1165, %v1165
    %v1198 = vpack.c.bf16 %v1166, %v1166
    %1199 = vst [vmem:[%s5] sm:$0xf] %v1167
    %1200 = vst [vmem:[%s5 + $0x4] sm:$0xf] %v1168
    %1201 = vst [vmem:[%s5 + $0x8] sm:$0xf] %v1169
    %1202 = vst [vmem:[%s5 + $0xc] sm:$0xf] %v1170
    %1203 = vst [vmem:[%s5 + $0x10] sm:$0xf] %v1171
    %1204 = vst [vmem:[%s5 + $0x14] sm:$0xf] %v1172
    %1205 = vst [vmem:[%s5 + $0x18] sm:$0xf] %v1173
    %1206 = vst [vmem:[%s5 + $0x1c] sm:$0xf] %v1174
    %1207 = vst [vmem:[%s5 + $0x20] sm:$0xf] %v1175
    %1208 = vst [vmem:[%s5 + $0x24] sm:$0xf] %v1176
    %1209 = vst [vmem:[%s5 + $0x28] sm:$0xf] %v1177
    %1210 = vst [vmem:[%s5 + $0x2c] sm:$0xf] %v1178
    %1211 = vst [vmem:[%s5 + $0x30] sm:$0xf] %v1179
    %1212 = vst [vmem:[%s5 + $0x34] sm:$0xf] %v1180
    %1213 = vst [vmem:[%s5 + $0x38] sm:$0xf] %v1181
    %1214 = vst [vmem:[%s5 + $0x3c] sm:$0xf] %v1182
    %1215 = vst [vmem:[%s5 + $0x40] sm:$0xf] %v1183
    %1216 = vst [vmem:[%s5 + $0x44] sm:$0xf] %v1184
    %1217 = vst [vmem:[%s5 + $0x48] sm:$0xf] %v1185
    %1218 = vst [vmem:[%s5 + $0x4c] sm:$0xf] %v1186
    %1219 = vst [vmem:[%s5 + $0x50] sm:$0xf] %v1187
    %1220 = vst [vmem:[%s5 + $0x54] sm:$0xf] %v1188
    %1221 = vst [vmem:[%s5 + $0x58] sm:$0xf] %v1189
    %1222 = vst [vmem:[%s5 + $0x5c] sm:$0xf] %v1190
    %1223 = vst [vmem:[%s5 + $0x60] sm:$0xf] %v1191
    %1224 = vst [vmem:[%s5 + $0x64] sm:$0xf] %v1192
    %1225 = vst [vmem:[%s5 + $0x68] sm:$0xf] %v1193
    %1226 = vst [vmem:[%s5 + $0x6c] sm:$0xf] %v1194
    %1227 = vst [vmem:[%s5 + $0x70] sm:$0xf] %v1195
    %1228 = vst [vmem:[%s5 + $0x74] sm:$0xf] %v1196
    %1229 = vst [vmem:[%s5 + $0x78] sm:$0xf] %v1197
    %1230 = vst [vmem:[%s5 + $0x7c] sm:$0xf] %v1198
  $region29: #{gcn_forward.4} parent=0 // pred_fallthru
    _
  // Predicated region
  $region30: #{gcn_forward.4} parent=0 // pred_check
    _
  $region31: #{gcn_forward.4} parent=0 // pred_check_branch
    %1232 = sbr.rel (0) target = $region33
  $region32: #{gcn_forward.4} parent=0 // pred_region
    _
  $region33: #{gcn_forward.4} parent=0 // pred_fallthru
    _
  // Predicated region
  $region34: #{gcn_forward.4} parent=0 // pred_check
    _
  $region35: #{gcn_forward.4} parent=0 // pred_check_branch
    %1234 = sbr.rel (0) target = $region37
  $region36: #{gcn_forward.4} parent=0 // pred_region
    _
  $region37: #{gcn_forward.4} parent=0 // pred_fallthru
    _

</llo_original>
